<compile_context>
chip_gen: v7x
topology: tpu7x:2x2x1
jax: 0.10.0
libtpu: 0.0.40
codegen_flags: <defaults>
</compile_context>

<pallas_src>
import functools

import jax
import jax.numpy as jnp
from jax.experimental import pallas as pl
from jax.experimental.pallas import tpu as pltpu


def _round_up(n, m):
    return ((n + m - 1) // m) * m


def fitting_kernel(x_ref,
                   w0_ref, b0_ref, r0_ref,
                   w1_ref, b1_ref, r1_ref,
                   w2_ref, b2_ref,
                   o_ref):
    """Fused FittingNet MLP for one row tile.

    x_ref : (tm, D)  f32      streamed per grid step
    w0/w1 : (D, D)   bf16     MXU operands (pre-transposed to (in, out))
    b0/b1 : (1, D)   f32      r0/r1: (1, D) f32
    w2    : (1, D)   f32      final projection row (VPU + XLU, no MXU pass)
    b2    : (1,)     f32      scalar bias in SMEM
    o_ref : (1, 1, tm) f32    lane-dense output block
    """
    x = x_ref[...]                                               # (tm, D) f32

    # Layer 0: Linear + tanh, resnet_dt residual (equal dims).
    h = jnp.dot(x.astype(jnp.bfloat16), w0_ref[...],
                preferred_element_type=jnp.float32) + b0_ref[...]
    h = jnp.tanh(h)                                              # EUP, f32
    x = h * r0_ref[...] + x                                      # VPU, f32

    # Layer 1: Linear + tanh, resnet_dt residual (equal dims).
    h = jnp.dot(x.astype(jnp.bfloat16), w1_ref[...],
                preferred_element_type=jnp.float32) + b1_ref[...]
    h = jnp.tanh(h)
    x = h * r1_ref[...] + x

    # Final Linear(D -> 1): a (tm,64)@(64,1) matmul wastes an MXU pass, so do
    # it as a VPU multiply + XLU lane-reduce; the result is emitted lane-dense
    # so the output store is not a column of masked vst.msk.
    o = jnp.sum(x * w2_ref[...], axis=-1)                        # (tm,) f32
    o = o + b2_ref[0]                                            # scalar bias (SMEM)
    o_ref[...] = o.reshape(1, 1, -1).astype(o_ref.dtype)


@functools.partial(jax.jit, static_argnames=("tm",))
def fitting_net_forward(x, params, *, tm=1024):
    """x: (N, D) float32. params: dict (see init_fitting_net_params). Returns (N, 1) f32."""
    N, D = x.shape

    # Row-tile selection:
    #  * multiples of 128 keep the lane-dense output store unmasked and the
    #    x tile 8-sublane aligned,
    #  * big tiles amortize the ~0.35us/grid-step overhead,
    #  * keep >= 2 grid steps when N allows so both v7x TensorCores get work.
    tm_eff = min(tm, _round_up(N, 128))
    if N > 2 * 128 and pl.cdiv(N, tm_eff) < 2:
        tm_eff = _round_up(pl.cdiv(N, 2), 128)
    num_tiles = pl.cdiv(N, tm_eff)
    n_pad = num_tiles * tm_eff

    if n_pad != N:
        # Zero-pad the ragged tail; padded rows produce finite garbage, sliced off below.
        x = jnp.pad(x, ((0, n_pad - N), (0, 0)))

    # MXU operands in bf16 (accumulation stays f32 inside the kernel). x itself
    # stays f32 in HBM: pre-casting it in the wrapper would just add an extra
    # HBM round-trip as a separate XLA op.
    w0 = params["w0"].astype(jnp.bfloat16)
    w1 = params["w1"].astype(jnp.bfloat16)
    b0, r0 = params["b0"], params["r0"]
    b1, r1 = params["b1"], params["r1"]
    w2 = params["w2"].reshape(1, D)          # (1, D) row for the VPU projection
    b2 = params["b2"].reshape(1)             # scalar bias, lives in SMEM

    # Constant index_maps -> these small blocks are DMA'd once and stay resident.
    full = lambda a: pl.BlockSpec(a.shape, lambda i: (0,) * a.ndim)

    cost = pl.CostEstimate(
        flops=4 * N * D * D + 2 * N * D,            # two matmuls + final projection
        transcendentals=2 * N * D,                  # two tanh layers
        bytes_accessed=N * D * 4 + N * 4 + 2 * D * D * 2 + 6 * D * 4 + 4,
    )

    out = pl.pallas_call(
        fitting_kernel,
        out_shape=jax.ShapeDtypeStruct((num_tiles, 1, tm_eff), jnp.float32),
        grid_spec=pltpu.PrefetchScalarGridSpec(
            num_scalar_prefetch=0,
            grid=(num_tiles,),
            in_specs=[
                pl.BlockSpec((tm_eff, D), lambda i: (i, 0)),   # streamed x tile
                full(w0), full(b0), full(r0),
                full(w1), full(b1), full(r1),
                full(w2),
                pl.BlockSpec(memory_space=pltpu.MemorySpace.SMEM),   # b2 scalar
            ],
            out_specs=pl.BlockSpec((1, 1, tm_eff), lambda i: (i, 0, 0)),
        ),
        compiler_params=pltpu.CompilerParams(
            dimension_semantics=("parallel",)),
        cost_estimate=cost,
    )(x, w0, b0, r0, w1, b1, r1, w2, b2)

    # (num_tiles, 1, tm) lane-dense slab -> (N, 1), always f32.
    return out.reshape(n_pad, 1)[:N]


def init_fitting_net_params(key, network_size, energy_shift):
    """Deterministic init mirroring FittingNet.__init__ (std = 1/sqrt(in+out), etc.)."""
    sizes = list(network_size) + [1]
    keys = jax.random.split(key, 8)

    def lin(kw, kb, fan_in, fan_out, bias_mean):
        w = jax.random.normal(kw, (fan_out, fan_in), jnp.float32) / jnp.sqrt(
            jnp.float32(fan_in + fan_out))
        b = bias_mean + jax.random.normal(kb, (fan_out,), jnp.float32)
        return w, b

    w0, b0 = lin(keys[0], keys[1], sizes[0], sizes[1], 0.0)
    w1, b1 = lin(keys[2], keys[3], sizes[1], sizes[2], 0.0)
    w2, b2 = lin(keys[4], keys[5], sizes[2], sizes[3], energy_shift)
    r0 = 0.1 + 0.001 * jax.random.normal(keys[6], (1, sizes[1]), jnp.float32)
    r1 = 0.1 + 0.001 * jax.random.normal(keys[7], (1, sizes[2]), jnp.float32)
    return dict(
        w0=w0.T, b0=b0.reshape(1, -1), r0=r0,     # torch (out,in) -> (in,out); bias (1,out)
        w1=w1.T, b1=b1.reshape(1, -1), r1=r1,
        w2=w2,  b2=b2)                            # final: weight row (1,in), bias (1,)


def fitting_net_reference(x, params):
    """Pure-JAX f32 reference replicating the PyTorch forward."""
    h = jnp.tanh(x @ params["w0"] + params["b0"])
    x = h * params["r0"] + x
    h = jnp.tanh(x @ params["w1"] + params["b1"])
    x = h * params["r1"] + x
    return x @ params["w2"].T + params["b2"]


if __name__ == "__main__":
    key = jax.random.PRNGKey(0)
    k_param, k_x = jax.random.split(key)

    network_size = [64, 64, 64]   # D_in=64, two hidden layers of 64, final out=1
    energy_shift = 3.0
    N, D = 300, network_size[0]   # N not a multiple of the tile -> exercises padding path

    params = init_fitting_net_params(k_param, network_size, energy_shift)
    x = jax.random.normal(k_x, (N, D), jnp.float32)

    out = fitting_net_forward(x, params)          # default tm=1024 (auto-shrunk for small N)
    out = jax.block_until_ready(out)

    ref = fitting_net_reference(x, params)
    assert out.shape == (N, 1)
    assert out.dtype == jnp.float32
    # bf16 MXU operands vs f32 reference: expected discrepancy ~1e-3 absolute.
    assert jnp.allclose(out, ref, atol=1e-2, rtol=1e-2)

    print("KERNEL_OK")
</pallas_src>

<mosaic_0001>
module attributes {stable_mosaic.version = 11 : i64} {
  func.func @fitting_kernel(%arg0: i32, %arg1: memref<256x64xf32, #tpu.memory_space<vmem>>, %arg2: memref<64x64xbf16, #tpu.memory_space<vmem>>, %arg3: memref<1x64xf32, #tpu.memory_space<vmem>>, %arg4: memref<1x64xf32, #tpu.memory_space<vmem>>, %arg5: memref<64x64xbf16, #tpu.memory_space<vmem>>, %arg6: memref<1x64xf32, #tpu.memory_space<vmem>>, %arg7: memref<1x64xf32, #tpu.memory_space<vmem>>, %arg8: memref<1x64xf32, #tpu.memory_space<vmem>>, %arg9: memref<1xf32, #tpu.memory_space<smem>>, %arg10: memref<1x1x256xf32, #tpu.memory_space<vmem>>) attributes {dimension_semantics = [#tpu.dimension_semantics<parallel>], iteration_bounds = array<i64: 2>, scalar_prefetch = 0 : i64, scratch_operands = 0 : i64, tpu.core_type = #tpu.core_type<tc>, window_params = [{transform_indices = @transform_0, window_bounds = array<i64: 256, 64>}, {pipeline_mode = #tpu.pipeline_mode<synchronous>, transform_indices = @transform_1, window_bounds = array<i64: 64, 64>}, {pipeline_mode = #tpu.pipeline_mode<synchronous>, transform_indices = @transform_2, window_bounds = array<i64: 1, 64>}, {pipeline_mode = #tpu.pipeline_mode<synchronous>, transform_indices = @transform_3, window_bounds = array<i64: 1, 64>}, {pipeline_mode = #tpu.pipeline_mode<synchronous>, transform_indices = @transform_4, window_bounds = array<i64: 64, 64>}, {pipeline_mode = #tpu.pipeline_mode<synchronous>, transform_indices = @transform_5, window_bounds = array<i64: 1, 64>}, {pipeline_mode = #tpu.pipeline_mode<synchronous>, transform_indices = @transform_6, window_bounds = array<i64: 1, 64>}, {pipeline_mode = #tpu.pipeline_mode<synchronous>, transform_indices = @transform_7, window_bounds = array<i64: 1, 64>}, {transform_indices = @transform_8, window_bounds = array<i64: 1>}, {transform_indices = @transform_9, window_bounds = array<i64: 1, 1, 256>}]} {
    %c0 = arith.constant 0 : index
    %c0_0 = arith.constant 0 : index
    %0 = vector.load %arg1[%c0, %c0_0] : memref<256x64xf32, #tpu.memory_space<vmem>>, vector<256x64xf32>
    %1 = arith.truncf %0 : vector<256x64xf32> to vector<256x64xbf16>
    %c0_1 = arith.constant 0 : index
    %c0_2 = arith.constant 0 : index
    %2 = vector.load %arg2[%c0_1, %c0_2] : memref<64x64xbf16, #tpu.memory_space<vmem>>, vector<64x64xbf16>
    %cst = arith.constant dense<0.000000e+00> : vector<256x64xf32>
    %3 = tpu.matmul %1, %2, %cst {dimension_numbers = #tpu.dot_dimension_numbers<[1], [0], [0], [1], [0, 0, 1, 1], [], []>} : vector<256x64xbf16>, vector<64x64xbf16>, vector<256x64xf32> -> vector<256x64xf32>
    %c0_3 = arith.constant 0 : index
    %c0_4 = arith.constant 0 : index
    %4 = vector.load %arg3[%c0_3, %c0_4] : memref<1x64xf32, #tpu.memory_space<vmem>>, vector<1x64xf32>
    %5 = vector.broadcast %4 : vector<1x64xf32> to vector<256x64xf32>
    %6 = arith.addf %3, %5 : vector<256x64xf32>
    %7 = math.tanh %6 : vector<256x64xf32>
    %c0_5 = arith.constant 0 : index
    %c0_6 = arith.constant 0 : index
    %8 = vector.load %arg4[%c0_5, %c0_6] : memref<1x64xf32, #tpu.memory_space<vmem>>, vector<1x64xf32>
    %9 = vector.broadcast %8 : vector<1x64xf32> to vector<256x64xf32>
    %10 = arith.mulf %7, %9 : vector<256x64xf32>
    %11 = arith.addf %10, %0 : vector<256x64xf32>
    %12 = arith.truncf %11 : vector<256x64xf32> to vector<256x64xbf16>
    %c0_7 = arith.constant 0 : index
    %c0_8 = arith.constant 0 : index
    %13 = vector.load %arg5[%c0_7, %c0_8] : memref<64x64xbf16, #tpu.memory_space<vmem>>, vector<64x64xbf16>
    %cst_9 = arith.constant dense<0.000000e+00> : vector<256x64xf32>
    %14 = tpu.matmul %12, %13, %cst_9 {dimension_numbers = #tpu.dot_dimension_numbers<[1], [0], [0], [1], [0, 0, 1, 1], [], []>} : vector<256x64xbf16>, vector<64x64xbf16>, vector<256x64xf32> -> vector<256x64xf32>
    %c0_10 = arith.constant 0 : index
    %c0_11 = arith.constant 0 : index
    %15 = vector.load %arg6[%c0_10, %c0_11] : memref<1x64xf32, #tpu.memory_space<vmem>>, vector<1x64xf32>
    %16 = vector.broadcast %15 : vector<1x64xf32> to vector<256x64xf32>
    %17 = arith.addf %14, %16 : vector<256x64xf32>
    %18 = math.tanh %17 : vector<256x64xf32>
    %c0_12 = arith.constant 0 : index
    %c0_13 = arith.constant 0 : index
    %19 = vector.load %arg7[%c0_12, %c0_13] : memref<1x64xf32, #tpu.memory_space<vmem>>, vector<1x64xf32>
    %20 = vector.broadcast %19 : vector<1x64xf32> to vector<256x64xf32>
    %21 = arith.mulf %18, %20 : vector<256x64xf32>
    %22 = arith.addf %21, %11 : vector<256x64xf32>
    %c0_14 = arith.constant 0 : index
    %c0_15 = arith.constant 0 : index
    %23 = vector.load %arg8[%c0_14, %c0_15] : memref<1x64xf32, #tpu.memory_space<vmem>>, vector<1x64xf32>
    %24 = vector.broadcast %23 : vector<1x64xf32> to vector<256x64xf32>
    %25 = arith.mulf %22, %24 : vector<256x64xf32>
    %cst_16 = arith.constant dense<0.000000e+00> : vector<256xf32>
    %26 = vector.multi_reduction <add>, %25, %cst_16 [1] : vector<256x64xf32> to vector<256xf32>
    %c0_17 = arith.constant 0 : index
    %27 = memref.load %arg9[%c0_17] : memref<1xf32, #tpu.memory_space<smem>>
    %28 = vector.broadcast %27 : f32 to vector<256xf32>
    %29 = arith.addf %26, %28 : vector<256xf32>
    %30 = vector.shape_cast %29 : vector<256xf32> to vector<1x1x256xf32>
    %c0_18 = arith.constant 0 : index
    %c0_19 = arith.constant 0 : index
    %c0_20 = arith.constant 0 : index
    %31 = vector.load %arg10[%c0_18, %c0_19, %c0_20] : memref<1x1x256xf32, #tpu.memory_space<vmem>>, vector<1x1x256xf32>
    tpu.vector_store %arg10[%c0_18, %c0_19, %c0_20], %30 {strides = array<i32>} : memref<1x1x256xf32, #tpu.memory_space<vmem>>, vector<1x1x256xf32>,
    return
  }
  func.func @transform_0(%arg0: i32) -> (i32, i32) {
    %c0_i32 = arith.constant 0 : i32
    %c0_i32_0 = arith.constant 0 : i32
    return %arg0, %c0_i32 : i32, i32
  }
  func.func @transform_1(%arg0: i32) -> (i32, i32) {
    %c0_i32 = arith.constant 0 : i32
    %c0_i32_0 = arith.constant 0 : i32
    %c0_i32_1 = arith.constant 0 : i32
    return %c0_i32, %c0_i32_0 : i32, i32
  }
  func.func @transform_2(%arg0: i32) -> (i32, i32) {
    %c0_i32 = arith.constant 0 : i32
    %c0_i32_0 = arith.constant 0 : i32
    %c0_i32_1 = arith.constant 0 : i32
    return %c0_i32, %c0_i32_0 : i32, i32
  }
  func.func @transform_3(%arg0: i32) -> (i32, i32) {
    %c0_i32 = arith.constant 0 : i32
    %c0_i32_0 = arith.constant 0 : i32
    %c0_i32_1 = arith.constant 0 : i32
    return %c0_i32, %c0_i32_0 : i32, i32
  }
  func.func @transform_4(%arg0: i32) -> (i32, i32) {
    %c0_i32 = arith.constant 0 : i32
    %c0_i32_0 = arith.constant 0 : i32
    %c0_i32_1 = arith.constant 0 : i32
    return %c0_i32, %c0_i32_0 : i32, i32
  }
  func.func @transform_5(%arg0: i32) -> (i32, i32) {
    %c0_i32 = arith.constant 0 : i32
    %c0_i32_0 = arith.constant 0 : i32
    %c0_i32_1 = arith.constant 0 : i32
    return %c0_i32, %c0_i32_0 : i32, i32
  }
  func.func @transform_6(%arg0: i32) -> (i32, i32) {
    %c0_i32 = arith.constant 0 : i32
    %c0_i32_0 = arith.constant 0 : i32
    %c0_i32_1 = arith.constant 0 : i32
    return %c0_i32, %c0_i32_0 : i32, i32
  }
  func.func @transform_7(%arg0: i32) -> (i32, i32) {
    %c0_i32 = arith.constant 0 : i32
    %c0_i32_0 = arith.constant 0 : i32
    %c0_i32_1 = arith.constant 0 : i32
    return %c0_i32, %c0_i32_0 : i32, i32
  }
  func.func @transform_8(%arg0: i32) -> i32 {
    %c0_i32 = arith.constant 0 : i32
    %c0_i32_0 = arith.constant 0 : i32
    return %c0_i32 : i32
  }
  func.func @transform_9(%arg0: i32) -> (i32, i32, i32) {
    %c0_i32 = arith.constant 0 : i32
    %c0_i32_0 = arith.constant 0 : i32
    %c0_i32_1 = arith.constant 0 : i32
    return %arg0, %c0_i32, %c0_i32_0 : i32, i32, i32
  }
}

</mosaic_0001>

<llo_original>
// kernel: fitting_net_forward.1
$region0: #{fitting_net_forward.1}
  #allocation0 [shape = 'u32[]', space=smem, size = 0x4, offset = 0x4, fixed_abs, tag = 'smem constant byte address 0x4 - core index']
  #allocation1 [shape = 'u32[144,128]{1,0:T(1,128)}', space=vmem, size = 0x12000, scoped, tag = 'internal scratch']
  #allocation2 [shape = 'f32[1]{0:T(128)S(6)}', space=smem, size = 0x200, scoped, tag = 'scoped memory for fitting_net_forward.1']
  %s0 = inlined_call_operand.vmem [shape: f32[512,64], index: 0, kind: input, shape index: {}]
  %s1 = inlined_call_operand.vmem [shape: bf16[64,64], index: 1, kind: input, shape index: {}]
  %s2 = inlined_call_operand.vmem [shape: f32[1,64], index: 2, kind: input, shape index: {}]
  %s3 = inlined_call_operand.vmem [shape: f32[1,64], index: 3, kind: input, shape index: {}]
  %s4 = inlined_call_operand.vmem [shape: bf16[64,64], index: 4, kind: input, shape index: {}]
  %s5 = inlined_call_operand.vmem [shape: f32[1,64], index: 5, kind: input, shape index: {}]
  %s6 = inlined_call_operand.vmem [shape: f32[1,64], index: 6, kind: input, shape index: {}]
  %s7 = inlined_call_operand.vmem [shape: f32[1,64], index: 7, kind: input, shape index: {}]
  %s8 = inlined_call_operand.<no memory space> [shape: f32[1], index: 8, kind: input, shape index: {}]
  %s9 = inlined_call_operand.vmem [shape: f32[2,1,256], index: 9, kind: output, shape index: {}]
  %s10 = sld [smem:[#allocation0]]
  $region69: #{fitting_net_forward.1} parent=0
    _
  %s12 = ssub.s32 1, %s10
  %s13 = scalar_select 0, %s12, %s10
  %14 = sst [smem:[#allocation2]] %s8
  loop: start=0, step=1, limit=4
  $region2: #{fitting_net_forward.1} parent=0 // loop_pre_header
    _
  $region3: #{fitting_net_forward.1} parent=0 // loop_header
    %s16 = sphi 0, %s20
    %p17 = scmp.ge.s32.totalorder %s16, 4
    %s26 = sphi 0, %s28
    %s29 = sphi 0, %s26
    %s30 = sphi 0, %s29
    %s46 = sphi 0, %s30
    %s50 = sphi 0, %s50
    %s52 = sphi 0, %s50
    %s53 = sphi 0, %s52
    %s67 = sphi 0, %s53
    %s71 = sphi 0, %s71
    %s73 = sphi 0, %s71
    %s74 = sphi 0, %s73
    %s88 = sphi 0, %s74
    %s92 = sphi 0, %s92
    %s94 = sphi 0, %s92
    %s95 = sphi 0, %s94
    %s109 = sphi 0, %s95
    %s113 = sphi 0, %s113
    %s115 = sphi 0, %s113
    %s116 = sphi 0, %s115
    %s130 = sphi 0, %s116
    %s134 = sphi 0, %s134
    %s136 = sphi 0, %s134
    %s137 = sphi 0, %s136
    %s151 = sphi 0, %s137
    %s155 = sphi 0, %s155
    %s157 = sphi 0, %s155
    %s158 = sphi 0, %s157
    %s172 = sphi 0, %s158
    %s176 = sphi 0, %s176
    %s178 = sphi 0, %s176
    %s179 = sphi 0, %s178
    %s193 = sphi 0, %s179
    %s197 = sphi 0, %s197
    %s199 = sphi 0, %s197
    %s200 = sphi 0, %s199
    %s214 = sphi 0, %s200
    %s220 = sphi 0, %s222
    %s223 = sphi 0, %s220
    %s224 = sphi 0, %s223
    %s240 = sphi 0, %s224
  $region4: #{fitting_net_forward.1} parent=0 // loop_header_branch
    %19 = sbr.rel (%p17) target = $region8
  $region5: #{fitting_net_forward.1} parent=0 // loop_body
    %s21 = ssub.s32 %s16, 1
    %s22 = ssub.s32 %s16, 2
    %s23 = sadd.s32 %s16, 1
    %s24 = ssub.s32 %s16, %s23
    %p25 = scmp.eq.s32.totalorder %s24, 0
    %s27 = sadd.s32 %s26, 1
    %s28 = scalar_select %p25, %s26, %s27
    %p31 = pneg %p25
    %p32 = scmp.eq.s32.totalorder %s16, 1
    %p33 = por %p31, %p32
    %p34 = scmp.ne.s32.totalorder %s26, %s29
    %p35 = scmp.eq.s32.totalorder %s16, 0
    %p36 = por %p34, %p35
    %p37 = scmp.ne.s32.totalorder %s26, %s29
    %p38 = scmp.eq.s32.totalorder %s21, 1
    %p39 = por %p37, %p38
    %p40 = scmp.ne.s32.totalorder %s29, %s30
    %p41 = scmp.eq.s32.totalorder %s21, 0
    %p42 = por %p40, %p41
    %p43 = scmp.ne.s32.totalorder %s29, %s30
    %p44 = scmp.eq.s32.totalorder %s22, 1
    %p45 = por %p43, %p44
    %p47 = scmp.ne.s32.totalorder %s30, %s46
    %p48 = scmp.eq.s32.totalorder %s22, 0
    %p49 = por %p47, %p48
    %s51 = sadd.s32 %s50, 1
    %p54 = scmp.eq.s32.totalorder %s16, 1
    %p55 = scmp.ne.s32.totalorder %s50, %s52
    %p56 = scmp.eq.s32.totalorder %s16, 0
    %p57 = por %p55, %p56
    %p58 = scmp.ne.s32.totalorder %s50, %s52
    %p59 = scmp.eq.s32.totalorder %s21, 1
    %p60 = por %p58, %p59
    %p61 = scmp.ne.s32.totalorder %s52, %s53
    %p62 = scmp.eq.s32.totalorder %s21, 0
    %p63 = por %p61, %p62
    %p64 = scmp.ne.s32.totalorder %s52, %s53
    %p65 = scmp.eq.s32.totalorder %s22, 1
    %p66 = por %p64, %p65
    %p68 = scmp.ne.s32.totalorder %s53, %s67
    %p69 = scmp.eq.s32.totalorder %s22, 0
    %p70 = por %p68, %p69
    %s72 = sadd.s32 %s71, 1
    %p75 = scmp.eq.s32.totalorder %s16, 1
    %p76 = scmp.ne.s32.totalorder %s71, %s73
    %p77 = scmp.eq.s32.totalorder %s16, 0
    %p78 = por %p76, %p77
    %p79 = scmp.ne.s32.totalorder %s71, %s73
    %p80 = scmp.eq.s32.totalorder %s21, 1
    %p81 = por %p79, %p80
    %p82 = scmp.ne.s32.totalorder %s73, %s74
    %p83 = scmp.eq.s32.totalorder %s21, 0
    %p84 = por %p82, %p83
    %p85 = scmp.ne.s32.totalorder %s73, %s74
    %p86 = scmp.eq.s32.totalorder %s22, 1
    %p87 = por %p85, %p86
    %p89 = scmp.ne.s32.totalorder %s74, %s88
    %p90 = scmp.eq.s32.totalorder %s22, 0
    %p91 = por %p89, %p90
    %s93 = sadd.s32 %s92, 1
    %p96 = scmp.eq.s32.totalorder %s16, 1
    %p97 = scmp.ne.s32.totalorder %s92, %s94
    %p98 = scmp.eq.s32.totalorder %s16, 0
    %p99 = por %p97, %p98
    %p100 = scmp.ne.s32.totalorder %s92, %s94
    %p101 = scmp.eq.s32.totalorder %s21, 1
    %p102 = por %p100, %p101
    %p103 = scmp.ne.s32.totalorder %s94, %s95
    %p104 = scmp.eq.s32.totalorder %s21, 0
    %p105 = por %p103, %p104
    %p106 = scmp.ne.s32.totalorder %s94, %s95
    %p107 = scmp.eq.s32.totalorder %s22, 1
    %p108 = por %p106, %p107
    %p110 = scmp.ne.s32.totalorder %s95, %s109
    %p111 = scmp.eq.s32.totalorder %s22, 0
    %p112 = por %p110, %p111
    %s114 = sadd.s32 %s113, 1
    %p117 = scmp.eq.s32.totalorder %s16, 1
    %p118 = scmp.ne.s32.totalorder %s113, %s115
    %p119 = scmp.eq.s32.totalorder %s16, 0
    %p120 = por %p118, %p119
    %p121 = scmp.ne.s32.totalorder %s113, %s115
    %p122 = scmp.eq.s32.totalorder %s21, 1
    %p123 = por %p121, %p122
    %p124 = scmp.ne.s32.totalorder %s115, %s116
    %p125 = scmp.eq.s32.totalorder %s21, 0
    %p126 = por %p124, %p125
    %p127 = scmp.ne.s32.totalorder %s115, %s116
    %p128 = scmp.eq.s32.totalorder %s22, 1
    %p129 = por %p127, %p128
    %p131 = scmp.ne.s32.totalorder %s116, %s130
    %p132 = scmp.eq.s32.totalorder %s22, 0
    %p133 = por %p131, %p132
    %s135 = sadd.s32 %s134, 1
    %p138 = scmp.eq.s32.totalorder %s16, 1
    %p139 = scmp.ne.s32.totalorder %s134, %s136
    %p140 = scmp.eq.s32.totalorder %s16, 0
    %p141 = por %p139, %p140
    %p142 = scmp.ne.s32.totalorder %s134, %s136
    %p143 = scmp.eq.s32.totalorder %s21, 1
    %p144 = por %p142, %p143
    %p145 = scmp.ne.s32.totalorder %s136, %s137
    %p146 = scmp.eq.s32.totalorder %s21, 0
    %p147 = por %p145, %p146
    %p148 = scmp.ne.s32.totalorder %s136, %s137
    %p149 = scmp.eq.s32.totalorder %s22, 1
    %p150 = por %p148, %p149
    %p152 = scmp.ne.s32.totalorder %s137, %s151
    %p153 = scmp.eq.s32.totalorder %s22, 0
    %p154 = por %p152, %p153
    %s156 = sadd.s32 %s155, 1
    %p159 = scmp.eq.s32.totalorder %s16, 1
    %p160 = scmp.ne.s32.totalorder %s155, %s157
    %p161 = scmp.eq.s32.totalorder %s16, 0
    %p162 = por %p160, %p161
    %p163 = scmp.ne.s32.totalorder %s155, %s157
    %p164 = scmp.eq.s32.totalorder %s21, 1
    %p165 = por %p163, %p164
    %p166 = scmp.ne.s32.totalorder %s157, %s158
    %p167 = scmp.eq.s32.totalorder %s21, 0
    %p168 = por %p166, %p167
    %p169 = scmp.ne.s32.totalorder %s157, %s158
    %p170 = scmp.eq.s32.totalorder %s22, 1
    %p171 = por %p169, %p170
    %p173 = scmp.ne.s32.totalorder %s158, %s172
    %p174 = scmp.eq.s32.totalorder %s22, 0
    %p175 = por %p173, %p174
    %s177 = sadd.s32 %s176, 1
    %p180 = scmp.eq.s32.totalorder %s16, 1
    %p181 = scmp.ne.s32.totalorder %s176, %s178
    %p182 = scmp.eq.s32.totalorder %s16, 0
    %p183 = por %p181, %p182
    %p184 = scmp.ne.s32.totalorder %s176, %s178
    %p185 = scmp.eq.s32.totalorder %s21, 1
    %p186 = por %p184, %p185
    %p187 = scmp.ne.s32.totalorder %s178, %s179
    %p188 = scmp.eq.s32.totalorder %s21, 0
    %p189 = por %p187, %p188
    %p190 = scmp.ne.s32.totalorder %s178, %s179
    %p191 = scmp.eq.s32.totalorder %s22, 1
    %p192 = por %p190, %p191
    %p194 = scmp.ne.s32.totalorder %s179, %s193
    %p195 = scmp.eq.s32.totalorder %s22, 0
    %p196 = por %p194, %p195
    %s198 = sadd.s32 %s197, 1
    %p201 = scmp.eq.s32.totalorder %s16, 1
    %p202 = scmp.ne.s32.totalorder %s197, %s199
    %p203 = scmp.eq.s32.totalorder %s16, 0
    %p204 = por %p202, %p203
    %p205 = scmp.ne.s32.totalorder %s197, %s199
    %p206 = scmp.eq.s32.totalorder %s21, 1
    %p207 = por %p205, %p206
    %p208 = scmp.ne.s32.totalorder %s199, %s200
    %p209 = scmp.eq.s32.totalorder %s21, 0
    %p210 = por %p208, %p209
    %p211 = scmp.ne.s32.totalorder %s199, %s200
    %p212 = scmp.eq.s32.totalorder %s22, 1
    %p213 = por %p211, %p212
    %p215 = scmp.ne.s32.totalorder %s200, %s214
    %p216 = scmp.eq.s32.totalorder %s22, 0
    %p217 = por %p215, %p216
    %s218 = ssub.s32 %s16, %s23
    %p219 = scmp.eq.s32.totalorder %s218, 0
    %s221 = sadd.s32 %s220, 1
    %s222 = scalar_select %p219, %s220, %s221
    %p225 = pneg %p219
    %p226 = scmp.eq.s32.totalorder %s16, 1
    %p227 = por %p225, %p226
    %p228 = scmp.ne.s32.totalorder %s220, %s223
    %p229 = scmp.eq.s32.totalorder %s16, 0
    %p230 = por %p228, %p229
    %p231 = scmp.ne.s32.totalorder %s220, %s223
    %p232 = scmp.eq.s32.totalorder %s21, 1
    %p233 = por %p231, %p232
    %p234 = scmp.ne.s32.totalorder %s223, %s224
    %p235 = scmp.eq.s32.totalorder %s21, 0
    %p236 = por %p234, %p235
    %p237 = scmp.ne.s32.totalorder %s223, %s224
    %p238 = scmp.eq.s32.totalorder %s22, 1
    %p239 = por %p237, %p238
    %p241 = scmp.ne.s32.totalorder %s224, %s240
    %p242 = scmp.eq.s32.totalorder %s22, 0
    %p243 = por %p241, %p242
    %p244 = scmp.le.s32.totalorder 1, %s16
    %p245 = scmp.lt.s32.totalorder %s16, 3
    %p246 = pnand %p244, %p245
    %p247 = pneg %p246
    // Predicated region
    $region9: #{fitting_net_forward.1} parent=5 // pred_check
      _
    $region10: #{fitting_net_forward.1} parent=5 // pred_check_branch
      %249 = sbr.rel (%p246) target = $region12
    $region11: #{fitting_net_forward.1} parent=5 // pred_region
      %s250 = ssub.s32 %s16, 1
      // Predicated region
      $region13: #{fitting_net_forward.1} parent=11 // pred_check
        %p251 = pneg %p63
      $region14: #{fitting_net_forward.1} parent=11 // pred_check_branch
        %253 = sbr.rel (%p251) target = $region16
      $region15: #{fitting_net_forward.1} parent=11 // pred_region
        _
      $region16: #{fitting_net_forward.1} parent=11 // pred_fallthru
        _
      // Predicated region
      $region17: #{fitting_net_forward.1} parent=11 // pred_check
        %p254 = pneg %p84
      $region18: #{fitting_net_forward.1} parent=11 // pred_check_branch
        %256 = sbr.rel (%p254) target = $region20
      $region19: #{fitting_net_forward.1} parent=11 // pred_region
        _
      $region20: #{fitting_net_forward.1} parent=11 // pred_fallthru
        _
      // Predicated region
      $region21: #{fitting_net_forward.1} parent=11 // pred_check
        %p257 = pneg %p105
      $region22: #{fitting_net_forward.1} parent=11 // pred_check_branch
        %259 = sbr.rel (%p257) target = $region24
      $region23: #{fitting_net_forward.1} parent=11 // pred_region
        _
      $region24: #{fitting_net_forward.1} parent=11 // pred_fallthru
        _
      // Predicated region
      $region25: #{fitting_net_forward.1} parent=11 // pred_check
        %p260 = pneg %p126
      $region26: #{fitting_net_forward.1} parent=11 // pred_check_branch
        %262 = sbr.rel (%p260) target = $region28
      $region27: #{fitting_net_forward.1} parent=11 // pred_region
        _
      $region28: #{fitting_net_forward.1} parent=11 // pred_fallthru
        _
      // Predicated region
      $region29: #{fitting_net_forward.1} parent=11 // pred_check
        %p263 = pneg %p147
      $region30: #{fitting_net_forward.1} parent=11 // pred_check_branch
        %265 = sbr.rel (%p263) target = $region32
      $region31: #{fitting_net_forward.1} parent=11 // pred_region
        _
      $region32: #{fitting_net_forward.1} parent=11 // pred_fallthru
        _
      // Predicated region
      $region33: #{fitting_net_forward.1} parent=11 // pred_check
        %p266 = pneg %p168
      $region34: #{fitting_net_forward.1} parent=11 // pred_check_branch
        %268 = sbr.rel (%p266) target = $region36
      $region35: #{fitting_net_forward.1} parent=11 // pred_region
        _
      $region36: #{fitting_net_forward.1} parent=11 // pred_fallthru
        _
      // Predicated region
      $region37: #{fitting_net_forward.1} parent=11 // pred_check
        %p269 = pneg %p189
      $region38: #{fitting_net_forward.1} parent=11 // pred_check_branch
        %271 = sbr.rel (%p269) target = $region40
      $region39: #{fitting_net_forward.1} parent=11 // pred_region
        _
      $region40: #{fitting_net_forward.1} parent=11 // pred_fallthru
        _
      // Predicated region
      $region41: #{fitting_net_forward.1} parent=11 // pred_check
        %p272 = pneg %p210
      $region42: #{fitting_net_forward.1} parent=11 // pred_check_branch
        %274 = sbr.rel (%p272) target = $region44
      $region43: #{fitting_net_forward.1} parent=11 // pred_region
        _
      $region44: #{fitting_net_forward.1} parent=11 // pred_fallthru
        _
    $region12: #{fitting_net_forward.1} parent=5 // pred_fallthru
      _
    %p275 = scmp.lt.s32.totalorder %s16, 2
    // Predicated region
    $region45: #{fitting_net_forward.1} parent=5 // pred_check
      %p276 = pneg %p275
    $region46: #{fitting_net_forward.1} parent=5 // pred_check_branch
      %278 = sbr.rel (%p276) target = $region48
    $region47: #{fitting_net_forward.1} parent=5 // pred_region
      // Predicated region
      $region49: #{fitting_net_forward.1} parent=47 // pred_check
        %p279 = pneg %p36
      $region50: #{fitting_net_forward.1} parent=47 // pred_check_branch
        %281 = sbr.rel (%p279) target = $region52
      $region51: #{fitting_net_forward.1} parent=47 // pred_region
        %s282 = smul.u32 32, %s16
        %p283 = scmp.lt.s32.totalorder %s282, 63
        %s284 = scalar_select %p283, %s282, 63
        %s285 = smul.addr %s284, 8
        %s286 = scalar_lea.vmem %s0, %s285
        %s287 = smul.u32 32, %s16
      $region52: #{fitting_net_forward.1} parent=47 // pred_fallthru
        _
    $region48: #{fitting_net_forward.1} parent=5 // pred_fallthru
      _
    %p288 = scmp.le.s32.totalorder 1, %s16
    %p289 = scmp.lt.s32.totalorder %s16, 3
    %p290 = pnand %p288, %p289
    %p291 = pneg %p290
    // Predicated region
    $region53: #{fitting_net_forward.1} parent=5 // pred_check
      _
    $region54: #{fitting_net_forward.1} parent=5 // pred_check_branch
      %293 = sbr.rel (%p290) target = $region56
    $region55: #{fitting_net_forward.1} parent=5 // pred_region
      %s294 = ssub.s32 %s16, 1
      %s295 = smul.u32 32, %s21
      %p296 = scmp.lt.s32.totalorder %s295, 63
      %s297 = scalar_select %p296, %s295, 63
      %s298 = smul.addr %s297, 8
      %s299 = scalar_lea.vmem %s0, %s298
      %p300 = pneg %p42
      %p301 = pneg %p39
      %p302 = pneg %p63
      %p303 = pneg %p60
      %p304 = pneg %p84
      %p305 = pneg %p81
      %p306 = pneg %p105
      %p307 = pneg %p102
      %p308 = pneg %p126
      %p309 = pneg %p123
      %p310 = pneg %p147
      %p311 = pneg %p144
      %p312 = pneg %p168
      %p313 = pneg %p165
      %p314 = pneg %p189
      %p315 = pneg %p186
      %p316 = pneg %p210
      %p317 = pneg %p207
      %p318 = pneg %p236
      %p319 = pneg %p233
      %p320 = scmp.lt.s32.totalorder %s21, 1
      %s321 = scalar_select %p320, %s21, 1
      %s322 = smul.addr %s321, 2
      %s323 = scalar_lea.vmem %s9, %s322
      %s324 = smul.u32 32, %s21
      %p325 = scmp.lt.s32.totalorder %s324, 63
      %s326 = scalar_select %p325, %s324, 63
      %s327 = smul.addr %s326, 8
      %s328 = scalar_lea.vmem %s0, %s327
      %s329 = smul.u32 32, %s21
      %p330 = scmp.lt.s32.totalorder %s21, 1
      %s331 = scalar_select %p330, %s21, 1
      %s332 = smul.addr %s331, 2
      %s333 = scalar_lea.vmem %s9, %s332
      %v335 = vld [vmem:[%s328] sm:$0xff]
      %v336 = vld [vmem:[%s328 + $0x8] sm:$0xff]
      %v337 = vld [vmem:[%s328 + $0x10] sm:$0xff]
      %v338 = vld [vmem:[%s328 + $0x18] sm:$0xff]
      %v339 = vld [vmem:[%s328 + $0x20] sm:$0xff]
      %v340 = vld [vmem:[%s328 + $0x28] sm:$0xff]
      %v341 = vld [vmem:[%s328 + $0x30] sm:$0xff]
      %v342 = vld [vmem:[%s328 + $0x38] sm:$0xff]
      %v343 = vld [vmem:[%s328 + $0x40] sm:$0xff]
      %v344 = vld [vmem:[%s328 + $0x48] sm:$0xff]
      %v345 = vld [vmem:[%s328 + $0x50] sm:$0xff]
      %v346 = vld [vmem:[%s328 + $0x58] sm:$0xff]
      %v347 = vld [vmem:[%s328 + $0x60] sm:$0xff]
      %v348 = vld [vmem:[%s328 + $0x68] sm:$0xff]
      %v349 = vld [vmem:[%s328 + $0x70] sm:$0xff]
      %v350 = vld [vmem:[%s328 + $0x78] sm:$0xff]
      %v351 = vld [vmem:[%s328 + $0x80] sm:$0xff]
      %v352 = vld [vmem:[%s328 + $0x88] sm:$0xff]
      %v353 = vld [vmem:[%s328 + $0x90] sm:$0xff]
      %v354 = vld [vmem:[%s328 + $0x98] sm:$0xff]
      %v355 = vld [vmem:[%s328 + $0xa0] sm:$0xff]
      %v356 = vld [vmem:[%s328 + $0xa8] sm:$0xff]
      %v357 = vld [vmem:[%s328 + $0xb0] sm:$0xff]
      %v358 = vld [vmem:[%s328 + $0xb8] sm:$0xff]
      %v359 = vld [vmem:[%s328 + $0xc0] sm:$0xff]
      %v360 = vld [vmem:[%s328 + $0xc8] sm:$0xff]
      %v361 = vld [vmem:[%s328 + $0xd0] sm:$0xff]
      %v362 = vld [vmem:[%s328 + $0xd8] sm:$0xff]
      %v363 = vld [vmem:[%s328 + $0xe0] sm:$0xff]
      %v364 = vld [vmem:[%s328 + $0xe8] sm:$0xff]
      %v365 = vld [vmem:[%s328 + $0xf0] sm:$0xff]
      %v366 = vld [vmem:[%s328 + $0xf8] sm:$0xff]
      %v367 = vpack.c.bf16 %v336, %v335
      %v368 = vpack.c.bf16 %v338, %v337
      %v369 = vpack.c.bf16 %v340, %v339
      %v370 = vpack.c.bf16 %v342, %v341
      %v371 = vpack.c.bf16 %v344, %v343
      %v372 = vpack.c.bf16 %v346, %v345
      %v373 = vpack.c.bf16 %v348, %v347
      %v374 = vpack.c.bf16 %v350, %v349
      %v375 = vpack.c.bf16 %v352, %v351
      %v376 = vpack.c.bf16 %v354, %v353
      %v377 = vpack.c.bf16 %v356, %v355
      %v378 = vpack.c.bf16 %v358, %v357
      %v379 = vpack.c.bf16 %v360, %v359
      %v380 = vpack.c.bf16 %v362, %v361
      %v381 = vpack.c.bf16 %v364, %v363
      %v382 = vpack.c.bf16 %v366, %v365
      %v383 = vld [vmem:[%s1] sm:$0xf]
      %v384 = vld [vmem:[%s1 + $0x4] sm:$0xf]
      %v385 = vld [vmem:[%s1 + $0x8] sm:$0xf]
      %v386 = vld [vmem:[%s1 + $0xc] sm:$0xf]
      %v387 = vld [vmem:[%s1 + $0x10] sm:$0xf]
      %v388 = vld [vmem:[%s1 + $0x14] sm:$0xf]
      %v389 = vld [vmem:[%s1 + $0x18] sm:$0xf]
      %v390 = vld [vmem:[%s1 + $0x1c] sm:$0xf]
      %v391 = vld [vmem:[%s2] sm:$0x1]
      %v393 = vlaneseq
      %v394 = vshrl.u32 %v393, 7
      %v395 = vsub.s32 0, %v394
      %v396 = vrot.slane %v391, %v395
      %v406 = vunpack.c.l.b16 %v383
      %v407 = vunpack.c.l.b16 %v384
      %v408 = vunpack.c.l.b16 %v385
      %v409 = vunpack.c.l.b16 %v386
      %v410 = vunpack.c.l.b16 %v387
      %v411 = vunpack.c.l.b16 %v388
      %v412 = vunpack.c.l.b16 %v389
      %v413 = vunpack.c.l.b16 %v390
      %v414 = vpack.c.b16 %v407, %v406
      %v415 = vpack.c.b16 %v409, %v408
      %v416 = vpack.c.b16 %v411, %v410
      %v417 = vpack.c.b16 %v413, %v412
      %vm422 = vcmask 523264
      %v424 = vsel %vm422, %v367, 0
      %v427 = vsel %vm422, %v368, 0
      %v430 = vsel %vm422, %v369, 0
      %v433 = vsel %vm422, %v370, 0
      %v436 = vsel %vm422, %v371, 0
      %v439 = vsel %vm422, %v372, 0
      %v442 = vsel %vm422, %v373, 0
      %v445 = vsel %vm422, %v374, 0
      %v448 = vsel %vm422, %v375, 0
      %v451 = vsel %vm422, %v376, 0
      %v454 = vsel %vm422, %v377, 0
      %v457 = vsel %vm422, %v378, 0
      %v460 = vsel %vm422, %v379, 0
      %v463 = vsel %vm422, %v380, 0
      %v466 = vsel %vm422, %v381, 0
      %v469 = vsel %vm422, %v382, 0
      %471 = vmatprep.subr.bf16.mxu0 0
      %472 = vmatpush1.bf16.msra.mxu0 %v414
      %473 = vmatprep.subr.bf16.mxu0 0
      %474 = vmatpush1.bf16.msra.mxu0 %v415
      %475 = vmatprep.subr.bf16.mxu0 0
      %476 = vmatpush1.bf16.msra.mxu0 %v416
      %477 = vmatprep.subr.bf16.mxu0 0
      %478 = vmatpush1.bf16.msra.mxu0 %v417
      %479 = vmatprep.subr.bf16.mxu0 0
      %480 = vmatpush1.bf16.msra.mxu0 0
      %481 = vmatprep.subr.bf16.mxu0 0
      %482 = vmatpush1.bf16.msra.mxu0 0
      %483 = vmatprep.subr.bf16.mxu0 0
      %484 = vmatpush1.bf16.msra.mxu0 0
      %485 = vmatprep.subr.bf16.mxu0 0
      %486 = vmatpush1.bf16.msra.mxu0 0
      %487 = vmatprep.subr.bf16.mxu0 0
      %488 = vmatpush1.bf16.msra.mxu0 0
      %489 = vmatprep.subr.bf16.mxu0 0
      %490 = vmatpush1.bf16.msra.mxu0 0
      %491 = vmatprep.subr.bf16.mxu0 0
      %492 = vmatpush1.bf16.msra.mxu0 0
      %493 = vmatprep.subr.bf16.mxu0 0
      %494 = vmatpush1.bf16.msra.mxu0 0
      %495 = vmatprep.subr.bf16.mxu0 0
      %496 = vmatpush1.bf16.msra.mxu0 0
      %497 = vmatprep.subr.bf16.mxu0 0
      %498 = vmatpush1.bf16.msra.mxu0 0
      %499 = vmatprep.subr.bf16.mxu0 0
      %500 = vmatpush1.bf16.msra.mxu0 0
      %501 = vmatprep.subr.bf16.mxu0 0
      %502 = vmatpush1.bf16.msra.mxu0 0
      %503 = vmatprep.mubr.bf16.mxu0 0
      %504 = vmatmul.mubr.bf16.gmra.mrb[0].mxu0 %v424
      %v505 = vpop.f32.mrb[0].mxu0
      %v506 = vadd.f32 %v396, %v505
      %v507 = vpop.f32.mrb[0].mxu0
      %v508 = vpop.f32.mrb[0].mxu0
      %v509 = vadd.f32 %v396, %v508
      %v510 = vpop.f32.mrb[0].mxu0
      %511 = vmatprep.mubr.bf16.mxu0 0
      %512 = vmatmul.mubr.bf16.gmra.mrb[0].mxu0 %v427
      %v513 = vpop.f32.mrb[0].mxu0
      %v514 = vadd.f32 %v396, %v513
      %v515 = vpop.f32.mrb[0].mxu0
      %v516 = vpop.f32.mrb[0].mxu0
      %v517 = vadd.f32 %v396, %v516
      %v518 = vpop.f32.mrb[0].mxu0
      %519 = vmatprep.mubr.bf16.mxu0 0
      %520 = vmatmul.mubr.bf16.gmra.mrb[0].mxu0 %v430
      %v521 = vpop.f32.mrb[0].mxu0
      %v522 = vadd.f32 %v396, %v521
      %v523 = vpop.f32.mrb[0].mxu0
      %v524 = vpop.f32.mrb[0].mxu0
      %v525 = vadd.f32 %v396, %v524
      %v526 = vpop.f32.mrb[0].mxu0
      %527 = vmatprep.mubr.bf16.mxu0 0
      %528 = vmatmul.mubr.bf16.gmra.mrb[0].mxu0 %v433
      %v529 = vpop.f32.mrb[0].mxu0
      %v530 = vadd.f32 %v396, %v529
      %v531 = vpop.f32.mrb[0].mxu0
      %v532 = vpop.f32.mrb[0].mxu0
      %v533 = vadd.f32 %v396, %v532
      %v534 = vpop.f32.mrb[0].mxu0
      %535 = vmatprep.mubr.bf16.mxu0 0
      %536 = vmatmul.mubr.bf16.gmra.mrb[0].mxu0 %v436
      %v537 = vpop.f32.mrb[0].mxu0
      %v538 = vadd.f32 %v396, %v537
      %v539 = vpop.f32.mrb[0].mxu0
      %v540 = vpop.f32.mrb[0].mxu0
      %v541 = vadd.f32 %v396, %v540
      %v542 = vpop.f32.mrb[0].mxu0
      %543 = vmatprep.mubr.bf16.mxu0 0
      %544 = vmatmul.mubr.bf16.gmra.mrb[0].mxu0 %v439
      %v545 = vpop.f32.mrb[0].mxu0
      %v546 = vadd.f32 %v396, %v545
      %v547 = vpop.f32.mrb[0].mxu0
      %v548 = vpop.f32.mrb[0].mxu0
      %v549 = vadd.f32 %v396, %v548
      %v550 = vpop.f32.mrb[0].mxu0
      %551 = vmatprep.mubr.bf16.mxu0 0
      %552 = vmatmul.mubr.bf16.gmra.mrb[0].mxu0 %v442
      %v553 = vpop.f32.mrb[0].mxu0
      %v554 = vadd.f32 %v396, %v553
      %v555 = vpop.f32.mrb[0].mxu0
      %v556 = vpop.f32.mrb[0].mxu0
      %v557 = vadd.f32 %v396, %v556
      %v558 = vpop.f32.mrb[0].mxu0
      %559 = vmatprep.mubr.bf16.mxu0 0
      %560 = vmatmul.mubr.bf16.gmra.mrb[0].mxu0 %v445
      %v561 = vpop.f32.mrb[0].mxu0
      %v562 = vadd.f32 %v396, %v561
      %v563 = vpop.f32.mrb[0].mxu0
      %v564 = vpop.f32.mrb[0].mxu0
      %v565 = vadd.f32 %v396, %v564
      %v566 = vpop.f32.mrb[0].mxu0
      %567 = vmatprep.mubr.bf16.mxu0 0
      %568 = vmatmul.mubr.bf16.gmra.mrb[0].mxu0 %v448
      %v569 = vpop.f32.mrb[0].mxu0
      %v570 = vadd.f32 %v396, %v569
      %v571 = vpop.f32.mrb[0].mxu0
      %v572 = vpop.f32.mrb[0].mxu0
      %v573 = vadd.f32 %v396, %v572
      %v574 = vpop.f32.mrb[0].mxu0
      %575 = vmatprep.mubr.bf16.mxu0 0
      %576 = vmatmul.mubr.bf16.gmra.mrb[0].mxu0 %v451
      %v577 = vpop.f32.mrb[0].mxu0
      %v578 = vadd.f32 %v396, %v577
      %v579 = vpop.f32.mrb[0].mxu0
      %v580 = vpop.f32.mrb[0].mxu0
      %v581 = vadd.f32 %v396, %v580
      %v582 = vpop.f32.mrb[0].mxu0
      %583 = vmatprep.mubr.bf16.mxu0 0
      %584 = vmatmul.mubr.bf16.gmra.mrb[0].mxu0 %v454
      %v585 = vpop.f32.mrb[0].mxu0
      %v586 = vadd.f32 %v396, %v585
      %v587 = vpop.f32.mrb[0].mxu0
      %v588 = vpop.f32.mrb[0].mxu0
      %v589 = vadd.f32 %v396, %v588
      %v590 = vpop.f32.mrb[0].mxu0
      %591 = vmatprep.mubr.bf16.mxu0 0
      %592 = vmatmul.mubr.bf16.gmra.mrb[0].mxu0 %v457
      %v593 = vpop.f32.mrb[0].mxu0
      %v594 = vadd.f32 %v396, %v593
      %v595 = vpop.f32.mrb[0].mxu0
      %v596 = vpop.f32.mrb[0].mxu0
      %v597 = vadd.f32 %v396, %v596
      %v598 = vpop.f32.mrb[0].mxu0
      %599 = vmatprep.mubr.bf16.mxu0 0
      %600 = vmatmul.mubr.bf16.gmra.mrb[0].mxu0 %v460
      %v601 = vpop.f32.mrb[0].mxu0
      %v602 = vadd.f32 %v396, %v601
      %v603 = vpop.f32.mrb[0].mxu0
      %v604 = vpop.f32.mrb[0].mxu0
      %v605 = vadd.f32 %v396, %v604
      %v606 = vpop.f32.mrb[0].mxu0
      %607 = vmatprep.mubr.bf16.mxu0 0
      %608 = vmatmul.mubr.bf16.gmra.mrb[0].mxu0 %v463
      %v609 = vpop.f32.mrb[0].mxu0
      %v610 = vadd.f32 %v396, %v609
      %v611 = vpop.f32.mrb[0].mxu0
      %v612 = vpop.f32.mrb[0].mxu0
      %v613 = vadd.f32 %v396, %v612
      %v614 = vpop.f32.mrb[0].mxu0
      %615 = vmatprep.mubr.bf16.mxu0 0
      %616 = vmatmul.mubr.bf16.gmra.mrb[0].mxu0 %v466
      %v617 = vpop.f32.mrb[0].mxu0
      %v618 = vadd.f32 %v396, %v617
      %v619 = vpop.f32.mrb[0].mxu0
      %v620 = vpop.f32.mrb[0].mxu0
      %v621 = vadd.f32 %v396, %v620
      %v622 = vpop.f32.mrb[0].mxu0
      %623 = vmatprep.mubr.bf16.mxu0 0
      %624 = vmatmul.mubr.bf16.gmra.mrb[0].mxu0 %v469
      %v625 = vpop.f32.mrb[0].mxu0
      %v626 = vadd.f32 %v396, %v625
      %v627 = vpop.f32.mrb[0].mxu0
      %v628 = vpop.f32.mrb[0].mxu0
      %v629 = vadd.f32 %v396, %v628
      %v630 = vpop.f32.mrb[0].mxu0
      %631 = vdwg.mxu0
      %v632 = vtanh.pop %v506
      %v633 = vtanh.pop %v509
      %v634 = vtanh.pop %v514
      %v635 = vtanh.pop %v517
      %v636 = vtanh.pop %v522
      %v637 = vtanh.pop %v525
      %v638 = vtanh.pop %v530
      %v639 = vtanh.pop %v533
      %v640 = vtanh.pop %v538
      %v641 = vtanh.pop %v541
      %v642 = vtanh.pop %v546
      %v643 = vtanh.pop %v549
      %v644 = vtanh.pop %v554
      %v645 = vtanh.pop %v557
      %v646 = vtanh.pop %v562
      %v647 = vtanh.pop %v565
      %v648 = vtanh.pop %v570
      %v649 = vtanh.pop %v573
      %v650 = vtanh.pop %v578
      %v651 = vtanh.pop %v581
      %v652 = vtanh.pop %v586
      %v653 = vtanh.pop %v589
      %v654 = vtanh.pop %v594
      %v655 = vtanh.pop %v597
      %v656 = vtanh.pop %v602
      %v657 = vtanh.pop %v605
      %v658 = vtanh.pop %v610
      %v659 = vtanh.pop %v613
      %v660 = vtanh.pop %v618
      %v661 = vtanh.pop %v621
      %v662 = vtanh.pop %v626
      %v663 = vtanh.pop %v629
      %v664 = vld [vmem:[%s3] sm:$0x1]
      %v666 = vlaneseq
      %v667 = vshrl.u32 %v666, 7
      %v668 = vsub.s32 0, %v667
      %v669 = vrot.slane %v664, %v668
      %v671 = vmul.f32 %v632, %v669
      %v672 = vmul.f32 %v633, %v669
      %v673 = vmul.f32 %v634, %v669
      %v674 = vmul.f32 %v635, %v669
      %v675 = vmul.f32 %v636, %v669
      %v676 = vmul.f32 %v637, %v669
      %v677 = vmul.f32 %v638, %v669
      %v678 = vmul.f32 %v639, %v669
      %v679 = vmul.f32 %v640, %v669
      %v680 = vmul.f32 %v641, %v669
      %v681 = vmul.f32 %v642, %v669
      %v682 = vmul.f32 %v643, %v669
      %v683 = vmul.f32 %v644, %v669
      %v684 = vmul.f32 %v645, %v669
      %v685 = vmul.f32 %v646, %v669
      %v686 = vmul.f32 %v647, %v669
      %v687 = vmul.f32 %v648, %v669
      %v688 = vmul.f32 %v649, %v669
      %v689 = vmul.f32 %v650, %v669
      %v690 = vmul.f32 %v651, %v669
      %v691 = vmul.f32 %v652, %v669
      %v692 = vmul.f32 %v653, %v669
      %v693 = vmul.f32 %v654, %v669
      %v694 = vmul.f32 %v655, %v669
      %v695 = vmul.f32 %v656, %v669
      %v696 = vmul.f32 %v657, %v669
      %v697 = vmul.f32 %v658, %v669
      %v698 = vmul.f32 %v659, %v669
      %v699 = vmul.f32 %v660, %v669
      %v700 = vmul.f32 %v661, %v669
      %v701 = vmul.f32 %v662, %v669
      %v702 = vmul.f32 %v663, %v669
      %v703 = vadd.f32 %v671, %v335
      %v704 = vadd.f32 %v672, %v336
      %v705 = vadd.f32 %v673, %v337
      %v706 = vadd.f32 %v674, %v338
      %v707 = vadd.f32 %v675, %v339
      %v708 = vadd.f32 %v676, %v340
      %v709 = vadd.f32 %v677, %v341
      %v710 = vadd.f32 %v678, %v342
      %v711 = vadd.f32 %v679, %v343
      %v712 = vadd.f32 %v680, %v344
      %v713 = vadd.f32 %v681, %v345
      %v714 = vadd.f32 %v682, %v346
      %v715 = vadd.f32 %v683, %v347
      %v716 = vadd.f32 %v684, %v348
      %v717 = vadd.f32 %v685, %v349
      %v718 = vadd.f32 %v686, %v350
      %v719 = vadd.f32 %v687, %v351
      %v720 = vadd.f32 %v688, %v352
      %v721 = vadd.f32 %v689, %v353
      %v722 = vadd.f32 %v690, %v354
      %v723 = vadd.f32 %v691, %v355
      %v724 = vadd.f32 %v692, %v356
      %v725 = vadd.f32 %v693, %v357
      %v726 = vadd.f32 %v694, %v358
      %v727 = vadd.f32 %v695, %v359
      %v728 = vadd.f32 %v696, %v360
      %v729 = vadd.f32 %v697, %v361
      %v730 = vadd.f32 %v698, %v362
      %v731 = vadd.f32 %v699, %v363
      %v732 = vadd.f32 %v700, %v364
      %v733 = vadd.f32 %v701, %v365
      %v734 = vadd.f32 %v702, %v366
      %v735 = vpack.c.bf16 %v704, %v703
      %v736 = vpack.c.bf16 %v706, %v705
      %v737 = vpack.c.bf16 %v708, %v707
      %v738 = vpack.c.bf16 %v710, %v709
      %v739 = vpack.c.bf16 %v712, %v711
      %v740 = vpack.c.bf16 %v714, %v713
      %v741 = vpack.c.bf16 %v716, %v715
      %v742 = vpack.c.bf16 %v718, %v717
      %v743 = vpack.c.bf16 %v720, %v719
      %v744 = vpack.c.bf16 %v722, %v721
      %v745 = vpack.c.bf16 %v724, %v723
      %v746 = vpack.c.bf16 %v726, %v725
      %v747 = vpack.c.bf16 %v728, %v727
      %v748 = vpack.c.bf16 %v730, %v729
      %v749 = vpack.c.bf16 %v732, %v731
      %v750 = vpack.c.bf16 %v734, %v733
      %v751 = vld [vmem:[%s4] sm:$0xf]
      %v752 = vld [vmem:[%s4 + $0x4] sm:$0xf]
      %v753 = vld [vmem:[%s4 + $0x8] sm:$0xf]
      %v754 = vld [vmem:[%s4 + $0xc] sm:$0xf]
      %v755 = vld [vmem:[%s4 + $0x10] sm:$0xf]
      %v756 = vld [vmem:[%s4 + $0x14] sm:$0xf]
      %v757 = vld [vmem:[%s4 + $0x18] sm:$0xf]
      %v758 = vld [vmem:[%s4 + $0x1c] sm:$0xf]
      %v759 = vld [vmem:[%s5] sm:$0x1]
      %v761 = vlaneseq
      %v762 = vshrl.u32 %v761, 7
      %v763 = vsub.s32 0, %v762
      %v764 = vrot.slane %v759, %v763
      %v774 = vunpack.c.l.b16 %v751
      %v775 = vunpack.c.l.b16 %v752
      %v776 = vunpack.c.l.b16 %v753
      %v777 = vunpack.c.l.b16 %v754
      %v778 = vunpack.c.l.b16 %v755
      %v779 = vunpack.c.l.b16 %v756
      %v780 = vunpack.c.l.b16 %v757
      %v781 = vunpack.c.l.b16 %v758
      %v782 = vpack.c.b16 %v775, %v774
      %v783 = vpack.c.b16 %v777, %v776
      %v784 = vpack.c.b16 %v779, %v778
      %v785 = vpack.c.b16 %v781, %v780
      %v791 = vsel %vm422, %v735, 0
      %v794 = vsel %vm422, %v736, 0
      %v797 = vsel %vm422, %v737, 0
      %v800 = vsel %vm422, %v738, 0
      %v803 = vsel %vm422, %v739, 0
      %v806 = vsel %vm422, %v740, 0
      %v809 = vsel %vm422, %v741, 0
      %v812 = vsel %vm422, %v742, 0
      %v815 = vsel %vm422, %v743, 0
      %v818 = vsel %vm422, %v744, 0
      %v821 = vsel %vm422, %v745, 0
      %v824 = vsel %vm422, %v746, 0
      %v827 = vsel %vm422, %v747, 0
      %v830 = vsel %vm422, %v748, 0
      %v833 = vsel %vm422, %v749, 0
      %v836 = vsel %vm422, %v750, 0
      %838 = vmatprep.subr.bf16.mxu0 0
      %839 = vmatpush1.bf16.msra.mxu0 %v782
      %840 = vmatprep.subr.bf16.mxu0 0
      %841 = vmatpush1.bf16.msra.mxu0 %v783
      %842 = vmatprep.subr.bf16.mxu0 0
      %843 = vmatpush1.bf16.msra.mxu0 %v784
      %844 = vmatprep.subr.bf16.mxu0 0
      %845 = vmatpush1.bf16.msra.mxu0 %v785
      %846 = vmatprep.subr.bf16.mxu0 0
      %847 = vmatpush1.bf16.msra.mxu0 0
      %848 = vmatprep.subr.bf16.mxu0 0
      %849 = vmatpush1.bf16.msra.mxu0 0
      %850 = vmatprep.subr.bf16.mxu0 0
      %851 = vmatpush1.bf16.msra.mxu0 0
      %852 = vmatprep.subr.bf16.mxu0 0
      %853 = vmatpush1.bf16.msra.mxu0 0
      %854 = vmatprep.subr.bf16.mxu0 0
      %855 = vmatpush1.bf16.msra.mxu0 0
      %856 = vmatprep.subr.bf16.mxu0 0
      %857 = vmatpush1.bf16.msra.mxu0 0
      %858 = vmatprep.subr.bf16.mxu0 0
      %859 = vmatpush1.bf16.msra.mxu0 0
      %860 = vmatprep.subr.bf16.mxu0 0
      %861 = vmatpush1.bf16.msra.mxu0 0
      %862 = vmatprep.subr.bf16.mxu0 0
      %863 = vmatpush1.bf16.msra.mxu0 0
      %864 = vmatprep.subr.bf16.mxu0 0
      %865 = vmatpush1.bf16.msra.mxu0 0
      %866 = vmatprep.subr.bf16.mxu0 0
      %867 = vmatpush1.bf16.msra.mxu0 0
      %868 = vmatprep.subr.bf16.mxu0 0
      %869 = vmatpush1.bf16.msra.mxu0 0
      %870 = vmatprep.mubr.bf16.mxu0 0
      %871 = vmatmul.mubr.bf16.gmra.mrb[0].mxu0 %v791
      %v872 = vpop.f32.mrb[0].mxu0
      %v873 = vadd.f32 %v764, %v872
      %v874 = vpop.f32.mrb[0].mxu0
      %v875 = vpop.f32.mrb[0].mxu0
      %v876 = vadd.f32 %v764, %v875
      %v877 = vpop.f32.mrb[0].mxu0
      %878 = vmatprep.mubr.bf16.mxu0 0
      %879 = vmatmul.mubr.bf16.gmra.mrb[0].mxu0 %v794
      %v880 = vpop.f32.mrb[0].mxu0
      %v881 = vadd.f32 %v764, %v880
      %v882 = vpop.f32.mrb[0].mxu0
      %v883 = vpop.f32.mrb[0].mxu0
      %v884 = vadd.f32 %v764, %v883
      %v885 = vpop.f32.mrb[0].mxu0
      %886 = vmatprep.mubr.bf16.mxu0 0
      %887 = vmatmul.mubr.bf16.gmra.mrb[0].mxu0 %v797
      %v888 = vpop.f32.mrb[0].mxu0
      %v889 = vadd.f32 %v764, %v888
      %v890 = vpop.f32.mrb[0].mxu0
      %v891 = vpop.f32.mrb[0].mxu0
      %v892 = vadd.f32 %v764, %v891
      %v893 = vpop.f32.mrb[0].mxu0
      %894 = vmatprep.mubr.bf16.mxu0 0
      %895 = vmatmul.mubr.bf16.gmra.mrb[0].mxu0 %v800
      %v896 = vpop.f32.mrb[0].mxu0
      %v897 = vadd.f32 %v764, %v896
      %v898 = vpop.f32.mrb[0].mxu0
      %v899 = vpop.f32.mrb[0].mxu0
      %v900 = vadd.f32 %v764, %v899
      %v901 = vpop.f32.mrb[0].mxu0
      %902 = vmatprep.mubr.bf16.mxu0 0
      %903 = vmatmul.mubr.bf16.gmra.mrb[0].mxu0 %v803
      %v904 = vpop.f32.mrb[0].mxu0
      %v905 = vadd.f32 %v764, %v904
      %v906 = vpop.f32.mrb[0].mxu0
      %v907 = vpop.f32.mrb[0].mxu0
      %v908 = vadd.f32 %v764, %v907
      %v909 = vpop.f32.mrb[0].mxu0
      %910 = vmatprep.mubr.bf16.mxu0 0
      %911 = vmatmul.mubr.bf16.gmra.mrb[0].mxu0 %v806
      %v912 = vpop.f32.mrb[0].mxu0
      %v913 = vadd.f32 %v764, %v912
      %v914 = vpop.f32.mrb[0].mxu0
      %v915 = vpop.f32.mrb[0].mxu0
      %v916 = vadd.f32 %v764, %v915
      %v917 = vpop.f32.mrb[0].mxu0
      %918 = vmatprep.mubr.bf16.mxu0 0
      %919 = vmatmul.mubr.bf16.gmra.mrb[0].mxu0 %v809
      %v920 = vpop.f32.mrb[0].mxu0
      %v921 = vadd.f32 %v764, %v920
      %v922 = vpop.f32.mrb[0].mxu0
      %v923 = vpop.f32.mrb[0].mxu0
      %v924 = vadd.f32 %v764, %v923
      %v925 = vpop.f32.mrb[0].mxu0
      %926 = vmatprep.mubr.bf16.mxu0 0
      %927 = vmatmul.mubr.bf16.gmra.mrb[0].mxu0 %v812
      %v928 = vpop.f32.mrb[0].mxu0
      %v929 = vadd.f32 %v764, %v928
      %v930 = vpop.f32.mrb[0].mxu0
      %v931 = vpop.f32.mrb[0].mxu0
      %v932 = vadd.f32 %v764, %v931
      %v933 = vpop.f32.mrb[0].mxu0
      %934 = vmatprep.mubr.bf16.mxu0 0
      %935 = vmatmul.mubr.bf16.gmra.mrb[0].mxu0 %v815
      %v936 = vpop.f32.mrb[0].mxu0
      %v937 = vadd.f32 %v764, %v936
      %v938 = vpop.f32.mrb[0].mxu0
      %v939 = vpop.f32.mrb[0].mxu0
      %v940 = vadd.f32 %v764, %v939
      %v941 = vpop.f32.mrb[0].mxu0
      %942 = vmatprep.mubr.bf16.mxu0 0
      %943 = vmatmul.mubr.bf16.gmra.mrb[0].mxu0 %v818
      %v944 = vpop.f32.mrb[0].mxu0
      %v945 = vadd.f32 %v764, %v944
      %v946 = vpop.f32.mrb[0].mxu0
      %v947 = vpop.f32.mrb[0].mxu0
      %v948 = vadd.f32 %v764, %v947
      %v949 = vpop.f32.mrb[0].mxu0
      %950 = vmatprep.mubr.bf16.mxu0 0
      %951 = vmatmul.mubr.bf16.gmra.mrb[0].mxu0 %v821
      %v952 = vpop.f32.mrb[0].mxu0
      %v953 = vadd.f32 %v764, %v952
      %v954 = vpop.f32.mrb[0].mxu0
      %v955 = vpop.f32.mrb[0].mxu0
      %v956 = vadd.f32 %v764, %v955
      %v957 = vpop.f32.mrb[0].mxu0
      %958 = vmatprep.mubr.bf16.mxu0 0
      %959 = vmatmul.mubr.bf16.gmra.mrb[0].mxu0 %v824
      %v960 = vpop.f32.mrb[0].mxu0
      %v961 = vadd.f32 %v764, %v960
      %v962 = vpop.f32.mrb[0].mxu0
      %v963 = vpop.f32.mrb[0].mxu0
      %v964 = vadd.f32 %v764, %v963
      %v965 = vpop.f32.mrb[0].mxu0
      %966 = vmatprep.mubr.bf16.mxu0 0
      %967 = vmatmul.mubr.bf16.gmra.mrb[0].mxu0 %v827
      %v968 = vpop.f32.mrb[0].mxu0
      %v969 = vadd.f32 %v764, %v968
      %v970 = vpop.f32.mrb[0].mxu0
      %v971 = vpop.f32.mrb[0].mxu0
      %v972 = vadd.f32 %v764, %v971
      %v973 = vpop.f32.mrb[0].mxu0
      %974 = vmatprep.mubr.bf16.mxu0 0
      %975 = vmatmul.mubr.bf16.gmra.mrb[0].mxu0 %v830
      %v976 = vpop.f32.mrb[0].mxu0
      %v977 = vadd.f32 %v764, %v976
      %v978 = vpop.f32.mrb[0].mxu0
      %v979 = vpop.f32.mrb[0].mxu0
      %v980 = vadd.f32 %v764, %v979
      %v981 = vpop.f32.mrb[0].mxu0
      %982 = vmatprep.mubr.bf16.mxu0 0
      %983 = vmatmul.mubr.bf16.gmra.mrb[0].mxu0 %v833
      %v984 = vpop.f32.mrb[0].mxu0
      %v985 = vadd.f32 %v764, %v984
      %v986 = vpop.f32.mrb[0].mxu0
      %v987 = vpop.f32.mrb[0].mxu0
      %v988 = vadd.f32 %v764, %v987
      %v989 = vpop.f32.mrb[0].mxu0
      %990 = vmatprep.mubr.bf16.mxu0 0
      %991 = vmatmul.mubr.bf16.gmra.mrb[0].mxu0 %v836
      %v992 = vpop.f32.mrb[0].mxu0
      %v993 = vadd.f32 %v764, %v992
      %v994 = vpop.f32.mrb[0].mxu0
      %v995 = vpop.f32.mrb[0].mxu0
      %v996 = vadd.f32 %v764, %v995
      %v997 = vpop.f32.mrb[0].mxu0
      %998 = vdwg.mxu0
      %v999 = vtanh.pop %v873
      %v1000 = vtanh.pop %v876
      %v1001 = vtanh.pop %v881
      %v1002 = vtanh.pop %v884
      %v1003 = vtanh.pop %v889
      %v1004 = vtanh.pop %v892
      %v1005 = vtanh.pop %v897
      %v1006 = vtanh.pop %v900
      %v1007 = vtanh.pop %v905
      %v1008 = vtanh.pop %v908
      %v1009 = vtanh.pop %v913
      %v1010 = vtanh.pop %v916
      %v1011 = vtanh.pop %v921
      %v1012 = vtanh.pop %v924
      %v1013 = vtanh.pop %v929
      %v1014 = vtanh.pop %v932
      %v1015 = vtanh.pop %v937
      %v1016 = vtanh.pop %v940
      %v1017 = vtanh.pop %v945
      %v1018 = vtanh.pop %v948
      %v1019 = vtanh.pop %v953
      %v1020 = vtanh.pop %v956
      %v1021 = vtanh.pop %v961
      %v1022 = vtanh.pop %v964
      %v1023 = vtanh.pop %v969
      %v1024 = vtanh.pop %v972
      %v1025 = vtanh.pop %v977
      %v1026 = vtanh.pop %v980
      %v1027 = vtanh.pop %v985
      %v1028 = vtanh.pop %v988
      %v1029 = vtanh.pop %v993
      %v1030 = vtanh.pop %v996
      %v1031 = vld [vmem:[%s6] sm:$0x1]
      %v1033 = vlaneseq
      %v1034 = vshrl.u32 %v1033, 7
      %v1035 = vsub.s32 0, %v1034
      %v1036 = vrot.slane %v1031, %v1035
      %v1038 = vmul.f32 %v999, %v1036
      %v1039 = vmul.f32 %v1000, %v1036
      %v1040 = vmul.f32 %v1001, %v1036
      %v1041 = vmul.f32 %v1002, %v1036
      %v1042 = vmul.f32 %v1003, %v1036
      %v1043 = vmul.f32 %v1004, %v1036
      %v1044 = vmul.f32 %v1005, %v1036
      %v1045 = vmul.f32 %v1006, %v1036
      %v1046 = vmul.f32 %v1007, %v1036
      %v1047 = vmul.f32 %v1008, %v1036
      %v1048 = vmul.f32 %v1009, %v1036
      %v1049 = vmul.f32 %v1010, %v1036
      %v1050 = vmul.f32 %v1011, %v1036
      %v1051 = vmul.f32 %v1012, %v1036
      %v1052 = vmul.f32 %v1013, %v1036
      %v1053 = vmul.f32 %v1014, %v1036
      %v1054 = vmul.f32 %v1015, %v1036
      %v1055 = vmul.f32 %v1016, %v1036
      %v1056 = vmul.f32 %v1017, %v1036
      %v1057 = vmul.f32 %v1018, %v1036
      %v1058 = vmul.f32 %v1019, %v1036
      %v1059 = vmul.f32 %v1020, %v1036
      %v1060 = vmul.f32 %v1021, %v1036
      %v1061 = vmul.f32 %v1022, %v1036
      %v1062 = vmul.f32 %v1023, %v1036
      %v1063 = vmul.f32 %v1024, %v1036
      %v1064 = vmul.f32 %v1025, %v1036
      %v1065 = vmul.f32 %v1026, %v1036
      %v1066 = vmul.f32 %v1027, %v1036
      %v1067 = vmul.f32 %v1028, %v1036
      %v1068 = vmul.f32 %v1029, %v1036
      %v1069 = vmul.f32 %v1030, %v1036
      %v1070 = vadd.f32 %v1038, %v703
      %v1071 = vadd.f32 %v1039, %v704
      %v1072 = vadd.f32 %v1040, %v705
      %v1073 = vadd.f32 %v1041, %v706
      %v1074 = vadd.f32 %v1042, %v707
      %v1075 = vadd.f32 %v1043, %v708
      %v1076 = vadd.f32 %v1044, %v709
      %v1077 = vadd.f32 %v1045, %v710
      %v1078 = vadd.f32 %v1046, %v711
      %v1079 = vadd.f32 %v1047, %v712
      %v1080 = vadd.f32 %v1048, %v713
      %v1081 = vadd.f32 %v1049, %v714
      %v1082 = vadd.f32 %v1050, %v715
      %v1083 = vadd.f32 %v1051, %v716
      %v1084 = vadd.f32 %v1052, %v717
      %v1085 = vadd.f32 %v1053, %v718
      %v1086 = vadd.f32 %v1054, %v719
      %v1087 = vadd.f32 %v1055, %v720
      %v1088 = vadd.f32 %v1056, %v721
      %v1089 = vadd.f32 %v1057, %v722
      %v1090 = vadd.f32 %v1058, %v723
      %v1091 = vadd.f32 %v1059, %v724
      %v1092 = vadd.f32 %v1060, %v725
      %v1093 = vadd.f32 %v1061, %v726
      %v1094 = vadd.f32 %v1062, %v727
      %v1095 = vadd.f32 %v1063, %v728
      %v1096 = vadd.f32 %v1064, %v729
      %v1097 = vadd.f32 %v1065, %v730
      %v1098 = vadd.f32 %v1066, %v731
      %v1099 = vadd.f32 %v1067, %v732
      %v1100 = vadd.f32 %v1068, %v733
      %v1101 = vadd.f32 %v1069, %v734
      %v1102 = vld [vmem:[%s7] sm:$0x1]
      %v1104 = vlaneseq
      %v1105 = vshrl.u32 %v1104, 7
      %v1106 = vsub.s32 0, %v1105
      %v1107 = vrot.slane %v1102, %v1106
      %v1109 = vmul.f32 %v1070, %v1107
      %v1110 = vmul.f32 %v1071, %v1107
      %v1111 = vmul.f32 %v1072, %v1107
      %v1112 = vmul.f32 %v1073, %v1107
      %v1113 = vmul.f32 %v1074, %v1107
      %v1114 = vmul.f32 %v1075, %v1107
      %v1115 = vmul.f32 %v1076, %v1107
      %v1116 = vmul.f32 %v1077, %v1107
      %v1117 = vmul.f32 %v1078, %v1107
      %v1118 = vmul.f32 %v1079, %v1107
      %v1119 = vmul.f32 %v1080, %v1107
      %v1120 = vmul.f32 %v1081, %v1107
      %v1121 = vmul.f32 %v1082, %v1107
      %v1122 = vmul.f32 %v1083, %v1107
      %v1123 = vmul.f32 %v1084, %v1107
      %v1124 = vmul.f32 %v1085, %v1107
      %v1125 = vmul.f32 %v1086, %v1107
      %v1126 = vmul.f32 %v1087, %v1107
      %v1127 = vmul.f32 %v1088, %v1107
      %v1128 = vmul.f32 %v1089, %v1107
      %v1129 = vmul.f32 %v1090, %v1107
      %v1130 = vmul.f32 %v1091, %v1107
      %v1131 = vmul.f32 %v1092, %v1107
      %v1132 = vmul.f32 %v1093, %v1107
      %v1133 = vmul.f32 %v1094, %v1107
      %v1134 = vmul.f32 %v1095, %v1107
      %v1135 = vmul.f32 %v1096, %v1107
      %v1136 = vmul.f32 %v1097, %v1107
      %v1137 = vmul.f32 %v1098, %v1107
      %v1138 = vmul.f32 %v1099, %v1107
      %v1139 = vmul.f32 %v1100, %v1107
      %v1140 = vmul.f32 %v1101, %v1107
      %v1141 = vsel %vm422, %v1109, 0.0
      %1142 = vadd.xlane.f32.xlu0 %v1141
      %v1143 = vpop.xlane.xlu0 %1142
      %v1144 = vsel %vm422, %v1110, 0.0
      %1145 = vadd.xlane.f32.xlu0 %v1144
      %v1146 = vpop.xlane.xlu0 %1145
      %v1147 = vsel %vm422, %v1111, 0.0
      %1148 = vadd.xlane.f32.xlu0 %v1147
      %v1149 = vpop.xlane.xlu0 %1148
      %v1150 = vsel %vm422, %v1112, 0.0
      %1151 = vadd.xlane.f32.xlu0 %v1150
      %v1152 = vpop.xlane.xlu0 %1151
      %v1153 = vsel %vm422, %v1113, 0.0
      %1154 = vadd.xlane.f32.xlu0 %v1153
      %v1155 = vpop.xlane.xlu0 %1154
      %v1156 = vsel %vm422, %v1114, 0.0
      %1157 = vadd.xlane.f32.xlu0 %v1156
      %v1158 = vpop.xlane.xlu0 %1157
      %v1159 = vsel %vm422, %v1115, 0.0
      %1160 = vadd.xlane.f32.xlu0 %v1159
      %v1161 = vpop.xlane.xlu0 %1160
      %v1162 = vsel %vm422, %v1116, 0.0
      %1163 = vadd.xlane.f32.xlu0 %v1162
      %v1164 = vpop.xlane.xlu0 %1163
      %v1165 = vsel %vm422, %v1117, 0.0
      %1166 = vadd.xlane.f32.xlu0 %v1165
      %v1167 = vpop.xlane.xlu0 %1166
      %v1168 = vsel %vm422, %v1118, 0.0
      %1169 = vadd.xlane.f32.xlu0 %v1168
      %v1170 = vpop.xlane.xlu0 %1169
      %v1171 = vsel %vm422, %v1119, 0.0
      %1172 = vadd.xlane.f32.xlu0 %v1171
      %v1173 = vpop.xlane.xlu0 %1172
      %v1174 = vsel %vm422, %v1120, 0.0
      %1175 = vadd.xlane.f32.xlu0 %v1174
      %v1176 = vpop.xlane.xlu0 %1175
      %v1177 = vsel %vm422, %v1121, 0.0
      %1178 = vadd.xlane.f32.xlu0 %v1177
      %v1179 = vpop.xlane.xlu0 %1178
      %v1180 = vsel %vm422, %v1122, 0.0
      %1181 = vadd.xlane.f32.xlu0 %v1180
      %v1182 = vpop.xlane.xlu0 %1181
      %v1183 = vsel %vm422, %v1123, 0.0
      %1184 = vadd.xlane.f32.xlu0 %v1183
      %v1185 = vpop.xlane.xlu0 %1184
      %v1186 = vsel %vm422, %v1124, 0.0
      %1187 = vadd.xlane.f32.xlu0 %v1186
      %v1188 = vpop.xlane.xlu0 %1187
      %v1189 = vsel %vm422, %v1125, 0.0
      %1190 = vadd.xlane.f32.xlu0 %v1189
      %v1191 = vpop.xlane.xlu0 %1190
      %v1192 = vsel %vm422, %v1126, 0.0
      %1193 = vadd.xlane.f32.xlu0 %v1192
      %v1194 = vpop.xlane.xlu0 %1193
      %v1195 = vsel %vm422, %v1127, 0.0
      %1196 = vadd.xlane.f32.xlu0 %v1195
      %v1197 = vpop.xlane.xlu0 %1196
      %v1198 = vsel %vm422, %v1128, 0.0
      %1199 = vadd.xlane.f32.xlu0 %v1198
      %v1200 = vpop.xlane.xlu0 %1199
      %v1201 = vsel %vm422, %v1129, 0.0
      %1202 = vadd.xlane.f32.xlu0 %v1201
      %v1203 = vpop.xlane.xlu0 %1202
      %v1204 = vsel %vm422, %v1130, 0.0
      %1205 = vadd.xlane.f32.xlu0 %v1204
      %v1206 = vpop.xlane.xlu0 %1205
      %v1207 = vsel %vm422, %v1131, 0.0
      %1208 = vadd.xlane.f32.xlu0 %v1207
      %v1209 = vpop.xlane.xlu0 %1208
      %v1210 = vsel %vm422, %v1132, 0.0
      %1211 = vadd.xlane.f32.xlu0 %v1210
      %v1212 = vpop.xlane.xlu0 %1211
      %v1213 = vsel %vm422, %v1133, 0.0
      %1214 = vadd.xlane.f32.xlu0 %v1213
      %v1215 = vpop.xlane.xlu0 %1214
      %v1216 = vsel %vm422, %v1134, 0.0
      %1217 = vadd.xlane.f32.xlu0 %v1216
      %v1218 = vpop.xlane.xlu0 %1217
      %v1219 = vsel %vm422, %v1135, 0.0
      %1220 = vadd.xlane.f32.xlu0 %v1219
      %v1221 = vpop.xlane.xlu0 %1220
      %v1222 = vsel %vm422, %v1136, 0.0
      %1223 = vadd.xlane.f32.xlu0 %v1222
      %v1224 = vpop.xlane.xlu0 %1223
      %v1225 = vsel %vm422, %v1137, 0.0
      %1226 = vadd.xlane.f32.xlu0 %v1225
      %v1227 = vpop.xlane.xlu0 %1226
      %v1228 = vsel %vm422, %v1138, 0.0
      %1229 = vadd.xlane.f32.xlu0 %v1228
      %v1230 = vpop.xlane.xlu0 %1229
      %v1231 = vsel %vm422, %v1139, 0.0
      %1232 = vadd.xlane.f32.xlu0 %v1231
      %v1233 = vpop.xlane.xlu0 %1232
      %v1234 = vsel %vm422, %v1140, 0.0
      %1235 = vadd.xlane.f32.xlu0 %v1234
      %v1236 = vpop.xlane.xlu0 %1235
      %s1237 = sld [smem:[#allocation2]]
      %v1238 = vstv %s1237
      %v1239 = vadd.f32 %v1143, %v1238
      %v1240 = vadd.f32 %v1146, %v1238
      %v1241 = vadd.f32 %v1149, %v1238
      %v1242 = vadd.f32 %v1152, %v1238
      %v1243 = vadd.f32 %v1155, %v1238
      %v1244 = vadd.f32 %v1158, %v1238
      %v1245 = vadd.f32 %v1161, %v1238
      %v1246 = vadd.f32 %v1164, %v1238
      %v1247 = vadd.f32 %v1167, %v1238
      %v1248 = vadd.f32 %v1170, %v1238
      %v1249 = vadd.f32 %v1173, %v1238
      %v1250 = vadd.f32 %v1176, %v1238
      %v1251 = vadd.f32 %v1179, %v1238
      %v1252 = vadd.f32 %v1182, %v1238
      %v1253 = vadd.f32 %v1185, %v1238
      %v1254 = vadd.f32 %v1188, %v1238
      %v1255 = vadd.f32 %v1191, %v1238
      %v1256 = vadd.f32 %v1194, %v1238
      %v1257 = vadd.f32 %v1197, %v1238
      %v1258 = vadd.f32 %v1200, %v1238
      %v1259 = vadd.f32 %v1203, %v1238
      %v1260 = vadd.f32 %v1206, %v1238
      %v1261 = vadd.f32 %v1209, %v1238
      %v1262 = vadd.f32 %v1212, %v1238
      %v1263 = vadd.f32 %v1215, %v1238
      %v1264 = vadd.f32 %v1218, %v1238
      %v1265 = vadd.f32 %v1221, %v1238
      %v1266 = vadd.f32 %v1224, %v1238
      %v1267 = vadd.f32 %v1227, %v1238
      %v1268 = vadd.f32 %v1230, %v1238
      %v1269 = vadd.f32 %v1233, %v1238
      %v1270 = vadd.f32 %v1236, %v1238
      %v1303 = vlaneseq
      %v1304 = vshrl.u32 %v1303, 7
      %v1305 = vsub.s32 0, %v1304
      %v1306 = vrot.slane %v1239, %v1305
      %v1307 = vlaneseq
      %v1308 = vshrl.u32 %v1307, 7
      %v1309 = vsub.s32 1, %v1308
      %v1310 = vrot.slane %v1239, %v1309
      %v1311 = vlaneseq
      %v1312 = vshrl.u32 %v1311, 7
      %v1313 = vsub.s32 2, %v1312
      %v1314 = vrot.slane %v1239, %v1313
      %v1315 = vlaneseq
      %v1316 = vshrl.u32 %v1315, 7
      %v1317 = vsub.s32 3, %v1316
      %v1318 = vrot.slane %v1239, %v1317
      %v1319 = vlaneseq
      %v1320 = vshrl.u32 %v1319, 7
      %v1321 = vsub.s32 4, %v1320
      %v1322 = vrot.slane %v1239, %v1321
      %v1323 = vlaneseq
      %v1324 = vshrl.u32 %v1323, 7
      %v1325 = vsub.s32 5, %v1324
      %v1326 = vrot.slane %v1239, %v1325
      %v1327 = vlaneseq
      %v1328 = vshrl.u32 %v1327, 7
      %v1329 = vsub.s32 6, %v1328
      %v1330 = vrot.slane %v1239, %v1329
      %v1331 = vlaneseq
      %v1332 = vshrl.u32 %v1331, 7
      %v1333 = vsub.s32 7, %v1332
      %v1334 = vrot.slane %v1239, %v1333
      %v1335 = vlaneseq
      %v1336 = vshrl.u32 %v1335, 7
      %v1337 = vsub.s32 0, %v1336
      %v1338 = vrot.slane %v1240, %v1337
      %v1339 = vlaneseq
      %v1340 = vshrl.u32 %v1339, 7
      %v1341 = vsub.s32 1, %v1340
      %v1342 = vrot.slane %v1240, %v1341
      %v1343 = vlaneseq
      %v1344 = vshrl.u32 %v1343, 7
      %v1345 = vsub.s32 2, %v1344
      %v1346 = vrot.slane %v1240, %v1345
      %v1347 = vlaneseq
      %v1348 = vshrl.u32 %v1347, 7
      %v1349 = vsub.s32 3, %v1348
      %v1350 = vrot.slane %v1240, %v1349
      %v1351 = vlaneseq
      %v1352 = vshrl.u32 %v1351, 7
      %v1353 = vsub.s32 4, %v1352
      %v1354 = vrot.slane %v1240, %v1353
      %v1355 = vlaneseq
      %v1356 = vshrl.u32 %v1355, 7
      %v1357 = vsub.s32 5, %v1356
      %v1358 = vrot.slane %v1240, %v1357
      %v1359 = vlaneseq
      %v1360 = vshrl.u32 %v1359, 7
      %v1361 = vsub.s32 6, %v1360
      %v1362 = vrot.slane %v1240, %v1361
      %v1363 = vlaneseq
      %v1364 = vshrl.u32 %v1363, 7
      %v1365 = vsub.s32 7, %v1364
      %v1366 = vrot.slane %v1240, %v1365
      %v1367 = vlaneseq
      %v1368 = vshrl.u32 %v1367, 7
      %v1369 = vsub.s32 0, %v1368
      %v1370 = vrot.slane %v1241, %v1369
      %v1371 = vlaneseq
      %v1372 = vshrl.u32 %v1371, 7
      %v1373 = vsub.s32 1, %v1372
      %v1374 = vrot.slane %v1241, %v1373
      %v1375 = vlaneseq
      %v1376 = vshrl.u32 %v1375, 7
      %v1377 = vsub.s32 2, %v1376
      %v1378 = vrot.slane %v1241, %v1377
      %v1379 = vlaneseq
      %v1380 = vshrl.u32 %v1379, 7
      %v1381 = vsub.s32 3, %v1380
      %v1382 = vrot.slane %v1241, %v1381
      %v1383 = vlaneseq
      %v1384 = vshrl.u32 %v1383, 7
      %v1385 = vsub.s32 4, %v1384
      %v1386 = vrot.slane %v1241, %v1385
      %v1387 = vlaneseq
      %v1388 = vshrl.u32 %v1387, 7
      %v1389 = vsub.s32 5, %v1388
      %v1390 = vrot.slane %v1241, %v1389
      %v1391 = vlaneseq
      %v1392 = vshrl.u32 %v1391, 7
      %v1393 = vsub.s32 6, %v1392
      %v1394 = vrot.slane %v1241, %v1393
      %v1395 = vlaneseq
      %v1396 = vshrl.u32 %v1395, 7
      %v1397 = vsub.s32 7, %v1396
      %v1398 = vrot.slane %v1241, %v1397
      %v1399 = vlaneseq
      %v1400 = vshrl.u32 %v1399, 7
      %v1401 = vsub.s32 0, %v1400
      %v1402 = vrot.slane %v1242, %v1401
      %v1403 = vlaneseq
      %v1404 = vshrl.u32 %v1403, 7
      %v1405 = vsub.s32 1, %v1404
      %v1406 = vrot.slane %v1242, %v1405
      %v1407 = vlaneseq
      %v1408 = vshrl.u32 %v1407, 7
      %v1409 = vsub.s32 2, %v1408
      %v1410 = vrot.slane %v1242, %v1409
      %v1411 = vlaneseq
      %v1412 = vshrl.u32 %v1411, 7
      %v1413 = vsub.s32 3, %v1412
      %v1414 = vrot.slane %v1242, %v1413
      %v1415 = vlaneseq
      %v1416 = vshrl.u32 %v1415, 7
      %v1417 = vsub.s32 4, %v1416
      %v1418 = vrot.slane %v1242, %v1417
      %v1419 = vlaneseq
      %v1420 = vshrl.u32 %v1419, 7
      %v1421 = vsub.s32 5, %v1420
      %v1422 = vrot.slane %v1242, %v1421
      %v1423 = vlaneseq
      %v1424 = vshrl.u32 %v1423, 7
      %v1425 = vsub.s32 6, %v1424
      %v1426 = vrot.slane %v1242, %v1425
      %v1427 = vlaneseq
      %v1428 = vshrl.u32 %v1427, 7
      %v1429 = vsub.s32 7, %v1428
      %v1430 = vrot.slane %v1242, %v1429
      %v1431 = vlaneseq
      %v1432 = vshrl.u32 %v1431, 7
      %v1433 = vsub.s32 0, %v1432
      %v1434 = vrot.slane %v1243, %v1433
      %v1435 = vlaneseq
      %v1436 = vshrl.u32 %v1435, 7
      %v1437 = vsub.s32 1, %v1436
      %v1438 = vrot.slane %v1243, %v1437
      %v1439 = vlaneseq
      %v1440 = vshrl.u32 %v1439, 7
      %v1441 = vsub.s32 2, %v1440
      %v1442 = vrot.slane %v1243, %v1441
      %v1443 = vlaneseq
      %v1444 = vshrl.u32 %v1443, 7
      %v1445 = vsub.s32 3, %v1444
      %v1446 = vrot.slane %v1243, %v1445
      %v1447 = vlaneseq
      %v1448 = vshrl.u32 %v1447, 7
      %v1449 = vsub.s32 4, %v1448
      %v1450 = vrot.slane %v1243, %v1449
      %v1451 = vlaneseq
      %v1452 = vshrl.u32 %v1451, 7
      %v1453 = vsub.s32 5, %v1452
      %v1454 = vrot.slane %v1243, %v1453
      %v1455 = vlaneseq
      %v1456 = vshrl.u32 %v1455, 7
      %v1457 = vsub.s32 6, %v1456
      %v1458 = vrot.slane %v1243, %v1457
      %v1459 = vlaneseq
      %v1460 = vshrl.u32 %v1459, 7
      %v1461 = vsub.s32 7, %v1460
      %v1462 = vrot.slane %v1243, %v1461
      %v1463 = vlaneseq
      %v1464 = vshrl.u32 %v1463, 7
      %v1465 = vsub.s32 0, %v1464
      %v1466 = vrot.slane %v1244, %v1465
      %v1467 = vlaneseq
      %v1468 = vshrl.u32 %v1467, 7
      %v1469 = vsub.s32 1, %v1468
      %v1470 = vrot.slane %v1244, %v1469
      %v1471 = vlaneseq
      %v1472 = vshrl.u32 %v1471, 7
      %v1473 = vsub.s32 2, %v1472
      %v1474 = vrot.slane %v1244, %v1473
      %v1475 = vlaneseq
      %v1476 = vshrl.u32 %v1475, 7
      %v1477 = vsub.s32 3, %v1476
      %v1478 = vrot.slane %v1244, %v1477
      %v1479 = vlaneseq
      %v1480 = vshrl.u32 %v1479, 7
      %v1481 = vsub.s32 4, %v1480
      %v1482 = vrot.slane %v1244, %v1481
      %v1483 = vlaneseq
      %v1484 = vshrl.u32 %v1483, 7
      %v1485 = vsub.s32 5, %v1484
      %v1486 = vrot.slane %v1244, %v1485
      %v1487 = vlaneseq
      %v1488 = vshrl.u32 %v1487, 7
      %v1489 = vsub.s32 6, %v1488
      %v1490 = vrot.slane %v1244, %v1489
      %v1491 = vlaneseq
      %v1492 = vshrl.u32 %v1491, 7
      %v1493 = vsub.s32 7, %v1492
      %v1494 = vrot.slane %v1244, %v1493
      %v1495 = vlaneseq
      %v1496 = vshrl.u32 %v1495, 7
      %v1497 = vsub.s32 0, %v1496
      %v1498 = vrot.slane %v1245, %v1497
      %v1499 = vlaneseq
      %v1500 = vshrl.u32 %v1499, 7
      %v1501 = vsub.s32 1, %v1500
      %v1502 = vrot.slane %v1245, %v1501
      %v1503 = vlaneseq
      %v1504 = vshrl.u32 %v1503, 7
      %v1505 = vsub.s32 2, %v1504
      %v1506 = vrot.slane %v1245, %v1505
      %v1507 = vlaneseq
      %v1508 = vshrl.u32 %v1507, 7
      %v1509 = vsub.s32 3, %v1508
      %v1510 = vrot.slane %v1245, %v1509
      %v1511 = vlaneseq
      %v1512 = vshrl.u32 %v1511, 7
      %v1513 = vsub.s32 4, %v1512
      %v1514 = vrot.slane %v1245, %v1513
      %v1515 = vlaneseq
      %v1516 = vshrl.u32 %v1515, 7
      %v1517 = vsub.s32 5, %v1516
      %v1518 = vrot.slane %v1245, %v1517
      %v1519 = vlaneseq
      %v1520 = vshrl.u32 %v1519, 7
      %v1521 = vsub.s32 6, %v1520
      %v1522 = vrot.slane %v1245, %v1521
      %v1523 = vlaneseq
      %v1524 = vshrl.u32 %v1523, 7
      %v1525 = vsub.s32 7, %v1524
      %v1526 = vrot.slane %v1245, %v1525
      %v1527 = vlaneseq
      %v1528 = vshrl.u32 %v1527, 7
      %v1529 = vsub.s32 0, %v1528
      %v1530 = vrot.slane %v1246, %v1529
      %v1531 = vlaneseq
      %v1532 = vshrl.u32 %v1531, 7
      %v1533 = vsub.s32 1, %v1532
      %v1534 = vrot.slane %v1246, %v1533
      %v1535 = vlaneseq
      %v1536 = vshrl.u32 %v1535, 7
      %v1537 = vsub.s32 2, %v1536
      %v1538 = vrot.slane %v1246, %v1537
      %v1539 = vlaneseq
      %v1540 = vshrl.u32 %v1539, 7
      %v1541 = vsub.s32 3, %v1540
      %v1542 = vrot.slane %v1246, %v1541
      %v1543 = vlaneseq
      %v1544 = vshrl.u32 %v1543, 7
      %v1545 = vsub.s32 4, %v1544
      %v1546 = vrot.slane %v1246, %v1545
      %v1547 = vlaneseq
      %v1548 = vshrl.u32 %v1547, 7
      %v1549 = vsub.s32 5, %v1548
      %v1550 = vrot.slane %v1246, %v1549
      %v1551 = vlaneseq
      %v1552 = vshrl.u32 %v1551, 7
      %v1553 = vsub.s32 6, %v1552
      %v1554 = vrot.slane %v1246, %v1553
      %v1555 = vlaneseq
      %v1556 = vshrl.u32 %v1555, 7
      %v1557 = vsub.s32 7, %v1556
      %v1558 = vrot.slane %v1246, %v1557
      %v1559 = vlaneseq
      %v1560 = vshrl.u32 %v1559, 7
      %v1561 = vsub.s32 0, %v1560
      %v1562 = vrot.slane %v1247, %v1561
      %v1563 = vlaneseq
      %v1564 = vshrl.u32 %v1563, 7
      %v1565 = vsub.s32 1, %v1564
      %v1566 = vrot.slane %v1247, %v1565
      %v1567 = vlaneseq
      %v1568 = vshrl.u32 %v1567, 7
      %v1569 = vsub.s32 2, %v1568
      %v1570 = vrot.slane %v1247, %v1569
      %v1571 = vlaneseq
      %v1572 = vshrl.u32 %v1571, 7
      %v1573 = vsub.s32 3, %v1572
      %v1574 = vrot.slane %v1247, %v1573
      %v1575 = vlaneseq
      %v1576 = vshrl.u32 %v1575, 7
      %v1577 = vsub.s32 4, %v1576
      %v1578 = vrot.slane %v1247, %v1577
      %v1579 = vlaneseq
      %v1580 = vshrl.u32 %v1579, 7
      %v1581 = vsub.s32 5, %v1580
      %v1582 = vrot.slane %v1247, %v1581
      %v1583 = vlaneseq
      %v1584 = vshrl.u32 %v1583, 7
      %v1585 = vsub.s32 6, %v1584
      %v1586 = vrot.slane %v1247, %v1585
      %v1587 = vlaneseq
      %v1588 = vshrl.u32 %v1587, 7
      %v1589 = vsub.s32 7, %v1588
      %v1590 = vrot.slane %v1247, %v1589
      %v1591 = vlaneseq
      %v1592 = vshrl.u32 %v1591, 7
      %v1593 = vsub.s32 0, %v1592
      %v1594 = vrot.slane %v1248, %v1593
      %v1595 = vlaneseq
      %v1596 = vshrl.u32 %v1595, 7
      %v1597 = vsub.s32 1, %v1596
      %v1598 = vrot.slane %v1248, %v1597
      %v1599 = vlaneseq
      %v1600 = vshrl.u32 %v1599, 7
      %v1601 = vsub.s32 2, %v1600
      %v1602 = vrot.slane %v1248, %v1601
      %v1603 = vlaneseq
      %v1604 = vshrl.u32 %v1603, 7
      %v1605 = vsub.s32 3, %v1604
      %v1606 = vrot.slane %v1248, %v1605
      %v1607 = vlaneseq
      %v1608 = vshrl.u32 %v1607, 7
      %v1609 = vsub.s32 4, %v1608
      %v1610 = vrot.slane %v1248, %v1609
      %v1611 = vlaneseq
      %v1612 = vshrl.u32 %v1611, 7
      %v1613 = vsub.s32 5, %v1612
      %v1614 = vrot.slane %v1248, %v1613
      %v1615 = vlaneseq
      %v1616 = vshrl.u32 %v1615, 7
      %v1617 = vsub.s32 6, %v1616
      %v1618 = vrot.slane %v1248, %v1617
      %v1619 = vlaneseq
      %v1620 = vshrl.u32 %v1619, 7
      %v1621 = vsub.s32 7, %v1620
      %v1622 = vrot.slane %v1248, %v1621
      %v1623 = vlaneseq
      %v1624 = vshrl.u32 %v1623, 7
      %v1625 = vsub.s32 0, %v1624
      %v1626 = vrot.slane %v1249, %v1625
      %v1627 = vlaneseq
      %v1628 = vshrl.u32 %v1627, 7
      %v1629 = vsub.s32 1, %v1628
      %v1630 = vrot.slane %v1249, %v1629
      %v1631 = vlaneseq
      %v1632 = vshrl.u32 %v1631, 7
      %v1633 = vsub.s32 2, %v1632
      %v1634 = vrot.slane %v1249, %v1633
      %v1635 = vlaneseq
      %v1636 = vshrl.u32 %v1635, 7
      %v1637 = vsub.s32 3, %v1636
      %v1638 = vrot.slane %v1249, %v1637
      %v1639 = vlaneseq
      %v1640 = vshrl.u32 %v1639, 7
      %v1641 = vsub.s32 4, %v1640
      %v1642 = vrot.slane %v1249, %v1641
      %v1643 = vlaneseq
      %v1644 = vshrl.u32 %v1643, 7
      %v1645 = vsub.s32 5, %v1644
      %v1646 = vrot.slane %v1249, %v1645
      %v1647 = vlaneseq
      %v1648 = vshrl.u32 %v1647, 7
      %v1649 = vsub.s32 6, %v1648
      %v1650 = vrot.slane %v1249, %v1649
      %v1651 = vlaneseq
      %v1652 = vshrl.u32 %v1651, 7
      %v1653 = vsub.s32 7, %v1652
      %v1654 = vrot.slane %v1249, %v1653
      %v1655 = vlaneseq
      %v1656 = vshrl.u32 %v1655, 7
      %v1657 = vsub.s32 0, %v1656
      %v1658 = vrot.slane %v1250, %v1657
      %v1659 = vlaneseq
      %v1660 = vshrl.u32 %v1659, 7
      %v1661 = vsub.s32 1, %v1660
      %v1662 = vrot.slane %v1250, %v1661
      %v1663 = vlaneseq
      %v1664 = vshrl.u32 %v1663, 7
      %v1665 = vsub.s32 2, %v1664
      %v1666 = vrot.slane %v1250, %v1665
      %v1667 = vlaneseq
      %v1668 = vshrl.u32 %v1667, 7
      %v1669 = vsub.s32 3, %v1668
      %v1670 = vrot.slane %v1250, %v1669
      %v1671 = vlaneseq
      %v1672 = vshrl.u32 %v1671, 7
      %v1673 = vsub.s32 4, %v1672
      %v1674 = vrot.slane %v1250, %v1673
      %v1675 = vlaneseq
      %v1676 = vshrl.u32 %v1675, 7
      %v1677 = vsub.s32 5, %v1676
      %v1678 = vrot.slane %v1250, %v1677
      %v1679 = vlaneseq
      %v1680 = vshrl.u32 %v1679, 7
      %v1681 = vsub.s32 6, %v1680
      %v1682 = vrot.slane %v1250, %v1681
      %v1683 = vlaneseq
      %v1684 = vshrl.u32 %v1683, 7
      %v1685 = vsub.s32 7, %v1684
      %v1686 = vrot.slane %v1250, %v1685
      %v1687 = vlaneseq
      %v1688 = vshrl.u32 %v1687, 7
      %v1689 = vsub.s32 0, %v1688
      %v1690 = vrot.slane %v1251, %v1689
      %v1691 = vlaneseq
      %v1692 = vshrl.u32 %v1691, 7
      %v1693 = vsub.s32 1, %v1692
      %v1694 = vrot.slane %v1251, %v1693
      %v1695 = vlaneseq
      %v1696 = vshrl.u32 %v1695, 7
      %v1697 = vsub.s32 2, %v1696
      %v1698 = vrot.slane %v1251, %v1697
      %v1699 = vlaneseq
      %v1700 = vshrl.u32 %v1699, 7
      %v1701 = vsub.s32 3, %v1700
      %v1702 = vrot.slane %v1251, %v1701
      %v1703 = vlaneseq
      %v1704 = vshrl.u32 %v1703, 7
      %v1705 = vsub.s32 4, %v1704
      %v1706 = vrot.slane %v1251, %v1705
      %v1707 = vlaneseq
      %v1708 = vshrl.u32 %v1707, 7
      %v1709 = vsub.s32 5, %v1708
      %v1710 = vrot.slane %v1251, %v1709
      %v1711 = vlaneseq
      %v1712 = vshrl.u32 %v1711, 7
      %v1713 = vsub.s32 6, %v1712
      %v1714 = vrot.slane %v1251, %v1713
      %v1715 = vlaneseq
      %v1716 = vshrl.u32 %v1715, 7
      %v1717 = vsub.s32 7, %v1716
      %v1718 = vrot.slane %v1251, %v1717
      %v1719 = vlaneseq
      %v1720 = vshrl.u32 %v1719, 7
      %v1721 = vsub.s32 0, %v1720
      %v1722 = vrot.slane %v1252, %v1721
      %v1723 = vlaneseq
      %v1724 = vshrl.u32 %v1723, 7
      %v1725 = vsub.s32 1, %v1724
      %v1726 = vrot.slane %v1252, %v1725
      %v1727 = vlaneseq
      %v1728 = vshrl.u32 %v1727, 7
      %v1729 = vsub.s32 2, %v1728
      %v1730 = vrot.slane %v1252, %v1729
      %v1731 = vlaneseq
      %v1732 = vshrl.u32 %v1731, 7
      %v1733 = vsub.s32 3, %v1732
      %v1734 = vrot.slane %v1252, %v1733
      %v1735 = vlaneseq
      %v1736 = vshrl.u32 %v1735, 7
      %v1737 = vsub.s32 4, %v1736
      %v1738 = vrot.slane %v1252, %v1737
      %v1739 = vlaneseq
      %v1740 = vshrl.u32 %v1739, 7
      %v1741 = vsub.s32 5, %v1740
      %v1742 = vrot.slane %v1252, %v1741
      %v1743 = vlaneseq
      %v1744 = vshrl.u32 %v1743, 7
      %v1745 = vsub.s32 6, %v1744
      %v1746 = vrot.slane %v1252, %v1745
      %v1747 = vlaneseq
      %v1748 = vshrl.u32 %v1747, 7
      %v1749 = vsub.s32 7, %v1748
      %v1750 = vrot.slane %v1252, %v1749
      %v1751 = vlaneseq
      %v1752 = vshrl.u32 %v1751, 7
      %v1753 = vsub.s32 0, %v1752
      %v1754 = vrot.slane %v1253, %v1753
      %v1755 = vlaneseq
      %v1756 = vshrl.u32 %v1755, 7
      %v1757 = vsub.s32 1, %v1756
      %v1758 = vrot.slane %v1253, %v1757
      %v1759 = vlaneseq
      %v1760 = vshrl.u32 %v1759, 7
      %v1761 = vsub.s32 2, %v1760
      %v1762 = vrot.slane %v1253, %v1761
      %v1763 = vlaneseq
      %v1764 = vshrl.u32 %v1763, 7
      %v1765 = vsub.s32 3, %v1764
      %v1766 = vrot.slane %v1253, %v1765
      %v1767 = vlaneseq
      %v1768 = vshrl.u32 %v1767, 7
      %v1769 = vsub.s32 4, %v1768
      %v1770 = vrot.slane %v1253, %v1769
      %v1771 = vlaneseq
      %v1772 = vshrl.u32 %v1771, 7
      %v1773 = vsub.s32 5, %v1772
      %v1774 = vrot.slane %v1253, %v1773
      %v1775 = vlaneseq
      %v1776 = vshrl.u32 %v1775, 7
      %v1777 = vsub.s32 6, %v1776
      %v1778 = vrot.slane %v1253, %v1777
      %v1779 = vlaneseq
      %v1780 = vshrl.u32 %v1779, 7
      %v1781 = vsub.s32 7, %v1780
      %v1782 = vrot.slane %v1253, %v1781
      %v1783 = vlaneseq
      %v1784 = vshrl.u32 %v1783, 7
      %v1785 = vsub.s32 0, %v1784
      %v1786 = vrot.slane %v1254, %v1785
      %v1787 = vlaneseq
      %v1788 = vshrl.u32 %v1787, 7
      %v1789 = vsub.s32 1, %v1788
      %v1790 = vrot.slane %v1254, %v1789
      %v1791 = vlaneseq
      %v1792 = vshrl.u32 %v1791, 7
      %v1793 = vsub.s32 2, %v1792
      %v1794 = vrot.slane %v1254, %v1793
      %v1795 = vlaneseq
      %v1796 = vshrl.u32 %v1795, 7
      %v1797 = vsub.s32 3, %v1796
      %v1798 = vrot.slane %v1254, %v1797
      %v1799 = vlaneseq
      %v1800 = vshrl.u32 %v1799, 7
      %v1801 = vsub.s32 4, %v1800
      %v1802 = vrot.slane %v1254, %v1801
      %v1803 = vlaneseq
      %v1804 = vshrl.u32 %v1803, 7
      %v1805 = vsub.s32 5, %v1804
      %v1806 = vrot.slane %v1254, %v1805
      %v1807 = vlaneseq
      %v1808 = vshrl.u32 %v1807, 7
      %v1809 = vsub.s32 6, %v1808
      %v1810 = vrot.slane %v1254, %v1809
      %v1811 = vlaneseq
      %v1812 = vshrl.u32 %v1811, 7
      %v1813 = vsub.s32 7, %v1812
      %v1814 = vrot.slane %v1254, %v1813
      %v1815 = vlaneseq
      %v1816 = vshrl.u32 %v1815, 7
      %v1817 = vsub.s32 0, %v1816
      %v1818 = vrot.slane %v1255, %v1817
      %v1819 = vlaneseq
      %v1820 = vshrl.u32 %v1819, 7
      %v1821 = vsub.s32 1, %v1820
      %v1822 = vrot.slane %v1255, %v1821
      %v1823 = vlaneseq
      %v1824 = vshrl.u32 %v1823, 7
      %v1825 = vsub.s32 2, %v1824
      %v1826 = vrot.slane %v1255, %v1825
      %v1827 = vlaneseq
      %v1828 = vshrl.u32 %v1827, 7
      %v1829 = vsub.s32 3, %v1828
      %v1830 = vrot.slane %v1255, %v1829
      %v1831 = vlaneseq
      %v1832 = vshrl.u32 %v1831, 7
      %v1833 = vsub.s32 4, %v1832
      %v1834 = vrot.slane %v1255, %v1833
      %v1835 = vlaneseq
      %v1836 = vshrl.u32 %v1835, 7
      %v1837 = vsub.s32 5, %v1836
      %v1838 = vrot.slane %v1255, %v1837
      %v1839 = vlaneseq
      %v1840 = vshrl.u32 %v1839, 7
      %v1841 = vsub.s32 6, %v1840
      %v1842 = vrot.slane %v1255, %v1841
      %v1843 = vlaneseq
      %v1844 = vshrl.u32 %v1843, 7
      %v1845 = vsub.s32 7, %v1844
      %v1846 = vrot.slane %v1255, %v1845
      %v1847 = vlaneseq
      %v1848 = vshrl.u32 %v1847, 7
      %v1849 = vsub.s32 0, %v1848
      %v1850 = vrot.slane %v1256, %v1849
      %v1851 = vlaneseq
      %v1852 = vshrl.u32 %v1851, 7
      %v1853 = vsub.s32 1, %v1852
      %v1854 = vrot.slane %v1256, %v1853
      %v1855 = vlaneseq
      %v1856 = vshrl.u32 %v1855, 7
      %v1857 = vsub.s32 2, %v1856
      %v1858 = vrot.slane %v1256, %v1857
      %v1859 = vlaneseq
      %v1860 = vshrl.u32 %v1859, 7
      %v1861 = vsub.s32 3, %v1860
      %v1862 = vrot.slane %v1256, %v1861
      %v1863 = vlaneseq
      %v1864 = vshrl.u32 %v1863, 7
      %v1865 = vsub.s32 4, %v1864
      %v1866 = vrot.slane %v1256, %v1865
      %v1867 = vlaneseq
      %v1868 = vshrl.u32 %v1867, 7
      %v1869 = vsub.s32 5, %v1868
      %v1870 = vrot.slane %v1256, %v1869
      %v1871 = vlaneseq
      %v1872 = vshrl.u32 %v1871, 7
      %v1873 = vsub.s32 6, %v1872
      %v1874 = vrot.slane %v1256, %v1873
      %v1875 = vlaneseq
      %v1876 = vshrl.u32 %v1875, 7
      %v1877 = vsub.s32 7, %v1876
      %v1878 = vrot.slane %v1256, %v1877
      %v1879 = vlaneseq
      %v1880 = vshrl.u32 %v1879, 7
      %v1881 = vsub.s32 0, %v1880
      %v1882 = vrot.slane %v1257, %v1881
      %v1883 = vlaneseq
      %v1884 = vshrl.u32 %v1883, 7
      %v1885 = vsub.s32 1, %v1884
      %v1886 = vrot.slane %v1257, %v1885
      %v1887 = vlaneseq
      %v1888 = vshrl.u32 %v1887, 7
      %v1889 = vsub.s32 2, %v1888
      %v1890 = vrot.slane %v1257, %v1889
      %v1891 = vlaneseq
      %v1892 = vshrl.u32 %v1891, 7
      %v1893 = vsub.s32 3, %v1892
      %v1894 = vrot.slane %v1257, %v1893
      %v1895 = vlaneseq
      %v1896 = vshrl.u32 %v1895, 7
      %v1897 = vsub.s32 4, %v1896
      %v1898 = vrot.slane %v1257, %v1897
      %v1899 = vlaneseq
      %v1900 = vshrl.u32 %v1899, 7
      %v1901 = vsub.s32 5, %v1900
      %v1902 = vrot.slane %v1257, %v1901
      %v1903 = vlaneseq
      %v1904 = vshrl.u32 %v1903, 7
      %v1905 = vsub.s32 6, %v1904
      %v1906 = vrot.slane %v1257, %v1905
      %v1907 = vlaneseq
      %v1908 = vshrl.u32 %v1907, 7
      %v1909 = vsub.s32 7, %v1908
      %v1910 = vrot.slane %v1257, %v1909
      %v1911 = vlaneseq
      %v1912 = vshrl.u32 %v1911, 7
      %v1913 = vsub.s32 0, %v1912
      %v1914 = vrot.slane %v1258, %v1913
      %v1915 = vlaneseq
      %v1916 = vshrl.u32 %v1915, 7
      %v1917 = vsub.s32 1, %v1916
      %v1918 = vrot.slane %v1258, %v1917
      %v1919 = vlaneseq
      %v1920 = vshrl.u32 %v1919, 7
      %v1921 = vsub.s32 2, %v1920
      %v1922 = vrot.slane %v1258, %v1921
      %v1923 = vlaneseq
      %v1924 = vshrl.u32 %v1923, 7
      %v1925 = vsub.s32 3, %v1924
      %v1926 = vrot.slane %v1258, %v1925
      %v1927 = vlaneseq
      %v1928 = vshrl.u32 %v1927, 7
      %v1929 = vsub.s32 4, %v1928
      %v1930 = vrot.slane %v1258, %v1929
      %v1931 = vlaneseq
      %v1932 = vshrl.u32 %v1931, 7
      %v1933 = vsub.s32 5, %v1932
      %v1934 = vrot.slane %v1258, %v1933
      %v1935 = vlaneseq
      %v1936 = vshrl.u32 %v1935, 7
      %v1937 = vsub.s32 6, %v1936
      %v1938 = vrot.slane %v1258, %v1937
      %v1939 = vlaneseq
      %v1940 = vshrl.u32 %v1939, 7
      %v1941 = vsub.s32 7, %v1940
      %v1942 = vrot.slane %v1258, %v1941
      %v1943 = vlaneseq
      %v1944 = vshrl.u32 %v1943, 7
      %v1945 = vsub.s32 0, %v1944
      %v1946 = vrot.slane %v1259, %v1945
      %v1947 = vlaneseq
      %v1948 = vshrl.u32 %v1947, 7
      %v1949 = vsub.s32 1, %v1948
      %v1950 = vrot.slane %v1259, %v1949
      %v1951 = vlaneseq
      %v1952 = vshrl.u32 %v1951, 7
      %v1953 = vsub.s32 2, %v1952
      %v1954 = vrot.slane %v1259, %v1953
      %v1955 = vlaneseq
      %v1956 = vshrl.u32 %v1955, 7
      %v1957 = vsub.s32 3, %v1956
      %v1958 = vrot.slane %v1259, %v1957
      %v1959 = vlaneseq
      %v1960 = vshrl.u32 %v1959, 7
      %v1961 = vsub.s32 4, %v1960
      %v1962 = vrot.slane %v1259, %v1961
      %v1963 = vlaneseq
      %v1964 = vshrl.u32 %v1963, 7
      %v1965 = vsub.s32 5, %v1964
      %v1966 = vrot.slane %v1259, %v1965
      %v1967 = vlaneseq
      %v1968 = vshrl.u32 %v1967, 7
      %v1969 = vsub.s32 6, %v1968
      %v1970 = vrot.slane %v1259, %v1969
      %v1971 = vlaneseq
      %v1972 = vshrl.u32 %v1971, 7
      %v1973 = vsub.s32 7, %v1972
      %v1974 = vrot.slane %v1259, %v1973
      %v1975 = vlaneseq
      %v1976 = vshrl.u32 %v1975, 7
      %v1977 = vsub.s32 0, %v1976
      %v1978 = vrot.slane %v1260, %v1977
      %v1979 = vlaneseq
      %v1980 = vshrl.u32 %v1979, 7
      %v1981 = vsub.s32 1, %v1980
      %v1982 = vrot.slane %v1260, %v1981
      %v1983 = vlaneseq
      %v1984 = vshrl.u32 %v1983, 7
      %v1985 = vsub.s32 2, %v1984
      %v1986 = vrot.slane %v1260, %v1985
      %v1987 = vlaneseq
      %v1988 = vshrl.u32 %v1987, 7
      %v1989 = vsub.s32 3, %v1988
      %v1990 = vrot.slane %v1260, %v1989
      %v1991 = vlaneseq
      %v1992 = vshrl.u32 %v1991, 7
      %v1993 = vsub.s32 4, %v1992
      %v1994 = vrot.slane %v1260, %v1993
      %v1995 = vlaneseq
      %v1996 = vshrl.u32 %v1995, 7
      %v1997 = vsub.s32 5, %v1996
      %v1998 = vrot.slane %v1260, %v1997
      %v1999 = vlaneseq
      %v2000 = vshrl.u32 %v1999, 7
      %v2001 = vsub.s32 6, %v2000
      %v2002 = vrot.slane %v1260, %v2001
      %v2003 = vlaneseq
      %v2004 = vshrl.u32 %v2003, 7
      %v2005 = vsub.s32 7, %v2004
      %v2006 = vrot.slane %v1260, %v2005
      %v2007 = vlaneseq
      %v2008 = vshrl.u32 %v2007, 7
      %v2009 = vsub.s32 0, %v2008
      %v2010 = vrot.slane %v1261, %v2009
      %v2011 = vlaneseq
      %v2012 = vshrl.u32 %v2011, 7
      %v2013 = vsub.s32 1, %v2012
      %v2014 = vrot.slane %v1261, %v2013
      %v2015 = vlaneseq
      %v2016 = vshrl.u32 %v2015, 7
      %v2017 = vsub.s32 2, %v2016
      %v2018 = vrot.slane %v1261, %v2017
      %v2019 = vlaneseq
      %v2020 = vshrl.u32 %v2019, 7
      %v2021 = vsub.s32 3, %v2020
      %v2022 = vrot.slane %v1261, %v2021
      %v2023 = vlaneseq
      %v2024 = vshrl.u32 %v2023, 7
      %v2025 = vsub.s32 4, %v2024
      %v2026 = vrot.slane %v1261, %v2025
      %v2027 = vlaneseq
      %v2028 = vshrl.u32 %v2027, 7
      %v2029 = vsub.s32 5, %v2028
      %v2030 = vrot.slane %v1261, %v2029
      %v2031 = vlaneseq
      %v2032 = vshrl.u32 %v2031, 7
      %v2033 = vsub.s32 6, %v2032
      %v2034 = vrot.slane %v1261, %v2033
      %v2035 = vlaneseq
      %v2036 = vshrl.u32 %v2035, 7
      %v2037 = vsub.s32 7, %v2036
      %v2038 = vrot.slane %v1261, %v2037
      %v2039 = vlaneseq
      %v2040 = vshrl.u32 %v2039, 7
      %v2041 = vsub.s32 0, %v2040
      %v2042 = vrot.slane %v1262, %v2041
      %v2043 = vlaneseq
      %v2044 = vshrl.u32 %v2043, 7
      %v2045 = vsub.s32 1, %v2044
      %v2046 = vrot.slane %v1262, %v2045
      %v2047 = vlaneseq
      %v2048 = vshrl.u32 %v2047, 7
      %v2049 = vsub.s32 2, %v2048
      %v2050 = vrot.slane %v1262, %v2049
      %v2051 = vlaneseq
      %v2052 = vshrl.u32 %v2051, 7
      %v2053 = vsub.s32 3, %v2052
      %v2054 = vrot.slane %v1262, %v2053
      %v2055 = vlaneseq
      %v2056 = vshrl.u32 %v2055, 7
      %v2057 = vsub.s32 4, %v2056
      %v2058 = vrot.slane %v1262, %v2057
      %v2059 = vlaneseq
      %v2060 = vshrl.u32 %v2059, 7
      %v2061 = vsub.s32 5, %v2060
      %v2062 = vrot.slane %v1262, %v2061
      %v2063 = vlaneseq
      %v2064 = vshrl.u32 %v2063, 7
      %v2065 = vsub.s32 6, %v2064
      %v2066 = vrot.slane %v1262, %v2065
      %v2067 = vlaneseq
      %v2068 = vshrl.u32 %v2067, 7
      %v2069 = vsub.s32 7, %v2068
      %v2070 = vrot.slane %v1262, %v2069
      %v2071 = vlaneseq
      %v2072 = vshrl.u32 %v2071, 7
      %v2073 = vsub.s32 0, %v2072
      %v2074 = vrot.slane %v1263, %v2073
      %v2075 = vlaneseq
      %v2076 = vshrl.u32 %v2075, 7
      %v2077 = vsub.s32 1, %v2076
      %v2078 = vrot.slane %v1263, %v2077
      %v2079 = vlaneseq
      %v2080 = vshrl.u32 %v2079, 7
      %v2081 = vsub.s32 2, %v2080
      %v2082 = vrot.slane %v1263, %v2081
      %v2083 = vlaneseq
      %v2084 = vshrl.u32 %v2083, 7
      %v2085 = vsub.s32 3, %v2084
      %v2086 = vrot.slane %v1263, %v2085
      %v2087 = vlaneseq
      %v2088 = vshrl.u32 %v2087, 7
      %v2089 = vsub.s32 4, %v2088
      %v2090 = vrot.slane %v1263, %v2089
      %v2091 = vlaneseq
      %v2092 = vshrl.u32 %v2091, 7
      %v2093 = vsub.s32 5, %v2092
      %v2094 = vrot.slane %v1263, %v2093
      %v2095 = vlaneseq
      %v2096 = vshrl.u32 %v2095, 7
      %v2097 = vsub.s32 6, %v2096
      %v2098 = vrot.slane %v1263, %v2097
      %v2099 = vlaneseq
      %v2100 = vshrl.u32 %v2099, 7
      %v2101 = vsub.s32 7, %v2100
      %v2102 = vrot.slane %v1263, %v2101
      %v2103 = vlaneseq
      %v2104 = vshrl.u32 %v2103, 7
      %v2105 = vsub.s32 0, %v2104
      %v2106 = vrot.slane %v1264, %v2105
      %v2107 = vlaneseq
      %v2108 = vshrl.u32 %v2107, 7
      %v2109 = vsub.s32 1, %v2108
      %v2110 = vrot.slane %v1264, %v2109
      %v2111 = vlaneseq
      %v2112 = vshrl.u32 %v2111, 7
      %v2113 = vsub.s32 2, %v2112
      %v2114 = vrot.slane %v1264, %v2113
      %v2115 = vlaneseq
      %v2116 = vshrl.u32 %v2115, 7
      %v2117 = vsub.s32 3, %v2116
      %v2118 = vrot.slane %v1264, %v2117
      %v2119 = vlaneseq
      %v2120 = vshrl.u32 %v2119, 7
      %v2121 = vsub.s32 4, %v2120
      %v2122 = vrot.slane %v1264, %v2121
      %v2123 = vlaneseq
      %v2124 = vshrl.u32 %v2123, 7
      %v2125 = vsub.s32 5, %v2124
      %v2126 = vrot.slane %v1264, %v2125
      %v2127 = vlaneseq
      %v2128 = vshrl.u32 %v2127, 7
      %v2129 = vsub.s32 6, %v2128
      %v2130 = vrot.slane %v1264, %v2129
      %v2131 = vlaneseq
      %v2132 = vshrl.u32 %v2131, 7
      %v2133 = vsub.s32 7, %v2132
      %v2134 = vrot.slane %v1264, %v2133
      %v2135 = vlaneseq
      %v2136 = vshrl.u32 %v2135, 7
      %v2137 = vsub.s32 0, %v2136
      %v2138 = vrot.slane %v1265, %v2137
      %v2139 = vlaneseq
      %v2140 = vshrl.u32 %v2139, 7
      %v2141 = vsub.s32 1, %v2140
      %v2142 = vrot.slane %v1265, %v2141
      %v2143 = vlaneseq
      %v2144 = vshrl.u32 %v2143, 7
      %v2145 = vsub.s32 2, %v2144
      %v2146 = vrot.slane %v1265, %v2145
      %v2147 = vlaneseq
      %v2148 = vshrl.u32 %v2147, 7
      %v2149 = vsub.s32 3, %v2148
      %v2150 = vrot.slane %v1265, %v2149
      %v2151 = vlaneseq
      %v2152 = vshrl.u32 %v2151, 7
      %v2153 = vsub.s32 4, %v2152
      %v2154 = vrot.slane %v1265, %v2153
      %v2155 = vlaneseq
      %v2156 = vshrl.u32 %v2155, 7
      %v2157 = vsub.s32 5, %v2156
      %v2158 = vrot.slane %v1265, %v2157
      %v2159 = vlaneseq
      %v2160 = vshrl.u32 %v2159, 7
      %v2161 = vsub.s32 6, %v2160
      %v2162 = vrot.slane %v1265, %v2161
      %v2163 = vlaneseq
      %v2164 = vshrl.u32 %v2163, 7
      %v2165 = vsub.s32 7, %v2164
      %v2166 = vrot.slane %v1265, %v2165
      %v2167 = vlaneseq
      %v2168 = vshrl.u32 %v2167, 7
      %v2169 = vsub.s32 0, %v2168
      %v2170 = vrot.slane %v1266, %v2169
      %v2171 = vlaneseq
      %v2172 = vshrl.u32 %v2171, 7
      %v2173 = vsub.s32 1, %v2172
      %v2174 = vrot.slane %v1266, %v2173
      %v2175 = vlaneseq
      %v2176 = vshrl.u32 %v2175, 7
      %v2177 = vsub.s32 2, %v2176
      %v2178 = vrot.slane %v1266, %v2177
      %v2179 = vlaneseq
      %v2180 = vshrl.u32 %v2179, 7
      %v2181 = vsub.s32 3, %v2180
      %v2182 = vrot.slane %v1266, %v2181
      %v2183 = vlaneseq
      %v2184 = vshrl.u32 %v2183, 7
      %v2185 = vsub.s32 4, %v2184
      %v2186 = vrot.slane %v1266, %v2185
      %v2187 = vlaneseq
      %v2188 = vshrl.u32 %v2187, 7
      %v2189 = vsub.s32 5, %v2188
      %v2190 = vrot.slane %v1266, %v2189
      %v2191 = vlaneseq
      %v2192 = vshrl.u32 %v2191, 7
      %v2193 = vsub.s32 6, %v2192
      %v2194 = vrot.slane %v1266, %v2193
      %v2195 = vlaneseq
      %v2196 = vshrl.u32 %v2195, 7
      %v2197 = vsub.s32 7, %v2196
      %v2198 = vrot.slane %v1266, %v2197
      %v2199 = vlaneseq
      %v2200 = vshrl.u32 %v2199, 7
      %v2201 = vsub.s32 0, %v2200
      %v2202 = vrot.slane %v1267, %v2201
      %v2203 = vlaneseq
      %v2204 = vshrl.u32 %v2203, 7
      %v2205 = vsub.s32 1, %v2204
      %v2206 = vrot.slane %v1267, %v2205
      %v2207 = vlaneseq
      %v2208 = vshrl.u32 %v2207, 7
      %v2209 = vsub.s32 2, %v2208
      %v2210 = vrot.slane %v1267, %v2209
      %v2211 = vlaneseq
      %v2212 = vshrl.u32 %v2211, 7
      %v2213 = vsub.s32 3, %v2212
      %v2214 = vrot.slane %v1267, %v2213
      %v2215 = vlaneseq
      %v2216 = vshrl.u32 %v2215, 7
      %v2217 = vsub.s32 4, %v2216
      %v2218 = vrot.slane %v1267, %v2217
      %v2219 = vlaneseq
      %v2220 = vshrl.u32 %v2219, 7
      %v2221 = vsub.s32 5, %v2220
      %v2222 = vrot.slane %v1267, %v2221
      %v2223 = vlaneseq
      %v2224 = vshrl.u32 %v2223, 7
      %v2225 = vsub.s32 6, %v2224
      %v2226 = vrot.slane %v1267, %v2225
      %v2227 = vlaneseq
      %v2228 = vshrl.u32 %v2227, 7
      %v2229 = vsub.s32 7, %v2228
      %v2230 = vrot.slane %v1267, %v2229
      %v2231 = vlaneseq
      %v2232 = vshrl.u32 %v2231, 7
      %v2233 = vsub.s32 0, %v2232
      %v2234 = vrot.slane %v1268, %v2233
      %v2235 = vlaneseq
      %v2236 = vshrl.u32 %v2235, 7
      %v2237 = vsub.s32 1, %v2236
      %v2238 = vrot.slane %v1268, %v2237
      %v2239 = vlaneseq
      %v2240 = vshrl.u32 %v2239, 7
      %v2241 = vsub.s32 2, %v2240
      %v2242 = vrot.slane %v1268, %v2241
      %v2243 = vlaneseq
      %v2244 = vshrl.u32 %v2243, 7
      %v2245 = vsub.s32 3, %v2244
      %v2246 = vrot.slane %v1268, %v2245
      %v2247 = vlaneseq
      %v2248 = vshrl.u32 %v2247, 7
      %v2249 = vsub.s32 4, %v2248
      %v2250 = vrot.slane %v1268, %v2249
      %v2251 = vlaneseq
      %v2252 = vshrl.u32 %v2251, 7
      %v2253 = vsub.s32 5, %v2252
      %v2254 = vrot.slane %v1268, %v2253
      %v2255 = vlaneseq
      %v2256 = vshrl.u32 %v2255, 7
      %v2257 = vsub.s32 6, %v2256
      %v2258 = vrot.slane %v1268, %v2257
      %v2259 = vlaneseq
      %v2260 = vshrl.u32 %v2259, 7
      %v2261 = vsub.s32 7, %v2260
      %v2262 = vrot.slane %v1268, %v2261
      %v2263 = vlaneseq
      %v2264 = vshrl.u32 %v2263, 7
      %v2265 = vsub.s32 0, %v2264
      %v2266 = vrot.slane %v1269, %v2265
      %v2267 = vlaneseq
      %v2268 = vshrl.u32 %v2267, 7
      %v2269 = vsub.s32 1, %v2268
      %v2270 = vrot.slane %v1269, %v2269
      %v2271 = vlaneseq
      %v2272 = vshrl.u32 %v2271, 7
      %v2273 = vsub.s32 2, %v2272
      %v2274 = vrot.slane %v1269, %v2273
      %v2275 = vlaneseq
      %v2276 = vshrl.u32 %v2275, 7
      %v2277 = vsub.s32 3, %v2276
      %v2278 = vrot.slane %v1269, %v2277
      %v2279 = vlaneseq
      %v2280 = vshrl.u32 %v2279, 7
      %v2281 = vsub.s32 4, %v2280
      %v2282 = vrot.slane %v1269, %v2281
      %v2283 = vlaneseq
      %v2284 = vshrl.u32 %v2283, 7
      %v2285 = vsub.s32 5, %v2284
      %v2286 = vrot.slane %v1269, %v2285
      %v2287 = vlaneseq
      %v2288 = vshrl.u32 %v2287, 7
      %v2289 = vsub.s32 6, %v2288
      %v2290 = vrot.slane %v1269, %v2289
      %v2291 = vlaneseq
      %v2292 = vshrl.u32 %v2291, 7
      %v2293 = vsub.s32 7, %v2292
      %v2294 = vrot.slane %v1269, %v2293
      %v2295 = vlaneseq
      %v2296 = vshrl.u32 %v2295, 7
      %v2297 = vsub.s32 0, %v2296
      %v2298 = vrot.slane %v1270, %v2297
      %v2299 = vlaneseq
      %v2300 = vshrl.u32 %v2299, 7
      %v2301 = vsub.s32 1, %v2300
      %v2302 = vrot.slane %v1270, %v2301
      %v2303 = vlaneseq
      %v2304 = vshrl.u32 %v2303, 7
      %v2305 = vsub.s32 2, %v2304
      %v2306 = vrot.slane %v1270, %v2305
      %v2307 = vlaneseq
      %v2308 = vshrl.u32 %v2307, 7
      %v2309 = vsub.s32 3, %v2308
      %v2310 = vrot.slane %v1270, %v2309
      %v2311 = vlaneseq
      %v2312 = vshrl.u32 %v2311, 7
      %v2313 = vsub.s32 4, %v2312
      %v2314 = vrot.slane %v1270, %v2313
      %v2315 = vlaneseq
      %v2316 = vshrl.u32 %v2315, 7
      %v2317 = vsub.s32 5, %v2316
      %v2318 = vrot.slane %v1270, %v2317
      %v2319 = vlaneseq
      %v2320 = vshrl.u32 %v2319, 7
      %v2321 = vsub.s32 6, %v2320
      %v2322 = vrot.slane %v1270, %v2321
      %v2323 = vlaneseq
      %v2324 = vshrl.u32 %v2323, 7
      %v2325 = vsub.s32 7, %v2324
      %v2326 = vrot.slane %v1270, %v2325
      %v2327 = vcombine.low %v1306, %v1310
      %v2328 = vcombine.low %v1314, %v1318
      %v2329 = vcombine.low %v1322, %v1326
      %v2330 = vcombine.low %v1330, %v1334
      %v2332 = vunpack.c.l.s4 1966171168
      %v2333 = vunpack.c.0.s8 %v2332
      %v2334 = vlaneseq
      %v2335 = vshrl.u32 %v2334, 7
      %v2336 = vsub.s32 %v2333, %v2335
      %v2337 = vrot.slane %v2327, %v2336
      %v2339 = vunpack.c.l.s4 1966171168
      %v2340 = vunpack.c.0.s8 %v2339
      %v2341 = vlaneseq
      %v2342 = vshrl.u32 %v2341, 7
      %v2343 = vsub.s32 %v2340, %v2342
      %v2344 = vrot.slane %v2328, %v2343
      %v2346 = vunpack.c.l.s4 1966171168
      %v2347 = vunpack.c.0.s8 %v2346
      %v2348 = vlaneseq
      %v2349 = vshrl.u32 %v2348, 7
      %v2350 = vsub.s32 %v2347, %v2349
      %v2351 = vrot.slane %v2329, %v2350
      %v2353 = vunpack.c.l.s4 1966171168
      %v2354 = vunpack.c.0.s8 %v2353
      %v2355 = vlaneseq
      %v2356 = vshrl.u32 %v2355, 7
      %v2357 = vsub.s32 %v2354, %v2356
      %v2358 = vrot.slane %v2330, %v2357
      %v2359 = vcombine.low %v2337, %v2344
      %v2360 = vcombine.low %v2351, %v2358
      %v2362 = vunpack.c.l.s4 1966171168
      %v2363 = vunpack.c.0.s8 %v2362
      %v2364 = vlaneseq
      %v2365 = vshrl.u32 %v2364, 7
      %v2366 = vsub.s32 %v2363, %v2365
      %v2367 = vrot.slane %v2359, %v2366
      %v2369 = vunpack.c.l.s4 1966171168
      %v2370 = vunpack.c.0.s8 %v2369
      %v2371 = vlaneseq
      %v2372 = vshrl.u32 %v2371, 7
      %v2373 = vsub.s32 %v2370, %v2372
      %v2374 = vrot.slane %v2360, %v2373
      %v2375 = vcombine.low %v2367, %v2374
      %v2376 = vcombine.low %v1338, %v1342
      %v2377 = vcombine.low %v1346, %v1350
      %v2378 = vcombine.low %v1354, %v1358
      %v2379 = vcombine.low %v1362, %v1366
      %v2381 = vunpack.c.l.s4 1966171168
      %v2382 = vunpack.c.0.s8 %v2381
      %v2383 = vlaneseq
      %v2384 = vshrl.u32 %v2383, 7
      %v2385 = vsub.s32 %v2382, %v2384
      %v2386 = vrot.slane %v2376, %v2385
      %v2388 = vunpack.c.l.s4 1966171168
      %v2389 = vunpack.c.0.s8 %v2388
      %v2390 = vlaneseq
      %v2391 = vshrl.u32 %v2390, 7
      %v2392 = vsub.s32 %v2389, %v2391
      %v2393 = vrot.slane %v2377, %v2392
      %v2395 = vunpack.c.l.s4 1966171168
      %v2396 = vunpack.c.0.s8 %v2395
      %v2397 = vlaneseq
      %v2398 = vshrl.u32 %v2397, 7
      %v2399 = vsub.s32 %v2396, %v2398
      %v2400 = vrot.slane %v2378, %v2399
      %v2402 = vunpack.c.l.s4 1966171168
      %v2403 = vunpack.c.0.s8 %v2402
      %v2404 = vlaneseq
      %v2405 = vshrl.u32 %v2404, 7
      %v2406 = vsub.s32 %v2403, %v2405
      %v2407 = vrot.slane %v2379, %v2406
      %v2408 = vcombine.low %v2386, %v2393
      %v2409 = vcombine.low %v2400, %v2407
      %v2411 = vunpack.c.l.s4 1966171168
      %v2412 = vunpack.c.0.s8 %v2411
      %v2413 = vlaneseq
      %v2414 = vshrl.u32 %v2413, 7
      %v2415 = vsub.s32 %v2412, %v2414
      %v2416 = vrot.slane %v2408, %v2415
      %v2418 = vunpack.c.l.s4 1966171168
      %v2419 = vunpack.c.0.s8 %v2418
      %v2420 = vlaneseq
      %v2421 = vshrl.u32 %v2420, 7
      %v2422 = vsub.s32 %v2419, %v2421
      %v2423 = vrot.slane %v2409, %v2422
      %v2424 = vcombine.low %v2416, %v2423
      %v2425 = vcombine.low %v1370, %v1374
      %v2426 = vcombine.low %v1378, %v1382
      %v2427 = vcombine.low %v1386, %v1390
      %v2428 = vcombine.low %v1394, %v1398
      %v2430 = vunpack.c.l.s4 1966171168
      %v2431 = vunpack.c.0.s8 %v2430
      %v2432 = vlaneseq
      %v2433 = vshrl.u32 %v2432, 7
      %v2434 = vsub.s32 %v2431, %v2433
      %v2435 = vrot.slane %v2425, %v2434
      %v2437 = vunpack.c.l.s4 1966171168
      %v2438 = vunpack.c.0.s8 %v2437
      %v2439 = vlaneseq
      %v2440 = vshrl.u32 %v2439, 7
      %v2441 = vsub.s32 %v2438, %v2440
      %v2442 = vrot.slane %v2426, %v2441
      %v2444 = vunpack.c.l.s4 1966171168
      %v2445 = vunpack.c.0.s8 %v2444
      %v2446 = vlaneseq
      %v2447 = vshrl.u32 %v2446, 7
      %v2448 = vsub.s32 %v2445, %v2447
      %v2449 = vrot.slane %v2427, %v2448
      %v2451 = vunpack.c.l.s4 1966171168
      %v2452 = vunpack.c.0.s8 %v2451
      %v2453 = vlaneseq
      %v2454 = vshrl.u32 %v2453, 7
      %v2455 = vsub.s32 %v2452, %v2454
      %v2456 = vrot.slane %v2428, %v2455
      %v2457 = vcombine.low %v2435, %v2442
      %v2458 = vcombine.low %v2449, %v2456
      %v2460 = vunpack.c.l.s4 1966171168
      %v2461 = vunpack.c.0.s8 %v2460
      %v2462 = vlaneseq
      %v2463 = vshrl.u32 %v2462, 7
      %v2464 = vsub.s32 %v2461, %v2463
      %v2465 = vrot.slane %v2457, %v2464
      %v2467 = vunpack.c.l.s4 1966171168
      %v2468 = vunpack.c.0.s8 %v2467
      %v2469 = vlaneseq
      %v2470 = vshrl.u32 %v2469, 7
      %v2471 = vsub.s32 %v2468, %v2470
      %v2472 = vrot.slane %v2458, %v2471
      %v2473 = vcombine.low %v2465, %v2472
      %v2474 = vcombine.low %v1402, %v1406
      %v2475 = vcombine.low %v1410, %v1414
      %v2476 = vcombine.low %v1418, %v1422
      %v2477 = vcombine.low %v1426, %v1430
      %v2479 = vunpack.c.l.s4 1966171168
      %v2480 = vunpack.c.0.s8 %v2479
      %v2481 = vlaneseq
      %v2482 = vshrl.u32 %v2481, 7
      %v2483 = vsub.s32 %v2480, %v2482
      %v2484 = vrot.slane %v2474, %v2483
      %v2486 = vunpack.c.l.s4 1966171168
      %v2487 = vunpack.c.0.s8 %v2486
      %v2488 = vlaneseq
      %v2489 = vshrl.u32 %v2488, 7
      %v2490 = vsub.s32 %v2487, %v2489
      %v2491 = vrot.slane %v2475, %v2490
      %v2493 = vunpack.c.l.s4 1966171168
      %v2494 = vunpack.c.0.s8 %v2493
      %v2495 = vlaneseq
      %v2496 = vshrl.u32 %v2495, 7
      %v2497 = vsub.s32 %v2494, %v2496
      %v2498 = vrot.slane %v2476, %v2497
      %v2500 = vunpack.c.l.s4 1966171168
      %v2501 = vunpack.c.0.s8 %v2500
      %v2502 = vlaneseq
      %v2503 = vshrl.u32 %v2502, 7
      %v2504 = vsub.s32 %v2501, %v2503
      %v2505 = vrot.slane %v2477, %v2504
      %v2506 = vcombine.low %v2484, %v2491
      %v2507 = vcombine.low %v2498, %v2505
      %v2509 = vunpack.c.l.s4 1966171168
      %v2510 = vunpack.c.0.s8 %v2509
      %v2511 = vlaneseq
      %v2512 = vshrl.u32 %v2511, 7
      %v2513 = vsub.s32 %v2510, %v2512
      %v2514 = vrot.slane %v2506, %v2513
      %v2516 = vunpack.c.l.s4 1966171168
      %v2517 = vunpack.c.0.s8 %v2516
      %v2518 = vlaneseq
      %v2519 = vshrl.u32 %v2518, 7
      %v2520 = vsub.s32 %v2517, %v2519
      %v2521 = vrot.slane %v2507, %v2520
      %v2522 = vcombine.low %v2514, %v2521
      %v2523 = vcombine.low %v1434, %v1438
      %v2524 = vcombine.low %v1442, %v1446
      %v2525 = vcombine.low %v1450, %v1454
      %v2526 = vcombine.low %v1458, %v1462
      %v2528 = vunpack.c.l.s4 1966171168
      %v2529 = vunpack.c.0.s8 %v2528
      %v2530 = vlaneseq
      %v2531 = vshrl.u32 %v2530, 7
      %v2532 = vsub.s32 %v2529, %v2531
      %v2533 = vrot.slane %v2523, %v2532
      %v2535 = vunpack.c.l.s4 1966171168
      %v2536 = vunpack.c.0.s8 %v2535
      %v2537 = vlaneseq
      %v2538 = vshrl.u32 %v2537, 7
      %v2539 = vsub.s32 %v2536, %v2538
      %v2540 = vrot.slane %v2524, %v2539
      %v2542 = vunpack.c.l.s4 1966171168
      %v2543 = vunpack.c.0.s8 %v2542
      %v2544 = vlaneseq
      %v2545 = vshrl.u32 %v2544, 7
      %v2546 = vsub.s32 %v2543, %v2545
      %v2547 = vrot.slane %v2525, %v2546
      %v2549 = vunpack.c.l.s4 1966171168
      %v2550 = vunpack.c.0.s8 %v2549
      %v2551 = vlaneseq
      %v2552 = vshrl.u32 %v2551, 7
      %v2553 = vsub.s32 %v2550, %v2552
      %v2554 = vrot.slane %v2526, %v2553
      %v2555 = vcombine.low %v2533, %v2540
      %v2556 = vcombine.low %v2547, %v2554
      %v2558 = vunpack.c.l.s4 1966171168
      %v2559 = vunpack.c.0.s8 %v2558
      %v2560 = vlaneseq
      %v2561 = vshrl.u32 %v2560, 7
      %v2562 = vsub.s32 %v2559, %v2561
      %v2563 = vrot.slane %v2555, %v2562
      %v2565 = vunpack.c.l.s4 1966171168
      %v2566 = vunpack.c.0.s8 %v2565
      %v2567 = vlaneseq
      %v2568 = vshrl.u32 %v2567, 7
      %v2569 = vsub.s32 %v2566, %v2568
      %v2570 = vrot.slane %v2556, %v2569
      %v2571 = vcombine.low %v2563, %v2570
      %v2572 = vcombine.low %v1466, %v1470
      %v2573 = vcombine.low %v1474, %v1478
      %v2574 = vcombine.low %v1482, %v1486
      %v2575 = vcombine.low %v1490, %v1494
      %v2577 = vunpack.c.l.s4 1966171168
      %v2578 = vunpack.c.0.s8 %v2577
      %v2579 = vlaneseq
      %v2580 = vshrl.u32 %v2579, 7
      %v2581 = vsub.s32 %v2578, %v2580
      %v2582 = vrot.slane %v2572, %v2581
      %v2584 = vunpack.c.l.s4 1966171168
      %v2585 = vunpack.c.0.s8 %v2584
      %v2586 = vlaneseq
      %v2587 = vshrl.u32 %v2586, 7
      %v2588 = vsub.s32 %v2585, %v2587
      %v2589 = vrot.slane %v2573, %v2588
      %v2591 = vunpack.c.l.s4 1966171168
      %v2592 = vunpack.c.0.s8 %v2591
      %v2593 = vlaneseq
      %v2594 = vshrl.u32 %v2593, 7
      %v2595 = vsub.s32 %v2592, %v2594
      %v2596 = vrot.slane %v2574, %v2595
      %v2598 = vunpack.c.l.s4 1966171168
      %v2599 = vunpack.c.0.s8 %v2598
      %v2600 = vlaneseq
      %v2601 = vshrl.u32 %v2600, 7
      %v2602 = vsub.s32 %v2599, %v2601
      %v2603 = vrot.slane %v2575, %v2602
      %v2604 = vcombine.low %v2582, %v2589
      %v2605 = vcombine.low %v2596, %v2603
      %v2607 = vunpack.c.l.s4 1966171168
      %v2608 = vunpack.c.0.s8 %v2607
      %v2609 = vlaneseq
      %v2610 = vshrl.u32 %v2609, 7
      %v2611 = vsub.s32 %v2608, %v2610
      %v2612 = vrot.slane %v2604, %v2611
      %v2614 = vunpack.c.l.s4 1966171168
      %v2615 = vunpack.c.0.s8 %v2614
      %v2616 = vlaneseq
      %v2617 = vshrl.u32 %v2616, 7
      %v2618 = vsub.s32 %v2615, %v2617
      %v2619 = vrot.slane %v2605, %v2618
      %v2620 = vcombine.low %v2612, %v2619
      %v2621 = vcombine.low %v1498, %v1502
      %v2622 = vcombine.low %v1506, %v1510
      %v2623 = vcombine.low %v1514, %v1518
      %v2624 = vcombine.low %v1522, %v1526
      %v2626 = vunpack.c.l.s4 1966171168
      %v2627 = vunpack.c.0.s8 %v2626
      %v2628 = vlaneseq
      %v2629 = vshrl.u32 %v2628, 7
      %v2630 = vsub.s32 %v2627, %v2629
      %v2631 = vrot.slane %v2621, %v2630
      %v2633 = vunpack.c.l.s4 1966171168
      %v2634 = vunpack.c.0.s8 %v2633
      %v2635 = vlaneseq
      %v2636 = vshrl.u32 %v2635, 7
      %v2637 = vsub.s32 %v2634, %v2636
      %v2638 = vrot.slane %v2622, %v2637
      %v2640 = vunpack.c.l.s4 1966171168
      %v2641 = vunpack.c.0.s8 %v2640
      %v2642 = vlaneseq
      %v2643 = vshrl.u32 %v2642, 7
      %v2644 = vsub.s32 %v2641, %v2643
      %v2645 = vrot.slane %v2623, %v2644
      %v2647 = vunpack.c.l.s4 1966171168
      %v2648 = vunpack.c.0.s8 %v2647
      %v2649 = vlaneseq
      %v2650 = vshrl.u32 %v2649, 7
      %v2651 = vsub.s32 %v2648, %v2650
      %v2652 = vrot.slane %v2624, %v2651
      %v2653 = vcombine.low %v2631, %v2638
      %v2654 = vcombine.low %v2645, %v2652
      %v2656 = vunpack.c.l.s4 1966171168
      %v2657 = vunpack.c.0.s8 %v2656
      %v2658 = vlaneseq
      %v2659 = vshrl.u32 %v2658, 7
      %v2660 = vsub.s32 %v2657, %v2659
      %v2661 = vrot.slane %v2653, %v2660
      %v2663 = vunpack.c.l.s4 1966171168
      %v2664 = vunpack.c.0.s8 %v2663
      %v2665 = vlaneseq
      %v2666 = vshrl.u32 %v2665, 7
      %v2667 = vsub.s32 %v2664, %v2666
      %v2668 = vrot.slane %v2654, %v2667
      %v2669 = vcombine.low %v2661, %v2668
      %v2670 = vcombine.low %v1530, %v1534
      %v2671 = vcombine.low %v1538, %v1542
      %v2672 = vcombine.low %v1546, %v1550
      %v2673 = vcombine.low %v1554, %v1558
      %v2675 = vunpack.c.l.s4 1966171168
      %v2676 = vunpack.c.0.s8 %v2675
      %v2677 = vlaneseq
      %v2678 = vshrl.u32 %v2677, 7
      %v2679 = vsub.s32 %v2676, %v2678
      %v2680 = vrot.slane %v2670, %v2679
      %v2682 = vunpack.c.l.s4 1966171168
      %v2683 = vunpack.c.0.s8 %v2682
      %v2684 = vlaneseq
      %v2685 = vshrl.u32 %v2684, 7
      %v2686 = vsub.s32 %v2683, %v2685
      %v2687 = vrot.slane %v2671, %v2686
      %v2689 = vunpack.c.l.s4 1966171168
      %v2690 = vunpack.c.0.s8 %v2689
      %v2691 = vlaneseq
      %v2692 = vshrl.u32 %v2691, 7
      %v2693 = vsub.s32 %v2690, %v2692
      %v2694 = vrot.slane %v2672, %v2693
      %v2696 = vunpack.c.l.s4 1966171168
      %v2697 = vunpack.c.0.s8 %v2696
      %v2698 = vlaneseq
      %v2699 = vshrl.u32 %v2698, 7
      %v2700 = vsub.s32 %v2697, %v2699
      %v2701 = vrot.slane %v2673, %v2700
      %v2702 = vcombine.low %v2680, %v2687
      %v2703 = vcombine.low %v2694, %v2701
      %v2705 = vunpack.c.l.s4 1966171168
      %v2706 = vunpack.c.0.s8 %v2705
      %v2707 = vlaneseq
      %v2708 = vshrl.u32 %v2707, 7
      %v2709 = vsub.s32 %v2706, %v2708
      %v2710 = vrot.slane %v2702, %v2709
      %v2712 = vunpack.c.l.s4 1966171168
      %v2713 = vunpack.c.0.s8 %v2712
      %v2714 = vlaneseq
      %v2715 = vshrl.u32 %v2714, 7
      %v2716 = vsub.s32 %v2713, %v2715
      %v2717 = vrot.slane %v2703, %v2716
      %v2718 = vcombine.low %v2710, %v2717
      %v2719 = vcombine.low %v1562, %v1566
      %v2720 = vcombine.low %v1570, %v1574
      %v2721 = vcombine.low %v1578, %v1582
      %v2722 = vcombine.low %v1586, %v1590
      %v2724 = vunpack.c.l.s4 1966171168
      %v2725 = vunpack.c.0.s8 %v2724
      %v2726 = vlaneseq
      %v2727 = vshrl.u32 %v2726, 7
      %v2728 = vsub.s32 %v2725, %v2727
      %v2729 = vrot.slane %v2719, %v2728
      %v2731 = vunpack.c.l.s4 1966171168
      %v2732 = vunpack.c.0.s8 %v2731
      %v2733 = vlaneseq
      %v2734 = vshrl.u32 %v2733, 7
      %v2735 = vsub.s32 %v2732, %v2734
      %v2736 = vrot.slane %v2720, %v2735
      %v2738 = vunpack.c.l.s4 1966171168
      %v2739 = vunpack.c.0.s8 %v2738
      %v2740 = vlaneseq
      %v2741 = vshrl.u32 %v2740, 7
      %v2742 = vsub.s32 %v2739, %v2741
      %v2743 = vrot.slane %v2721, %v2742
      %v2745 = vunpack.c.l.s4 1966171168
      %v2746 = vunpack.c.0.s8 %v2745
      %v2747 = vlaneseq
      %v2748 = vshrl.u32 %v2747, 7
      %v2749 = vsub.s32 %v2746, %v2748
      %v2750 = vrot.slane %v2722, %v2749
      %v2751 = vcombine.low %v2729, %v2736
      %v2752 = vcombine.low %v2743, %v2750
      %v2754 = vunpack.c.l.s4 1966171168
      %v2755 = vunpack.c.0.s8 %v2754
      %v2756 = vlaneseq
      %v2757 = vshrl.u32 %v2756, 7
      %v2758 = vsub.s32 %v2755, %v2757
      %v2759 = vrot.slane %v2751, %v2758
      %v2761 = vunpack.c.l.s4 1966171168
      %v2762 = vunpack.c.0.s8 %v2761
      %v2763 = vlaneseq
      %v2764 = vshrl.u32 %v2763, 7
      %v2765 = vsub.s32 %v2762, %v2764
      %v2766 = vrot.slane %v2752, %v2765
      %v2767 = vcombine.low %v2759, %v2766
      %v2768 = vcombine.low %v1594, %v1598
      %v2769 = vcombine.low %v1602, %v1606
      %v2770 = vcombine.low %v1610, %v1614
      %v2771 = vcombine.low %v1618, %v1622
      %v2773 = vunpack.c.l.s4 1966171168
      %v2774 = vunpack.c.0.s8 %v2773
      %v2775 = vlaneseq
      %v2776 = vshrl.u32 %v2775, 7
      %v2777 = vsub.s32 %v2774, %v2776
      %v2778 = vrot.slane %v2768, %v2777
      %v2780 = vunpack.c.l.s4 1966171168
      %v2781 = vunpack.c.0.s8 %v2780
      %v2782 = vlaneseq
      %v2783 = vshrl.u32 %v2782, 7
      %v2784 = vsub.s32 %v2781, %v2783
      %v2785 = vrot.slane %v2769, %v2784
      %v2787 = vunpack.c.l.s4 1966171168
      %v2788 = vunpack.c.0.s8 %v2787
      %v2789 = vlaneseq
      %v2790 = vshrl.u32 %v2789, 7
      %v2791 = vsub.s32 %v2788, %v2790
      %v2792 = vrot.slane %v2770, %v2791
      %v2794 = vunpack.c.l.s4 1966171168
      %v2795 = vunpack.c.0.s8 %v2794
      %v2796 = vlaneseq
      %v2797 = vshrl.u32 %v2796, 7
      %v2798 = vsub.s32 %v2795, %v2797
      %v2799 = vrot.slane %v2771, %v2798
      %v2800 = vcombine.low %v2778, %v2785
      %v2801 = vcombine.low %v2792, %v2799
      %v2803 = vunpack.c.l.s4 1966171168
      %v2804 = vunpack.c.0.s8 %v2803
      %v2805 = vlaneseq
      %v2806 = vshrl.u32 %v2805, 7
      %v2807 = vsub.s32 %v2804, %v2806
      %v2808 = vrot.slane %v2800, %v2807
      %v2810 = vunpack.c.l.s4 1966171168
      %v2811 = vunpack.c.0.s8 %v2810
      %v2812 = vlaneseq
      %v2813 = vshrl.u32 %v2812, 7
      %v2814 = vsub.s32 %v2811, %v2813
      %v2815 = vrot.slane %v2801, %v2814
      %v2816 = vcombine.low %v2808, %v2815
      %v2817 = vcombine.low %v1626, %v1630
      %v2818 = vcombine.low %v1634, %v1638
      %v2819 = vcombine.low %v1642, %v1646
      %v2820 = vcombine.low %v1650, %v1654
      %v2822 = vunpack.c.l.s4 1966171168
      %v2823 = vunpack.c.0.s8 %v2822
      %v2824 = vlaneseq
      %v2825 = vshrl.u32 %v2824, 7
      %v2826 = vsub.s32 %v2823, %v2825
      %v2827 = vrot.slane %v2817, %v2826
      %v2829 = vunpack.c.l.s4 1966171168
      %v2830 = vunpack.c.0.s8 %v2829
      %v2831 = vlaneseq
      %v2832 = vshrl.u32 %v2831, 7
      %v2833 = vsub.s32 %v2830, %v2832
      %v2834 = vrot.slane %v2818, %v2833
      %v2836 = vunpack.c.l.s4 1966171168
      %v2837 = vunpack.c.0.s8 %v2836
      %v2838 = vlaneseq
      %v2839 = vshrl.u32 %v2838, 7
      %v2840 = vsub.s32 %v2837, %v2839
      %v2841 = vrot.slane %v2819, %v2840
      %v2843 = vunpack.c.l.s4 1966171168
      %v2844 = vunpack.c.0.s8 %v2843
      %v2845 = vlaneseq
      %v2846 = vshrl.u32 %v2845, 7
      %v2847 = vsub.s32 %v2844, %v2846
      %v2848 = vrot.slane %v2820, %v2847
      %v2849 = vcombine.low %v2827, %v2834
      %v2850 = vcombine.low %v2841, %v2848
      %v2852 = vunpack.c.l.s4 1966171168
      %v2853 = vunpack.c.0.s8 %v2852
      %v2854 = vlaneseq
      %v2855 = vshrl.u32 %v2854, 7
      %v2856 = vsub.s32 %v2853, %v2855
      %v2857 = vrot.slane %v2849, %v2856
      %v2859 = vunpack.c.l.s4 1966171168
      %v2860 = vunpack.c.0.s8 %v2859
      %v2861 = vlaneseq
      %v2862 = vshrl.u32 %v2861, 7
      %v2863 = vsub.s32 %v2860, %v2862
      %v2864 = vrot.slane %v2850, %v2863
      %v2865 = vcombine.low %v2857, %v2864
      %v2866 = vcombine.low %v1658, %v1662
      %v2867 = vcombine.low %v1666, %v1670
      %v2868 = vcombine.low %v1674, %v1678
      %v2869 = vcombine.low %v1682, %v1686
      %v2871 = vunpack.c.l.s4 1966171168
      %v2872 = vunpack.c.0.s8 %v2871
      %v2873 = vlaneseq
      %v2874 = vshrl.u32 %v2873, 7
      %v2875 = vsub.s32 %v2872, %v2874
      %v2876 = vrot.slane %v2866, %v2875
      %v2878 = vunpack.c.l.s4 1966171168
      %v2879 = vunpack.c.0.s8 %v2878
      %v2880 = vlaneseq
      %v2881 = vshrl.u32 %v2880, 7
      %v2882 = vsub.s32 %v2879, %v2881
      %v2883 = vrot.slane %v2867, %v2882
      %v2885 = vunpack.c.l.s4 1966171168
      %v2886 = vunpack.c.0.s8 %v2885
      %v2887 = vlaneseq
      %v2888 = vshrl.u32 %v2887, 7
      %v2889 = vsub.s32 %v2886, %v2888
      %v2890 = vrot.slane %v2868, %v2889
      %v2892 = vunpack.c.l.s4 1966171168
      %v2893 = vunpack.c.0.s8 %v2892
      %v2894 = vlaneseq
      %v2895 = vshrl.u32 %v2894, 7
      %v2896 = vsub.s32 %v2893, %v2895
      %v2897 = vrot.slane %v2869, %v2896
      %v2898 = vcombine.low %v2876, %v2883
      %v2899 = vcombine.low %v2890, %v2897
      %v2901 = vunpack.c.l.s4 1966171168
      %v2902 = vunpack.c.0.s8 %v2901
      %v2903 = vlaneseq
      %v2904 = vshrl.u32 %v2903, 7
      %v2905 = vsub.s32 %v2902, %v2904
      %v2906 = vrot.slane %v2898, %v2905
      %v2908 = vunpack.c.l.s4 1966171168
      %v2909 = vunpack.c.0.s8 %v2908
      %v2910 = vlaneseq
      %v2911 = vshrl.u32 %v2910, 7
      %v2912 = vsub.s32 %v2909, %v2911
      %v2913 = vrot.slane %v2899, %v2912
      %v2914 = vcombine.low %v2906, %v2913
      %v2915 = vcombine.low %v1690, %v1694
      %v2916 = vcombine.low %v1698, %v1702
      %v2917 = vcombine.low %v1706, %v1710
      %v2918 = vcombine.low %v1714, %v1718
      %v2920 = vunpack.c.l.s4 1966171168
      %v2921 = vunpack.c.0.s8 %v2920
      %v2922 = vlaneseq
      %v2923 = vshrl.u32 %v2922, 7
      %v2924 = vsub.s32 %v2921, %v2923
      %v2925 = vrot.slane %v2915, %v2924
      %v2927 = vunpack.c.l.s4 1966171168
      %v2928 = vunpack.c.0.s8 %v2927
      %v2929 = vlaneseq
      %v2930 = vshrl.u32 %v2929, 7
      %v2931 = vsub.s32 %v2928, %v2930
      %v2932 = vrot.slane %v2916, %v2931
      %v2934 = vunpack.c.l.s4 1966171168
      %v2935 = vunpack.c.0.s8 %v2934
      %v2936 = vlaneseq
      %v2937 = vshrl.u32 %v2936, 7
      %v2938 = vsub.s32 %v2935, %v2937
      %v2939 = vrot.slane %v2917, %v2938
      %v2941 = vunpack.c.l.s4 1966171168
      %v2942 = vunpack.c.0.s8 %v2941
      %v2943 = vlaneseq
      %v2944 = vshrl.u32 %v2943, 7
      %v2945 = vsub.s32 %v2942, %v2944
      %v2946 = vrot.slane %v2918, %v2945
      %v2947 = vcombine.low %v2925, %v2932
      %v2948 = vcombine.low %v2939, %v2946
      %v2950 = vunpack.c.l.s4 1966171168
      %v2951 = vunpack.c.0.s8 %v2950
      %v2952 = vlaneseq
      %v2953 = vshrl.u32 %v2952, 7
      %v2954 = vsub.s32 %v2951, %v2953
      %v2955 = vrot.slane %v2947, %v2954
      %v2957 = vunpack.c.l.s4 1966171168
      %v2958 = vunpack.c.0.s8 %v2957
      %v2959 = vlaneseq
      %v2960 = vshrl.u32 %v2959, 7
      %v2961 = vsub.s32 %v2958, %v2960
      %v2962 = vrot.slane %v2948, %v2961
      %v2963 = vcombine.low %v2955, %v2962
      %v2964 = vcombine.low %v1722, %v1726
      %v2965 = vcombine.low %v1730, %v1734
      %v2966 = vcombine.low %v1738, %v1742
      %v2967 = vcombine.low %v1746, %v1750
      %v2969 = vunpack.c.l.s4 1966171168
      %v2970 = vunpack.c.0.s8 %v2969
      %v2971 = vlaneseq
      %v2972 = vshrl.u32 %v2971, 7
      %v2973 = vsub.s32 %v2970, %v2972
      %v2974 = vrot.slane %v2964, %v2973
      %v2976 = vunpack.c.l.s4 1966171168
      %v2977 = vunpack.c.0.s8 %v2976
      %v2978 = vlaneseq
      %v2979 = vshrl.u32 %v2978, 7
      %v2980 = vsub.s32 %v2977, %v2979
      %v2981 = vrot.slane %v2965, %v2980
      %v2983 = vunpack.c.l.s4 1966171168
      %v2984 = vunpack.c.0.s8 %v2983
      %v2985 = vlaneseq
      %v2986 = vshrl.u32 %v2985, 7
      %v2987 = vsub.s32 %v2984, %v2986
      %v2988 = vrot.slane %v2966, %v2987
      %v2990 = vunpack.c.l.s4 1966171168
      %v2991 = vunpack.c.0.s8 %v2990
      %v2992 = vlaneseq
      %v2993 = vshrl.u32 %v2992, 7
      %v2994 = vsub.s32 %v2991, %v2993
      %v2995 = vrot.slane %v2967, %v2994
      %v2996 = vcombine.low %v2974, %v2981
      %v2997 = vcombine.low %v2988, %v2995
      %v2999 = vunpack.c.l.s4 1966171168
      %v3000 = vunpack.c.0.s8 %v2999
      %v3001 = vlaneseq
      %v3002 = vshrl.u32 %v3001, 7
      %v3003 = vsub.s32 %v3000, %v3002
      %v3004 = vrot.slane %v2996, %v3003
      %v3006 = vunpack.c.l.s4 1966171168
      %v3007 = vunpack.c.0.s8 %v3006
      %v3008 = vlaneseq
      %v3009 = vshrl.u32 %v3008, 7
      %v3010 = vsub.s32 %v3007, %v3009
      %v3011 = vrot.slane %v2997, %v3010
      %v3012 = vcombine.low %v3004, %v3011
      %v3013 = vcombine.low %v1754, %v1758
      %v3014 = vcombine.low %v1762, %v1766
      %v3015 = vcombine.low %v1770, %v1774
      %v3016 = vcombine.low %v1778, %v1782
      %v3018 = vunpack.c.l.s4 1966171168
      %v3019 = vunpack.c.0.s8 %v3018
      %v3020 = vlaneseq
      %v3021 = vshrl.u32 %v3020, 7
      %v3022 = vsub.s32 %v3019, %v3021
      %v3023 = vrot.slane %v3013, %v3022
      %v3025 = vunpack.c.l.s4 1966171168
      %v3026 = vunpack.c.0.s8 %v3025
      %v3027 = vlaneseq
      %v3028 = vshrl.u32 %v3027, 7
      %v3029 = vsub.s32 %v3026, %v3028
      %v3030 = vrot.slane %v3014, %v3029
      %v3032 = vunpack.c.l.s4 1966171168
      %v3033 = vunpack.c.0.s8 %v3032
      %v3034 = vlaneseq
      %v3035 = vshrl.u32 %v3034, 7
      %v3036 = vsub.s32 %v3033, %v3035
      %v3037 = vrot.slane %v3015, %v3036
      %v3039 = vunpack.c.l.s4 1966171168
      %v3040 = vunpack.c.0.s8 %v3039
      %v3041 = vlaneseq
      %v3042 = vshrl.u32 %v3041, 7
      %v3043 = vsub.s32 %v3040, %v3042
      %v3044 = vrot.slane %v3016, %v3043
      %v3045 = vcombine.low %v3023, %v3030
      %v3046 = vcombine.low %v3037, %v3044
      %v3048 = vunpack.c.l.s4 1966171168
      %v3049 = vunpack.c.0.s8 %v3048
      %v3050 = vlaneseq
      %v3051 = vshrl.u32 %v3050, 7
      %v3052 = vsub.s32 %v3049, %v3051
      %v3053 = vrot.slane %v3045, %v3052
      %v3055 = vunpack.c.l.s4 1966171168
      %v3056 = vunpack.c.0.s8 %v3055
      %v3057 = vlaneseq
      %v3058 = vshrl.u32 %v3057, 7
      %v3059 = vsub.s32 %v3056, %v3058
      %v3060 = vrot.slane %v3046, %v3059
      %v3061 = vcombine.low %v3053, %v3060
      %v3062 = vcombine.low %v1786, %v1790
      %v3063 = vcombine.low %v1794, %v1798
      %v3064 = vcombine.low %v1802, %v1806
      %v3065 = vcombine.low %v1810, %v1814
      %v3067 = vunpack.c.l.s4 1966171168
      %v3068 = vunpack.c.0.s8 %v3067
      %v3069 = vlaneseq
      %v3070 = vshrl.u32 %v3069, 7
      %v3071 = vsub.s32 %v3068, %v3070
      %v3072 = vrot.slane %v3062, %v3071
      %v3074 = vunpack.c.l.s4 1966171168
      %v3075 = vunpack.c.0.s8 %v3074
      %v3076 = vlaneseq
      %v3077 = vshrl.u32 %v3076, 7
      %v3078 = vsub.s32 %v3075, %v3077
      %v3079 = vrot.slane %v3063, %v3078
      %v3081 = vunpack.c.l.s4 1966171168
      %v3082 = vunpack.c.0.s8 %v3081
      %v3083 = vlaneseq
      %v3084 = vshrl.u32 %v3083, 7
      %v3085 = vsub.s32 %v3082, %v3084
      %v3086 = vrot.slane %v3064, %v3085
      %v3088 = vunpack.c.l.s4 1966171168
      %v3089 = vunpack.c.0.s8 %v3088
      %v3090 = vlaneseq
      %v3091 = vshrl.u32 %v3090, 7
      %v3092 = vsub.s32 %v3089, %v3091
      %v3093 = vrot.slane %v3065, %v3092
      %v3094 = vcombine.low %v3072, %v3079
      %v3095 = vcombine.low %v3086, %v3093
      %v3097 = vunpack.c.l.s4 1966171168
      %v3098 = vunpack.c.0.s8 %v3097
      %v3099 = vlaneseq
      %v3100 = vshrl.u32 %v3099, 7
      %v3101 = vsub.s32 %v3098, %v3100
      %v3102 = vrot.slane %v3094, %v3101
      %v3104 = vunpack.c.l.s4 1966171168
      %v3105 = vunpack.c.0.s8 %v3104
      %v3106 = vlaneseq
      %v3107 = vshrl.u32 %v3106, 7
      %v3108 = vsub.s32 %v3105, %v3107
      %v3109 = vrot.slane %v3095, %v3108
      %v3110 = vcombine.low %v3102, %v3109
      %v3111 = vcombine.low %v1818, %v1822
      %v3112 = vcombine.low %v1826, %v1830
      %v3113 = vcombine.low %v1834, %v1838
      %v3114 = vcombine.low %v1842, %v1846
      %v3116 = vunpack.c.l.s4 1966171168
      %v3117 = vunpack.c.0.s8 %v3116
      %v3118 = vlaneseq
      %v3119 = vshrl.u32 %v3118, 7
      %v3120 = vsub.s32 %v3117, %v3119
      %v3121 = vrot.slane %v3111, %v3120
      %v3123 = vunpack.c.l.s4 1966171168
      %v3124 = vunpack.c.0.s8 %v3123
      %v3125 = vlaneseq
      %v3126 = vshrl.u32 %v3125, 7
      %v3127 = vsub.s32 %v3124, %v3126
      %v3128 = vrot.slane %v3112, %v3127
      %v3130 = vunpack.c.l.s4 1966171168
      %v3131 = vunpack.c.0.s8 %v3130
      %v3132 = vlaneseq
      %v3133 = vshrl.u32 %v3132, 7
      %v3134 = vsub.s32 %v3131, %v3133
      %v3135 = vrot.slane %v3113, %v3134
      %v3137 = vunpack.c.l.s4 1966171168
      %v3138 = vunpack.c.0.s8 %v3137
      %v3139 = vlaneseq
      %v3140 = vshrl.u32 %v3139, 7
      %v3141 = vsub.s32 %v3138, %v3140
      %v3142 = vrot.slane %v3114, %v3141
      %v3143 = vcombine.low %v3121, %v3128
      %v3144 = vcombine.low %v3135, %v3142
      %v3146 = vunpack.c.l.s4 1966171168
      %v3147 = vunpack.c.0.s8 %v3146
      %v3148 = vlaneseq
      %v3149 = vshrl.u32 %v3148, 7
      %v3150 = vsub.s32 %v3147, %v3149
      %v3151 = vrot.slane %v3143, %v3150
      %v3153 = vunpack.c.l.s4 1966171168
      %v3154 = vunpack.c.0.s8 %v3153
      %v3155 = vlaneseq
      %v3156 = vshrl.u32 %v3155, 7
      %v3157 = vsub.s32 %v3154, %v3156
      %v3158 = vrot.slane %v3144, %v3157
      %v3159 = vcombine.low %v3151, %v3158
      %v3160 = vcombine.low %v1850, %v1854
      %v3161 = vcombine.low %v1858, %v1862
      %v3162 = vcombine.low %v1866, %v1870
      %v3163 = vcombine.low %v1874, %v1878
      %v3165 = vunpack.c.l.s4 1966171168
      %v3166 = vunpack.c.0.s8 %v3165
      %v3167 = vlaneseq
      %v3168 = vshrl.u32 %v3167, 7
      %v3169 = vsub.s32 %v3166, %v3168
      %v3170 = vrot.slane %v3160, %v3169
      %v3172 = vunpack.c.l.s4 1966171168
      %v3173 = vunpack.c.0.s8 %v3172
      %v3174 = vlaneseq
      %v3175 = vshrl.u32 %v3174, 7
      %v3176 = vsub.s32 %v3173, %v3175
      %v3177 = vrot.slane %v3161, %v3176
      %v3179 = vunpack.c.l.s4 1966171168
      %v3180 = vunpack.c.0.s8 %v3179
      %v3181 = vlaneseq
      %v3182 = vshrl.u32 %v3181, 7
      %v3183 = vsub.s32 %v3180, %v3182
      %v3184 = vrot.slane %v3162, %v3183
      %v3186 = vunpack.c.l.s4 1966171168
      %v3187 = vunpack.c.0.s8 %v3186
      %v3188 = vlaneseq
      %v3189 = vshrl.u32 %v3188, 7
      %v3190 = vsub.s32 %v3187, %v3189
      %v3191 = vrot.slane %v3163, %v3190
      %v3192 = vcombine.low %v3170, %v3177
      %v3193 = vcombine.low %v3184, %v3191
      %v3195 = vunpack.c.l.s4 1966171168
      %v3196 = vunpack.c.0.s8 %v3195
      %v3197 = vlaneseq
      %v3198 = vshrl.u32 %v3197, 7
      %v3199 = vsub.s32 %v3196, %v3198
      %v3200 = vrot.slane %v3192, %v3199
      %v3202 = vunpack.c.l.s4 1966171168
      %v3203 = vunpack.c.0.s8 %v3202
      %v3204 = vlaneseq
      %v3205 = vshrl.u32 %v3204, 7
      %v3206 = vsub.s32 %v3203, %v3205
      %v3207 = vrot.slane %v3193, %v3206
      %v3208 = vcombine.low %v3200, %v3207
      %v3209 = vcombine.low %v1882, %v1886
      %v3210 = vcombine.low %v1890, %v1894
      %v3211 = vcombine.low %v1898, %v1902
      %v3212 = vcombine.low %v1906, %v1910
      %v3214 = vunpack.c.l.s4 1966171168
      %v3215 = vunpack.c.0.s8 %v3214
      %v3216 = vlaneseq
      %v3217 = vshrl.u32 %v3216, 7
      %v3218 = vsub.s32 %v3215, %v3217
      %v3219 = vrot.slane %v3209, %v3218
      %v3221 = vunpack.c.l.s4 1966171168
      %v3222 = vunpack.c.0.s8 %v3221
      %v3223 = vlaneseq
      %v3224 = vshrl.u32 %v3223, 7
      %v3225 = vsub.s32 %v3222, %v3224
      %v3226 = vrot.slane %v3210, %v3225
      %v3228 = vunpack.c.l.s4 1966171168
      %v3229 = vunpack.c.0.s8 %v3228
      %v3230 = vlaneseq
      %v3231 = vshrl.u32 %v3230, 7
      %v3232 = vsub.s32 %v3229, %v3231
      %v3233 = vrot.slane %v3211, %v3232
      %v3235 = vunpack.c.l.s4 1966171168
      %v3236 = vunpack.c.0.s8 %v3235
      %v3237 = vlaneseq
      %v3238 = vshrl.u32 %v3237, 7
      %v3239 = vsub.s32 %v3236, %v3238
      %v3240 = vrot.slane %v3212, %v3239
      %v3241 = vcombine.low %v3219, %v3226
      %v3242 = vcombine.low %v3233, %v3240
      %v3244 = vunpack.c.l.s4 1966171168
      %v3245 = vunpack.c.0.s8 %v3244
      %v3246 = vlaneseq
      %v3247 = vshrl.u32 %v3246, 7
      %v3248 = vsub.s32 %v3245, %v3247
      %v3249 = vrot.slane %v3241, %v3248
      %v3251 = vunpack.c.l.s4 1966171168
      %v3252 = vunpack.c.0.s8 %v3251
      %v3253 = vlaneseq
      %v3254 = vshrl.u32 %v3253, 7
      %v3255 = vsub.s32 %v3252, %v3254
      %v3256 = vrot.slane %v3242, %v3255
      %v3257 = vcombine.low %v3249, %v3256
      %v3258 = vcombine.low %v1914, %v1918
      %v3259 = vcombine.low %v1922, %v1926
      %v3260 = vcombine.low %v1930, %v1934
      %v3261 = vcombine.low %v1938, %v1942
      %v3263 = vunpack.c.l.s4 1966171168
      %v3264 = vunpack.c.0.s8 %v3263
      %v3265 = vlaneseq
      %v3266 = vshrl.u32 %v3265, 7
      %v3267 = vsub.s32 %v3264, %v3266
      %v3268 = vrot.slane %v3258, %v3267
      %v3270 = vunpack.c.l.s4 1966171168
      %v3271 = vunpack.c.0.s8 %v3270
      %v3272 = vlaneseq
      %v3273 = vshrl.u32 %v3272, 7
      %v3274 = vsub.s32 %v3271, %v3273
      %v3275 = vrot.slane %v3259, %v3274
      %v3277 = vunpack.c.l.s4 1966171168
      %v3278 = vunpack.c.0.s8 %v3277
      %v3279 = vlaneseq
      %v3280 = vshrl.u32 %v3279, 7
      %v3281 = vsub.s32 %v3278, %v3280
      %v3282 = vrot.slane %v3260, %v3281
      %v3284 = vunpack.c.l.s4 1966171168
      %v3285 = vunpack.c.0.s8 %v3284
      %v3286 = vlaneseq
      %v3287 = vshrl.u32 %v3286, 7
      %v3288 = vsub.s32 %v3285, %v3287
      %v3289 = vrot.slane %v3261, %v3288
      %v3290 = vcombine.low %v3268, %v3275
      %v3291 = vcombine.low %v3282, %v3289
      %v3293 = vunpack.c.l.s4 1966171168
      %v3294 = vunpack.c.0.s8 %v3293
      %v3295 = vlaneseq
      %v3296 = vshrl.u32 %v3295, 7
      %v3297 = vsub.s32 %v3294, %v3296
      %v3298 = vrot.slane %v3290, %v3297
      %v3300 = vunpack.c.l.s4 1966171168
      %v3301 = vunpack.c.0.s8 %v3300
      %v3302 = vlaneseq
      %v3303 = vshrl.u32 %v3302, 7
      %v3304 = vsub.s32 %v3301, %v3303
      %v3305 = vrot.slane %v3291, %v3304
      %v3306 = vcombine.low %v3298, %v3305
      %v3307 = vcombine.low %v1946, %v1950
      %v3308 = vcombine.low %v1954, %v1958
      %v3309 = vcombine.low %v1962, %v1966
      %v3310 = vcombine.low %v1970, %v1974
      %v3312 = vunpack.c.l.s4 1966171168
      %v3313 = vunpack.c.0.s8 %v3312
      %v3314 = vlaneseq
      %v3315 = vshrl.u32 %v3314, 7
      %v3316 = vsub.s32 %v3313, %v3315
      %v3317 = vrot.slane %v3307, %v3316
      %v3319 = vunpack.c.l.s4 1966171168
      %v3320 = vunpack.c.0.s8 %v3319
      %v3321 = vlaneseq
      %v3322 = vshrl.u32 %v3321, 7
      %v3323 = vsub.s32 %v3320, %v3322
      %v3324 = vrot.slane %v3308, %v3323
      %v3326 = vunpack.c.l.s4 1966171168
      %v3327 = vunpack.c.0.s8 %v3326
      %v3328 = vlaneseq
      %v3329 = vshrl.u32 %v3328, 7
      %v3330 = vsub.s32 %v3327, %v3329
      %v3331 = vrot.slane %v3309, %v3330
      %v3333 = vunpack.c.l.s4 1966171168
      %v3334 = vunpack.c.0.s8 %v3333
      %v3335 = vlaneseq
      %v3336 = vshrl.u32 %v3335, 7
      %v3337 = vsub.s32 %v3334, %v3336
      %v3338 = vrot.slane %v3310, %v3337
      %v3339 = vcombine.low %v3317, %v3324
      %v3340 = vcombine.low %v3331, %v3338
      %v3342 = vunpack.c.l.s4 1966171168
      %v3343 = vunpack.c.0.s8 %v3342
      %v3344 = vlaneseq
      %v3345 = vshrl.u32 %v3344, 7
      %v3346 = vsub.s32 %v3343, %v3345
      %v3347 = vrot.slane %v3339, %v3346
      %v3349 = vunpack.c.l.s4 1966171168
      %v3350 = vunpack.c.0.s8 %v3349
      %v3351 = vlaneseq
      %v3352 = vshrl.u32 %v3351, 7
      %v3353 = vsub.s32 %v3350, %v3352
      %v3354 = vrot.slane %v3340, %v3353
      %v3355 = vcombine.low %v3347, %v3354
      %v3356 = vcombine.low %v1978, %v1982
      %v3357 = vcombine.low %v1986, %v1990
      %v3358 = vcombine.low %v1994, %v1998
      %v3359 = vcombine.low %v2002, %v2006
      %v3361 = vunpack.c.l.s4 1966171168
      %v3362 = vunpack.c.0.s8 %v3361
      %v3363 = vlaneseq
      %v3364 = vshrl.u32 %v3363, 7
      %v3365 = vsub.s32 %v3362, %v3364
      %v3366 = vrot.slane %v3356, %v3365
      %v3368 = vunpack.c.l.s4 1966171168
      %v3369 = vunpack.c.0.s8 %v3368
      %v3370 = vlaneseq
      %v3371 = vshrl.u32 %v3370, 7
      %v3372 = vsub.s32 %v3369, %v3371
      %v3373 = vrot.slane %v3357, %v3372
      %v3375 = vunpack.c.l.s4 1966171168
      %v3376 = vunpack.c.0.s8 %v3375
      %v3377 = vlaneseq
      %v3378 = vshrl.u32 %v3377, 7
      %v3379 = vsub.s32 %v3376, %v3378
      %v3380 = vrot.slane %v3358, %v3379
      %v3382 = vunpack.c.l.s4 1966171168
      %v3383 = vunpack.c.0.s8 %v3382
      %v3384 = vlaneseq
      %v3385 = vshrl.u32 %v3384, 7
      %v3386 = vsub.s32 %v3383, %v3385
      %v3387 = vrot.slane %v3359, %v3386
      %v3388 = vcombine.low %v3366, %v3373
      %v3389 = vcombine.low %v3380, %v3387
      %v3391 = vunpack.c.l.s4 1966171168
      %v3392 = vunpack.c.0.s8 %v3391
      %v3393 = vlaneseq
      %v3394 = vshrl.u32 %v3393, 7
      %v3395 = vsub.s32 %v3392, %v3394
      %v3396 = vrot.slane %v3388, %v3395
      %v3398 = vunpack.c.l.s4 1966171168
      %v3399 = vunpack.c.0.s8 %v3398
      %v3400 = vlaneseq
      %v3401 = vshrl.u32 %v3400, 7
      %v3402 = vsub.s32 %v3399, %v3401
      %v3403 = vrot.slane %v3389, %v3402
      %v3404 = vcombine.low %v3396, %v3403
      %v3405 = vcombine.low %v2010, %v2014
      %v3406 = vcombine.low %v2018, %v2022
      %v3407 = vcombine.low %v2026, %v2030
      %v3408 = vcombine.low %v2034, %v2038
      %v3410 = vunpack.c.l.s4 1966171168
      %v3411 = vunpack.c.0.s8 %v3410
      %v3412 = vlaneseq
      %v3413 = vshrl.u32 %v3412, 7
      %v3414 = vsub.s32 %v3411, %v3413
      %v3415 = vrot.slane %v3405, %v3414
      %v3417 = vunpack.c.l.s4 1966171168
      %v3418 = vunpack.c.0.s8 %v3417
      %v3419 = vlaneseq
      %v3420 = vshrl.u32 %v3419, 7
      %v3421 = vsub.s32 %v3418, %v3420
      %v3422 = vrot.slane %v3406, %v3421
      %v3424 = vunpack.c.l.s4 1966171168
      %v3425 = vunpack.c.0.s8 %v3424
      %v3426 = vlaneseq
      %v3427 = vshrl.u32 %v3426, 7
      %v3428 = vsub.s32 %v3425, %v3427
      %v3429 = vrot.slane %v3407, %v3428
      %v3431 = vunpack.c.l.s4 1966171168
      %v3432 = vunpack.c.0.s8 %v3431
      %v3433 = vlaneseq
      %v3434 = vshrl.u32 %v3433, 7
      %v3435 = vsub.s32 %v3432, %v3434
      %v3436 = vrot.slane %v3408, %v3435
      %v3437 = vcombine.low %v3415, %v3422
      %v3438 = vcombine.low %v3429, %v3436
      %v3440 = vunpack.c.l.s4 1966171168
      %v3441 = vunpack.c.0.s8 %v3440
      %v3442 = vlaneseq
      %v3443 = vshrl.u32 %v3442, 7
      %v3444 = vsub.s32 %v3441, %v3443
      %v3445 = vrot.slane %v3437, %v3444
      %v3447 = vunpack.c.l.s4 1966171168
      %v3448 = vunpack.c.0.s8 %v3447
      %v3449 = vlaneseq
      %v3450 = vshrl.u32 %v3449, 7
      %v3451 = vsub.s32 %v3448, %v3450
      %v3452 = vrot.slane %v3438, %v3451
      %v3453 = vcombine.low %v3445, %v3452
      %v3454 = vcombine.low %v2042, %v2046
      %v3455 = vcombine.low %v2050, %v2054
      %v3456 = vcombine.low %v2058, %v2062
      %v3457 = vcombine.low %v2066, %v2070
      %v3459 = vunpack.c.l.s4 1966171168
      %v3460 = vunpack.c.0.s8 %v3459
      %v3461 = vlaneseq
      %v3462 = vshrl.u32 %v3461, 7
      %v3463 = vsub.s32 %v3460, %v3462
      %v3464 = vrot.slane %v3454, %v3463
      %v3466 = vunpack.c.l.s4 1966171168
      %v3467 = vunpack.c.0.s8 %v3466
      %v3468 = vlaneseq
      %v3469 = vshrl.u32 %v3468, 7
      %v3470 = vsub.s32 %v3467, %v3469
      %v3471 = vrot.slane %v3455, %v3470
      %v3473 = vunpack.c.l.s4 1966171168
      %v3474 = vunpack.c.0.s8 %v3473
      %v3475 = vlaneseq
      %v3476 = vshrl.u32 %v3475, 7
      %v3477 = vsub.s32 %v3474, %v3476
      %v3478 = vrot.slane %v3456, %v3477
      %v3480 = vunpack.c.l.s4 1966171168
      %v3481 = vunpack.c.0.s8 %v3480
      %v3482 = vlaneseq
      %v3483 = vshrl.u32 %v3482, 7
      %v3484 = vsub.s32 %v3481, %v3483
      %v3485 = vrot.slane %v3457, %v3484
      %v3486 = vcombine.low %v3464, %v3471
      %v3487 = vcombine.low %v3478, %v3485
      %v3489 = vunpack.c.l.s4 1966171168
      %v3490 = vunpack.c.0.s8 %v3489
      %v3491 = vlaneseq
      %v3492 = vshrl.u32 %v3491, 7
      %v3493 = vsub.s32 %v3490, %v3492
      %v3494 = vrot.slane %v3486, %v3493
      %v3496 = vunpack.c.l.s4 1966171168
      %v3497 = vunpack.c.0.s8 %v3496
      %v3498 = vlaneseq
      %v3499 = vshrl.u32 %v3498, 7
      %v3500 = vsub.s32 %v3497, %v3499
      %v3501 = vrot.slane %v3487, %v3500
      %v3502 = vcombine.low %v3494, %v3501
      %v3503 = vcombine.low %v2074, %v2078
      %v3504 = vcombine.low %v2082, %v2086
      %v3505 = vcombine.low %v2090, %v2094
      %v3506 = vcombine.low %v2098, %v2102
      %v3508 = vunpack.c.l.s4 1966171168
      %v3509 = vunpack.c.0.s8 %v3508
      %v3510 = vlaneseq
      %v3511 = vshrl.u32 %v3510, 7
      %v3512 = vsub.s32 %v3509, %v3511
      %v3513 = vrot.slane %v3503, %v3512
      %v3515 = vunpack.c.l.s4 1966171168
      %v3516 = vunpack.c.0.s8 %v3515
      %v3517 = vlaneseq
      %v3518 = vshrl.u32 %v3517, 7
      %v3519 = vsub.s32 %v3516, %v3518
      %v3520 = vrot.slane %v3504, %v3519
      %v3522 = vunpack.c.l.s4 1966171168
      %v3523 = vunpack.c.0.s8 %v3522
      %v3524 = vlaneseq
      %v3525 = vshrl.u32 %v3524, 7
      %v3526 = vsub.s32 %v3523, %v3525
      %v3527 = vrot.slane %v3505, %v3526
      %v3529 = vunpack.c.l.s4 1966171168
      %v3530 = vunpack.c.0.s8 %v3529
      %v3531 = vlaneseq
      %v3532 = vshrl.u32 %v3531, 7
      %v3533 = vsub.s32 %v3530, %v3532
      %v3534 = vrot.slane %v3506, %v3533
      %v3535 = vcombine.low %v3513, %v3520
      %v3536 = vcombine.low %v3527, %v3534
      %v3538 = vunpack.c.l.s4 1966171168
      %v3539 = vunpack.c.0.s8 %v3538
      %v3540 = vlaneseq
      %v3541 = vshrl.u32 %v3540, 7
      %v3542 = vsub.s32 %v3539, %v3541
      %v3543 = vrot.slane %v3535, %v3542
      %v3545 = vunpack.c.l.s4 1966171168
      %v3546 = vunpack.c.0.s8 %v3545
      %v3547 = vlaneseq
      %v3548 = vshrl.u32 %v3547, 7
      %v3549 = vsub.s32 %v3546, %v3548
      %v3550 = vrot.slane %v3536, %v3549
      %v3551 = vcombine.low %v3543, %v3550
      %v3552 = vcombine.low %v2106, %v2110
      %v3553 = vcombine.low %v2114, %v2118
      %v3554 = vcombine.low %v2122, %v2126
      %v3555 = vcombine.low %v2130, %v2134
      %v3557 = vunpack.c.l.s4 1966171168
      %v3558 = vunpack.c.0.s8 %v3557
      %v3559 = vlaneseq
      %v3560 = vshrl.u32 %v3559, 7
      %v3561 = vsub.s32 %v3558, %v3560
      %v3562 = vrot.slane %v3552, %v3561
      %v3564 = vunpack.c.l.s4 1966171168
      %v3565 = vunpack.c.0.s8 %v3564
      %v3566 = vlaneseq
      %v3567 = vshrl.u32 %v3566, 7
      %v3568 = vsub.s32 %v3565, %v3567
      %v3569 = vrot.slane %v3553, %v3568
      %v3571 = vunpack.c.l.s4 1966171168
      %v3572 = vunpack.c.0.s8 %v3571
      %v3573 = vlaneseq
      %v3574 = vshrl.u32 %v3573, 7
      %v3575 = vsub.s32 %v3572, %v3574
      %v3576 = vrot.slane %v3554, %v3575
      %v3578 = vunpack.c.l.s4 1966171168
      %v3579 = vunpack.c.0.s8 %v3578
      %v3580 = vlaneseq
      %v3581 = vshrl.u32 %v3580, 7
      %v3582 = vsub.s32 %v3579, %v3581
      %v3583 = vrot.slane %v3555, %v3582
      %v3584 = vcombine.low %v3562, %v3569
      %v3585 = vcombine.low %v3576, %v3583
      %v3587 = vunpack.c.l.s4 1966171168
      %v3588 = vunpack.c.0.s8 %v3587
      %v3589 = vlaneseq
      %v3590 = vshrl.u32 %v3589, 7
      %v3591 = vsub.s32 %v3588, %v3590
      %v3592 = vrot.slane %v3584, %v3591
      %v3594 = vunpack.c.l.s4 1966171168
      %v3595 = vunpack.c.0.s8 %v3594
      %v3596 = vlaneseq
      %v3597 = vshrl.u32 %v3596, 7
      %v3598 = vsub.s32 %v3595, %v3597
      %v3599 = vrot.slane %v3585, %v3598
      %v3600 = vcombine.low %v3592, %v3599
      %v3601 = vcombine.low %v2138, %v2142
      %v3602 = vcombine.low %v2146, %v2150
      %v3603 = vcombine.low %v2154, %v2158
      %v3604 = vcombine.low %v2162, %v2166
      %v3606 = vunpack.c.l.s4 1966171168
      %v3607 = vunpack.c.0.s8 %v3606
      %v3608 = vlaneseq
      %v3609 = vshrl.u32 %v3608, 7
      %v3610 = vsub.s32 %v3607, %v3609
      %v3611 = vrot.slane %v3601, %v3610
      %v3613 = vunpack.c.l.s4 1966171168
      %v3614 = vunpack.c.0.s8 %v3613
      %v3615 = vlaneseq
      %v3616 = vshrl.u32 %v3615, 7
      %v3617 = vsub.s32 %v3614, %v3616
      %v3618 = vrot.slane %v3602, %v3617
      %v3620 = vunpack.c.l.s4 1966171168
      %v3621 = vunpack.c.0.s8 %v3620
      %v3622 = vlaneseq
      %v3623 = vshrl.u32 %v3622, 7
      %v3624 = vsub.s32 %v3621, %v3623
      %v3625 = vrot.slane %v3603, %v3624
      %v3627 = vunpack.c.l.s4 1966171168
      %v3628 = vunpack.c.0.s8 %v3627
      %v3629 = vlaneseq
      %v3630 = vshrl.u32 %v3629, 7
      %v3631 = vsub.s32 %v3628, %v3630
      %v3632 = vrot.slane %v3604, %v3631
      %v3633 = vcombine.low %v3611, %v3618
      %v3634 = vcombine.low %v3625, %v3632
      %v3636 = vunpack.c.l.s4 1966171168
      %v3637 = vunpack.c.0.s8 %v3636
      %v3638 = vlaneseq
      %v3639 = vshrl.u32 %v3638, 7
      %v3640 = vsub.s32 %v3637, %v3639
      %v3641 = vrot.slane %v3633, %v3640
      %v3643 = vunpack.c.l.s4 1966171168
      %v3644 = vunpack.c.0.s8 %v3643
      %v3645 = vlaneseq
      %v3646 = vshrl.u32 %v3645, 7
      %v3647 = vsub.s32 %v3644, %v3646
      %v3648 = vrot.slane %v3634, %v3647
      %v3649 = vcombine.low %v3641, %v3648
      %v3650 = vcombine.low %v2170, %v2174
      %v3651 = vcombine.low %v2178, %v2182
      %v3652 = vcombine.low %v2186, %v2190
      %v3653 = vcombine.low %v2194, %v2198
      %v3655 = vunpack.c.l.s4 1966171168
      %v3656 = vunpack.c.0.s8 %v3655
      %v3657 = vlaneseq
      %v3658 = vshrl.u32 %v3657, 7
      %v3659 = vsub.s32 %v3656, %v3658
      %v3660 = vrot.slane %v3650, %v3659
      %v3662 = vunpack.c.l.s4 1966171168
      %v3663 = vunpack.c.0.s8 %v3662
      %v3664 = vlaneseq
      %v3665 = vshrl.u32 %v3664, 7
      %v3666 = vsub.s32 %v3663, %v3665
      %v3667 = vrot.slane %v3651, %v3666
      %v3669 = vunpack.c.l.s4 1966171168
      %v3670 = vunpack.c.0.s8 %v3669
      %v3671 = vlaneseq
      %v3672 = vshrl.u32 %v3671, 7
      %v3673 = vsub.s32 %v3670, %v3672
      %v3674 = vrot.slane %v3652, %v3673
      %v3676 = vunpack.c.l.s4 1966171168
      %v3677 = vunpack.c.0.s8 %v3676
      %v3678 = vlaneseq
      %v3679 = vshrl.u32 %v3678, 7
      %v3680 = vsub.s32 %v3677, %v3679
      %v3681 = vrot.slane %v3653, %v3680
      %v3682 = vcombine.low %v3660, %v3667
      %v3683 = vcombine.low %v3674, %v3681
      %v3685 = vunpack.c.l.s4 1966171168
      %v3686 = vunpack.c.0.s8 %v3685
      %v3687 = vlaneseq
      %v3688 = vshrl.u32 %v3687, 7
      %v3689 = vsub.s32 %v3686, %v3688
      %v3690 = vrot.slane %v3682, %v3689
      %v3692 = vunpack.c.l.s4 1966171168
      %v3693 = vunpack.c.0.s8 %v3692
      %v3694 = vlaneseq
      %v3695 = vshrl.u32 %v3694, 7
      %v3696 = vsub.s32 %v3693, %v3695
      %v3697 = vrot.slane %v3683, %v3696
      %v3698 = vcombine.low %v3690, %v3697
      %v3699 = vcombine.low %v2202, %v2206
      %v3700 = vcombine.low %v2210, %v2214
      %v3701 = vcombine.low %v2218, %v2222
      %v3702 = vcombine.low %v2226, %v2230
      %v3704 = vunpack.c.l.s4 1966171168
      %v3705 = vunpack.c.0.s8 %v3704
      %v3706 = vlaneseq
      %v3707 = vshrl.u32 %v3706, 7
      %v3708 = vsub.s32 %v3705, %v3707
      %v3709 = vrot.slane %v3699, %v3708
      %v3711 = vunpack.c.l.s4 1966171168
      %v3712 = vunpack.c.0.s8 %v3711
      %v3713 = vlaneseq
      %v3714 = vshrl.u32 %v3713, 7
      %v3715 = vsub.s32 %v3712, %v3714
      %v3716 = vrot.slane %v3700, %v3715
      %v3718 = vunpack.c.l.s4 1966171168
      %v3719 = vunpack.c.0.s8 %v3718
      %v3720 = vlaneseq
      %v3721 = vshrl.u32 %v3720, 7
      %v3722 = vsub.s32 %v3719, %v3721
      %v3723 = vrot.slane %v3701, %v3722
      %v3725 = vunpack.c.l.s4 1966171168
      %v3726 = vunpack.c.0.s8 %v3725
      %v3727 = vlaneseq
      %v3728 = vshrl.u32 %v3727, 7
      %v3729 = vsub.s32 %v3726, %v3728
      %v3730 = vrot.slane %v3702, %v3729
      %v3731 = vcombine.low %v3709, %v3716
      %v3732 = vcombine.low %v3723, %v3730
      %v3734 = vunpack.c.l.s4 1966171168
      %v3735 = vunpack.c.0.s8 %v3734
      %v3736 = vlaneseq
      %v3737 = vshrl.u32 %v3736, 7
      %v3738 = vsub.s32 %v3735, %v3737
      %v3739 = vrot.slane %v3731, %v3738
      %v3741 = vunpack.c.l.s4 1966171168
      %v3742 = vunpack.c.0.s8 %v3741
      %v3743 = vlaneseq
      %v3744 = vshrl.u32 %v3743, 7
      %v3745 = vsub.s32 %v3742, %v3744
      %v3746 = vrot.slane %v3732, %v3745
      %v3747 = vcombine.low %v3739, %v3746
      %v3748 = vcombine.low %v2234, %v2238
      %v3749 = vcombine.low %v2242, %v2246
      %v3750 = vcombine.low %v2250, %v2254
      %v3751 = vcombine.low %v2258, %v2262
      %v3753 = vunpack.c.l.s4 1966171168
      %v3754 = vunpack.c.0.s8 %v3753
      %v3755 = vlaneseq
      %v3756 = vshrl.u32 %v3755, 7
      %v3757 = vsub.s32 %v3754, %v3756
      %v3758 = vrot.slane %v3748, %v3757
      %v3760 = vunpack.c.l.s4 1966171168
      %v3761 = vunpack.c.0.s8 %v3760
      %v3762 = vlaneseq
      %v3763 = vshrl.u32 %v3762, 7
      %v3764 = vsub.s32 %v3761, %v3763
      %v3765 = vrot.slane %v3749, %v3764
      %v3767 = vunpack.c.l.s4 1966171168
      %v3768 = vunpack.c.0.s8 %v3767
      %v3769 = vlaneseq
      %v3770 = vshrl.u32 %v3769, 7
      %v3771 = vsub.s32 %v3768, %v3770
      %v3772 = vrot.slane %v3750, %v3771
      %v3774 = vunpack.c.l.s4 1966171168
      %v3775 = vunpack.c.0.s8 %v3774
      %v3776 = vlaneseq
      %v3777 = vshrl.u32 %v3776, 7
      %v3778 = vsub.s32 %v3775, %v3777
      %v3779 = vrot.slane %v3751, %v3778
      %v3780 = vcombine.low %v3758, %v3765
      %v3781 = vcombine.low %v3772, %v3779
      %v3783 = vunpack.c.l.s4 1966171168
      %v3784 = vunpack.c.0.s8 %v3783
      %v3785 = vlaneseq
      %v3786 = vshrl.u32 %v3785, 7
      %v3787 = vsub.s32 %v3784, %v3786
      %v3788 = vrot.slane %v3780, %v3787
      %v3790 = vunpack.c.l.s4 1966171168
      %v3791 = vunpack.c.0.s8 %v3790
      %v3792 = vlaneseq
      %v3793 = vshrl.u32 %v3792, 7
      %v3794 = vsub.s32 %v3791, %v3793
      %v3795 = vrot.slane %v3781, %v3794
      %v3796 = vcombine.low %v3788, %v3795
      %v3797 = vcombine.low %v2266, %v2270
      %v3798 = vcombine.low %v2274, %v2278
      %v3799 = vcombine.low %v2282, %v2286
      %v3800 = vcombine.low %v2290, %v2294
      %v3802 = vunpack.c.l.s4 1966171168
      %v3803 = vunpack.c.0.s8 %v3802
      %v3804 = vlaneseq
      %v3805 = vshrl.u32 %v3804, 7
      %v3806 = vsub.s32 %v3803, %v3805
      %v3807 = vrot.slane %v3797, %v3806
      %v3809 = vunpack.c.l.s4 1966171168
      %v3810 = vunpack.c.0.s8 %v3809
      %v3811 = vlaneseq
      %v3812 = vshrl.u32 %v3811, 7
      %v3813 = vsub.s32 %v3810, %v3812
      %v3814 = vrot.slane %v3798, %v3813
      %v3816 = vunpack.c.l.s4 1966171168
      %v3817 = vunpack.c.0.s8 %v3816
      %v3818 = vlaneseq
      %v3819 = vshrl.u32 %v3818, 7
      %v3820 = vsub.s32 %v3817, %v3819
      %v3821 = vrot.slane %v3799, %v3820
      %v3823 = vunpack.c.l.s4 1966171168
      %v3824 = vunpack.c.0.s8 %v3823
      %v3825 = vlaneseq
      %v3826 = vshrl.u32 %v3825, 7
      %v3827 = vsub.s32 %v3824, %v3826
      %v3828 = vrot.slane %v3800, %v3827
      %v3829 = vcombine.low %v3807, %v3814
      %v3830 = vcombine.low %v3821, %v3828
      %v3832 = vunpack.c.l.s4 1966171168
      %v3833 = vunpack.c.0.s8 %v3832
      %v3834 = vlaneseq
      %v3835 = vshrl.u32 %v3834, 7
      %v3836 = vsub.s32 %v3833, %v3835
      %v3837 = vrot.slane %v3829, %v3836
      %v3839 = vunpack.c.l.s4 1966171168
      %v3840 = vunpack.c.0.s8 %v3839
      %v3841 = vlaneseq
      %v3842 = vshrl.u32 %v3841, 7
      %v3843 = vsub.s32 %v3840, %v3842
      %v3844 = vrot.slane %v3830, %v3843
      %v3845 = vcombine.low %v3837, %v3844
      %v3846 = vcombine.low %v2298, %v2302
      %v3847 = vcombine.low %v2306, %v2310
      %v3848 = vcombine.low %v2314, %v2318
      %v3849 = vcombine.low %v2322, %v2326
      %v3851 = vunpack.c.l.s4 1966171168
      %v3852 = vunpack.c.0.s8 %v3851
      %v3853 = vlaneseq
      %v3854 = vshrl.u32 %v3853, 7
      %v3855 = vsub.s32 %v3852, %v3854
      %v3856 = vrot.slane %v3846, %v3855
      %v3858 = vunpack.c.l.s4 1966171168
      %v3859 = vunpack.c.0.s8 %v3858
      %v3860 = vlaneseq
      %v3861 = vshrl.u32 %v3860, 7
      %v3862 = vsub.s32 %v3859, %v3861
      %v3863 = vrot.slane %v3847, %v3862
      %v3865 = vunpack.c.l.s4 1966171168
      %v3866 = vunpack.c.0.s8 %v3865
      %v3867 = vlaneseq
      %v3868 = vshrl.u32 %v3867, 7
      %v3869 = vsub.s32 %v3866, %v3868
      %v3870 = vrot.slane %v3848, %v3869
      %v3872 = vunpack.c.l.s4 1966171168
      %v3873 = vunpack.c.0.s8 %v3872
      %v3874 = vlaneseq
      %v3875 = vshrl.u32 %v3874, 7
      %v3876 = vsub.s32 %v3873, %v3875
      %v3877 = vrot.slane %v3849, %v3876
      %v3878 = vcombine.low %v3856, %v3863
      %v3879 = vcombine.low %v3870, %v3877
      %v3881 = vunpack.c.l.s4 1966171168
      %v3882 = vunpack.c.0.s8 %v3881
      %v3883 = vlaneseq
      %v3884 = vshrl.u32 %v3883, 7
      %v3885 = vsub.s32 %v3882, %v3884
      %v3886 = vrot.slane %v3878, %v3885
      %v3888 = vunpack.c.l.s4 1966171168
      %v3889 = vunpack.c.0.s8 %v3888
      %v3890 = vlaneseq
      %v3891 = vshrl.u32 %v3890, 7
      %v3892 = vsub.s32 %v3889, %v3891
      %v3893 = vrot.slane %v3879, %v3892
      %v3894 = vcombine.low %v3886, %v3893
      %3895 = vset.pattern.permute.xlu0 0
      %3896 = vperm.xlu0 %3895, %v2375
      %v3897 = vpop.permute.xlu0 %3896
      %3898 = vset.pattern.permute.xlu0 0
      %3899 = vperm.xlu0 %3898, %v2424
      %v3900 = vpop.permute.xlu0 %3899
      %3901 = vset.pattern.permute.xlu0 0
      %3902 = vperm.xlu0 %3901, %v2473
      %v3903 = vpop.permute.xlu0 %3902
      %3904 = vset.pattern.permute.xlu0 0
      %3905 = vperm.xlu0 %3904, %v2522
      %v3906 = vpop.permute.xlu0 %3905
      %3907 = vset.pattern.permute.xlu0 0
      %3908 = vperm.xlu0 %3907, %v2571
      %v3909 = vpop.permute.xlu0 %3908
      %3910 = vset.pattern.permute.xlu0 0
      %3911 = vperm.xlu0 %3910, %v2620
      %v3912 = vpop.permute.xlu0 %3911
      %3913 = vset.pattern.permute.xlu0 0
      %3914 = vperm.xlu0 %3913, %v2669
      %v3915 = vpop.permute.xlu0 %3914
      %3916 = vset.pattern.permute.xlu0 0
      %3917 = vperm.xlu0 %3916, %v2718
      %v3918 = vpop.permute.xlu0 %3917
      %3919 = vset.pattern.permute.xlu0 0
      %3920 = vperm.xlu0 %3919, %v2767
      %v3921 = vpop.permute.xlu0 %3920
      %3922 = vset.pattern.permute.xlu0 0
      %3923 = vperm.xlu0 %3922, %v2816
      %v3924 = vpop.permute.xlu0 %3923
      %3925 = vset.pattern.permute.xlu0 0
      %3926 = vperm.xlu0 %3925, %v2865
      %v3927 = vpop.permute.xlu0 %3926
      %3928 = vset.pattern.permute.xlu0 0
      %3929 = vperm.xlu0 %3928, %v2914
      %v3930 = vpop.permute.xlu0 %3929
      %3931 = vset.pattern.permute.xlu0 0
      %3932 = vperm.xlu0 %3931, %v2963
      %v3933 = vpop.permute.xlu0 %3932
      %3934 = vset.pattern.permute.xlu0 0
      %3935 = vperm.xlu0 %3934, %v3012
      %v3936 = vpop.permute.xlu0 %3935
      %3937 = vset.pattern.permute.xlu0 0
      %3938 = vperm.xlu0 %3937, %v3061
      %v3939 = vpop.permute.xlu0 %3938
      %3940 = vset.pattern.permute.xlu0 0
      %3941 = vperm.xlu0 %3940, %v3110
      %v3942 = vpop.permute.xlu0 %3941
      %3943 = vset.pattern.permute.xlu0 0
      %3944 = vperm.xlu0 %3943, %v3159
      %v3945 = vpop.permute.xlu0 %3944
      %3946 = vset.pattern.permute.xlu0 0
      %3947 = vperm.xlu0 %3946, %v3208
      %v3948 = vpop.permute.xlu0 %3947
      %3949 = vset.pattern.permute.xlu0 0
      %3950 = vperm.xlu0 %3949, %v3257
      %v3951 = vpop.permute.xlu0 %3950
      %3952 = vset.pattern.permute.xlu0 0
      %3953 = vperm.xlu0 %3952, %v3306
      %v3954 = vpop.permute.xlu0 %3953
      %3955 = vset.pattern.permute.xlu0 0
      %3956 = vperm.xlu0 %3955, %v3355
      %v3957 = vpop.permute.xlu0 %3956
      %3958 = vset.pattern.permute.xlu0 0
      %3959 = vperm.xlu0 %3958, %v3404
      %v3960 = vpop.permute.xlu0 %3959
      %3961 = vset.pattern.permute.xlu0 0
      %3962 = vperm.xlu0 %3961, %v3453
      %v3963 = vpop.permute.xlu0 %3962
      %3964 = vset.pattern.permute.xlu0 0
      %3965 = vperm.xlu0 %3964, %v3502
      %v3966 = vpop.permute.xlu0 %3965
      %3967 = vset.pattern.permute.xlu0 0
      %3968 = vperm.xlu0 %3967, %v3551
      %v3969 = vpop.permute.xlu0 %3968
      %3970 = vset.pattern.permute.xlu0 0
      %3971 = vperm.xlu0 %3970, %v3600
      %v3972 = vpop.permute.xlu0 %3971
      %3973 = vset.pattern.permute.xlu0 0
      %3974 = vperm.xlu0 %3973, %v3649
      %v3975 = vpop.permute.xlu0 %3974
      %3976 = vset.pattern.permute.xlu0 0
      %3977 = vperm.xlu0 %3976, %v3698
      %v3978 = vpop.permute.xlu0 %3977
      %3979 = vset.pattern.permute.xlu0 0
      %3980 = vperm.xlu0 %3979, %v3747
      %v3981 = vpop.permute.xlu0 %3980
      %3982 = vset.pattern.permute.xlu0 0
      %3983 = vperm.xlu0 %3982, %v3796
      %v3984 = vpop.permute.xlu0 %3983
      %3985 = vset.pattern.permute.xlu0 0
      %3986 = vperm.xlu0 %3985, %v3845
      %v3987 = vpop.permute.xlu0 %3986
      %3988 = vset.pattern.permute.xlu0 0
      %3989 = vperm.xlu0 %3988, %v3894
      %v3990 = vpop.permute.xlu0 %3989
      %v3991 = vlaneseq
      %v3992 = vand.u32 %v3991, 127
      %v3993 = vlaneseq
      %v3994 = vshrl.u32 %v3993, 7
      %v3995 = vsub.s32 %v3992, %v3994
      %v3996 = vrot.slane %v3897, %v3995
      %v3997 = vadd.s32 %v3992, 4294967288
      %v3998 = vlaneseq
      %v3999 = vshrl.u32 %v3998, 7
      %v4000 = vsub.s32 %v3997, %v3999
      %v4001 = vrot.slane %v3900, %v4000
      %vm4002 = vcmask 130112
      %v4003 = vsel %vm4002, %v4001, %v3996
      %v4004 = vadd.s32 %v3992, 4294967280
      %v4005 = vlaneseq
      %v4006 = vshrl.u32 %v4005, 7
      %v4007 = vsub.s32 %v4004, %v4006
      %v4008 = vrot.slane %v3903, %v4007
      %vm4009 = vcmask 195712
      %v4010 = vsel %vm4009, %v4008, %v4003
      %v4011 = vadd.s32 %v3992, 4294967272
      %v4012 = vlaneseq
      %v4013 = vshrl.u32 %v4012, 7
      %v4014 = vsub.s32 %v4011, %v4013
      %v4015 = vrot.slane %v3906, %v4014
      %vm4016 = vcmask 261312
      %v4017 = vsel %vm4016, %v4015, %v4010
      %v4018 = vadd.s32 %v3992, 4294967264
      %v4019 = vlaneseq
      %v4020 = vshrl.u32 %v4019, 7
      %v4021 = vsub.s32 %v4018, %v4020
      %v4022 = vrot.slane %v3909, %v4021
      %vm4023 = vcmask 326912
      %v4024 = vsel %vm4023, %v4022, %v4017
      %v4025 = vadd.s32 %v3992, 4294967256
      %v4026 = vlaneseq
      %v4027 = vshrl.u32 %v4026, 7
      %v4028 = vsub.s32 %v4025, %v4027
      %v4029 = vrot.slane %v3912, %v4028
      %vm4030 = vcmask 392512
      %v4031 = vsel %vm4030, %v4029, %v4024
      %v4032 = vadd.s32 %v3992, 4294967248
      %v4033 = vlaneseq
      %v4034 = vshrl.u32 %v4033, 7
      %v4035 = vsub.s32 %v4032, %v4034
      %v4036 = vrot.slane %v3915, %v4035
      %vm4037 = vcmask 458112
      %v4038 = vsel %vm4037, %v4036, %v4031
      %v4039 = vadd.s32 %v3992, 4294967240
      %v4040 = vlaneseq
      %v4041 = vshrl.u32 %v4040, 7
      %v4042 = vsub.s32 %v4039, %v4041
      %v4043 = vrot.slane %v3918, %v4042
      %vm4044 = vcmask 523712
      %v4045 = vsel %vm4044, %v4043, %v4038
      %v4046 = vadd.s32 %v3992, 4294967232
      %v4047 = vlaneseq
      %v4048 = vshrl.u32 %v4047, 7
      %v4049 = vsub.s32 %v4046, %v4048
      %v4050 = vrot.slane %v3921, %v4049
      %vm4051 = vcmask 589312
      %v4052 = vsel %vm4051, %v4050, %v4045
      %v4053 = vadd.s32 %v3992, 4294967224
      %v4054 = vlaneseq
      %v4055 = vshrl.u32 %v4054, 7
      %v4056 = vsub.s32 %v4053, %v4055
      %v4057 = vrot.slane %v3924, %v4056
      %vm4058 = vcmask 654912
      %v4059 = vsel %vm4058, %v4057, %v4052
      %v4060 = vadd.s32 %v3992, 4294967216
      %v4061 = vlaneseq
      %v4062 = vshrl.u32 %v4061, 7
      %v4063 = vsub.s32 %v4060, %v4062
      %v4064 = vrot.slane %v3927, %v4063
      %vm4065 = vcmask 720512
      %v4066 = vsel %vm4065, %v4064, %v4059
      %v4067 = vadd.s32 %v3992, 4294967208
      %v4068 = vlaneseq
      %v4069 = vshrl.u32 %v4068, 7
      %v4070 = vsub.s32 %v4067, %v4069
      %v4071 = vrot.slane %v3930, %v4070
      %vm4072 = vcmask 786112
      %v4073 = vsel %vm4072, %v4071, %v4066
      %v4074 = vadd.s32 %v3992, 4294967200
      %v4075 = vlaneseq
      %v4076 = vshrl.u32 %v4075, 7
      %v4077 = vsub.s32 %v4074, %v4076
      %v4078 = vrot.slane %v3933, %v4077
      %vm4079 = vcmask 851712
      %v4080 = vsel %vm4079, %v4078, %v4073
      %v4081 = vadd.s32 %v3992, 4294967192
      %v4082 = vlaneseq
      %v4083 = vshrl.u32 %v4082, 7
      %v4084 = vsub.s32 %v4081, %v4083
      %v4085 = vrot.slane %v3936, %v4084
      %vm4086 = vcmask 917312
      %v4087 = vsel %vm4086, %v4085, %v4080
      %v4088 = vadd.s32 %v3992, 4294967184
      %v4089 = vlaneseq
      %v4090 = vshrl.u32 %v4089, 7
      %v4091 = vsub.s32 %v4088, %v4090
      %v4092 = vrot.slane %v3939, %v4091
      %vm4093 = vcmask 982912
      %v4094 = vsel %vm4093, %v4092, %v4087
      %v4095 = vadd.s32 %v3992, 4294967176
      %v4096 = vlaneseq
      %v4097 = vshrl.u32 %v4096, 7
      %v4098 = vsub.s32 %v4095, %v4097
      %v4099 = vrot.slane %v3942, %v4098
      %vm4100 = vcmask 1048512
      %v4101 = vsel %vm4100, %v4099, %v4094
      %v4102 = vlaneseq
      %v4103 = vshrl.u32 %v4102, 7
      %v4104 = vsub.s32 %v3992, %v4103
      %v4105 = vrot.slane %v3945, %v4104
      %v4106 = vlaneseq
      %v4107 = vshrl.u32 %v4106, 7
      %v4108 = vsub.s32 %v3997, %v4107
      %v4109 = vrot.slane %v3948, %v4108
      %v4110 = vsel %vm4002, %v4109, %v4105
      %v4111 = vlaneseq
      %v4112 = vshrl.u32 %v4111, 7
      %v4113 = vsub.s32 %v4004, %v4112
      %v4114 = vrot.slane %v3951, %v4113
      %v4115 = vsel %vm4009, %v4114, %v4110
      %v4116 = vlaneseq
      %v4117 = vshrl.u32 %v4116, 7
      %v4118 = vsub.s32 %v4011, %v4117
      %v4119 = vrot.slane %v3954, %v4118
      %v4120 = vsel %vm4016, %v4119, %v4115
      %v4121 = vlaneseq
      %v4122 = vshrl.u32 %v4121, 7
      %v4123 = vsub.s32 %v4018, %v4122
      %v4124 = vrot.slane %v3957, %v4123
      %v4125 = vsel %vm4023, %v4124, %v4120
      %v4126 = vlaneseq
      %v4127 = vshrl.u32 %v4126, 7
      %v4128 = vsub.s32 %v4025, %v4127
      %v4129 = vrot.slane %v3960, %v4128
      %v4130 = vsel %vm4030, %v4129, %v4125
      %v4131 = vlaneseq
      %v4132 = vshrl.u32 %v4131, 7
      %v4133 = vsub.s32 %v4032, %v4132
      %v4134 = vrot.slane %v3963, %v4133
      %v4135 = vsel %vm4037, %v4134, %v4130
      %v4136 = vlaneseq
      %v4137 = vshrl.u32 %v4136, 7
      %v4138 = vsub.s32 %v4039, %v4137
      %v4139 = vrot.slane %v3966, %v4138
      %v4140 = vsel %vm4044, %v4139, %v4135
      %v4141 = vlaneseq
      %v4142 = vshrl.u32 %v4141, 7
      %v4143 = vsub.s32 %v4046, %v4142
      %v4144 = vrot.slane %v3969, %v4143
      %v4145 = vsel %vm4051, %v4144, %v4140
      %v4146 = vlaneseq
      %v4147 = vshrl.u32 %v4146, 7
      %v4148 = vsub.s32 %v4053, %v4147
      %v4149 = vrot.slane %v3972, %v4148
      %v4150 = vsel %vm4058, %v4149, %v4145
      %v4151 = vlaneseq
      %v4152 = vshrl.u32 %v4151, 7
      %v4153 = vsub.s32 %v4060, %v4152
      %v4154 = vrot.slane %v3975, %v4153
      %v4155 = vsel %vm4065, %v4154, %v4150
      %v4156 = vlaneseq
      %v4157 = vshrl.u32 %v4156, 7
      %v4158 = vsub.s32 %v4067, %v4157
      %v4159 = vrot.slane %v3978, %v4158
      %v4160 = vsel %vm4072, %v4159, %v4155
      %v4161 = vlaneseq
      %v4162 = vshrl.u32 %v4161, 7
      %v4163 = vsub.s32 %v4074, %v4162
      %v4164 = vrot.slane %v3981, %v4163
      %v4165 = vsel %vm4079, %v4164, %v4160
      %v4166 = vlaneseq
      %v4167 = vshrl.u32 %v4166, 7
      %v4168 = vsub.s32 %v4081, %v4167
      %v4169 = vrot.slane %v3984, %v4168
      %v4170 = vsel %vm4086, %v4169, %v4165
      %v4171 = vlaneseq
      %v4172 = vshrl.u32 %v4171, 7
      %v4173 = vsub.s32 %v4088, %v4172
      %v4174 = vrot.slane %v3987, %v4173
      %v4175 = vsel %vm4093, %v4174, %v4170
      %v4176 = vlaneseq
      %v4177 = vshrl.u32 %v4176, 7
      %v4178 = vsub.s32 %v4095, %v4177
      %v4179 = vrot.slane %v3990, %v4178
      %v4180 = vsel %vm4100, %v4179, %v4175
      %v4181 = vcombine.low %v4101, %v4180
      %v4183 = vunpack.c.l.s4 1966171168
      %v4184 = vunpack.c.0.s8 %v4183
      %v4185 = vlaneseq
      %v4186 = vshrl.u32 %v4185, 7
      %v4187 = vsub.s32 %v4184, %v4186
      %v4188 = vrot.slane %v4181, %v4187
      %v4190 = vunpack.c.l.s4 1966171168
      %v4191 = vunpack.c.0.s8 %v4190
      %v4192 = vlaneseq
      %v4193 = vshrl.u32 %v4192, 7
      %v4194 = vsub.s32 %v4191, %v4193
      %v4195 = vrot.slane %v4188, %v4194
      %v4197 = vlaneseq
      %vm4198 = vcmp.ge.s32.totalorder %v4197, 0
      %vm4199 = vcmp.lt.s32.totalorder %v4197, 256
      %vm4200 = vmand %vm4198, %vm4199
      %4201 = vst.msk [vmem:[%s333] sm:$0x3] %vm4200, %v4195
      %p4202 = scmp.lt.s32.totalorder %s21, 1
      %s4203 = scalar_select %p4202, %s21, 1
      %s4204 = smul.addr %s4203, 2
      %s4205 = scalar_lea.vmem %s9, %s4204
      // Predicated region
      $region57: #{fitting_net_forward.1} parent=55 // pred_check
        %p4206 = pneg %p233
      $region58: #{fitting_net_forward.1} parent=55 // pred_check_branch
        %4208 = sbr.rel (%p4206) target = $region60
      $region59: #{fitting_net_forward.1} parent=55 // pred_region
        _
      $region60: #{fitting_net_forward.1} parent=55 // pred_fallthru
        _
    $region56: #{fitting_net_forward.1} parent=5 // pred_fallthru
      _
    %p4209 = scmp.le.s32.totalorder 2, %s16
    // Predicated region
    $region61: #{fitting_net_forward.1} parent=5 // pred_check
      %p4210 = pneg %p4209
    $region62: #{fitting_net_forward.1} parent=5 // pred_check_branch
      %4212 = sbr.rel (%p4210) target = $region64
    $region63: #{fitting_net_forward.1} parent=5 // pred_region
      %s4213 = ssub.s32 %s16, 2
      // Predicated region
      $region65: #{fitting_net_forward.1} parent=63 // pred_check
        %p4214 = pneg %p239
      $region66: #{fitting_net_forward.1} parent=63 // pred_check_branch
        %4216 = sbr.rel (%p4214) target = $region68
      $region67: #{fitting_net_forward.1} parent=63 // pred_region
        %p4217 = scmp.lt.s32.totalorder %s22, 1
        %s4218 = scalar_select %p4217, %s22, 1
        %s4219 = smul.addr %s4218, 2
        %s4220 = scalar_lea.vmem %s9, %s4219
      $region68: #{fitting_net_forward.1} parent=63 // pred_fallthru
        _
    $region64: #{fitting_net_forward.1} parent=5 // pred_fallthru
      _
  $region6: #{fitting_net_forward.1} parent=0 // loop_footer
    %s20 = sadd.s32 1, %s16
  $region7: #{fitting_net_forward.1} parent=0 // loop_footer_branch
    %15 = sbr.rel target = $region3
  $region8: #{fitting_net_forward.1} parent=0 // loop_exit
    _

</llo_original>
